<compile_context>
chip_gen: v7x
topology: tpu7x:2x2x1
jax: 0.10.0
libtpu: 0.0.40
codegen_flags: <defaults>
</compile_context>

<pallas_src>
import math

import jax
import jax.numpy as jnp
from jax import lax
from jax.experimental import pallas as pl
from jax.experimental.pallas import tpu as pltpu

# -------------------- model hyperparameters (small) --------------------
B, S, H = 2, 8, 32          # batch, seq, hidden
NUM_HEADS = 4
HEAD_DIM = H // NUM_HEADS   # 8
INTER = 64                  # MLP intermediate size
NUM_LAYERS = 2
EPS = 1e-6
NEG_INF = -1e30

BS = B * S                  # rows processed by the kernel (batch folded in)
H2 = H // 2                 # half width for the permuted-layout rotate_half
SCALE = 1.0 / math.sqrt(HEAD_DIM)


# ------------------------------ kernel ---------------------------------
def llama_stack_kernel(x_ref, ln1_ref, wq_ref, wk_ref, wv_ref, wo_ref,
                       ln2_ref, wg_ref, wu_ref, wd_ref,
                       cos_ref, sin_ref, hmq_ref, hmv_ref, bias_ref, o_ref):
    x = x_ref[...]                       # (BS, H) activation, carried as a value
    cos = cos_ref[...]                   # (BS, H) permuted ("half-major") layout
    sin = sin_ref[...]                   # (BS, H) permuted layout
    bias = bias_ref[...]                 # (BS, BS) causal & same-batch bias

    def rope(t):
        # In the half-major permuted layout, rotate_half is a full-width
        # half-swap with a sign on the first half: [-second_half, first_half].
        rot = jnp.concatenate([-t[:, H2:], t[:, :H2]], axis=1)
        return t * cos + rot * sin

    # Statically unrolled layer loop (NUM_LAYERS = 2): weights stay resident
    # in VMEM, the activation never round-trips to HBM between layers.
    for l in range(NUM_LAYERS):
        # ---- input RMSNorm ----
        var = jnp.mean(x * x, axis=-1, keepdims=True)
        h = x * lax.rsqrt(var + EPS) * ln1_ref[l]

        # ---- Q / K / V projections (separate matmuls: no output slicing) ----
        q = rope(jnp.dot(h, wq_ref[l], preferred_element_type=jnp.float32)) * SCALE
        k = rope(jnp.dot(h, wk_ref[l], preferred_element_type=jnp.float32))
        v = jnp.dot(h, wv_ref[l], preferred_element_type=jnp.float32)

        # ---- attention: heads separated by full-width 0/1 column masks ----
        # (per-head (BS,BS) scores; no reshapes cross the (8,128) vreg tile)
        attn = jnp.zeros((BS, H), jnp.float32)
        for hd in range(NUM_HEADS):
            s = lax.dot_general(q * hmq_ref[hd], k, (((1,), (1,)), ((), ())),
                                preferred_element_type=jnp.float32) + bias
            m = jnp.max(s, axis=-1, keepdims=True)
            p = jnp.exp(s - m)
            p = p / jnp.sum(p, axis=-1, keepdims=True)      # exact divide
            attn = attn + jnp.dot(p, v * hmv_ref[hd],
                                  preferred_element_type=jnp.float32)

        x = x + jnp.dot(attn, wo_ref[l], preferred_element_type=jnp.float32)

        # ---- post-attention RMSNorm + SwiGLU MLP ----
        var2 = jnp.mean(x * x, axis=-1, keepdims=True)
        h2 = x * lax.rsqrt(var2 + EPS) * ln2_ref[l]
        g = jnp.dot(h2, wg_ref[l], preferred_element_type=jnp.float32)
        u = jnp.dot(h2, wu_ref[l], preferred_element_type=jnp.float32)
        x = x + jnp.dot(g * jax.nn.sigmoid(g) * u, wd_ref[l],
                        preferred_element_type=jnp.float32)

    o_ref[...] = x


# ------------------------------ wrapper ---------------------------------
@jax.jit
def llama_layers_forward(x, packed):
    x2 = x.reshape(BS, H)
    n_in = 1 + len(packed)
    out = pl.pallas_call(
        llama_stack_kernel,
        out_shape=jax.ShapeDtypeStruct((BS, H), x.dtype),
        # No grid: every input is a whole-array VMEM block (total ~80 KB),
        # the kernel runs exactly once.
        in_specs=[pl.BlockSpec(memory_space=pltpu.MemorySpace.VMEM)
                  for _ in range(n_in)],
        out_specs=pl.BlockSpec(memory_space=pltpu.MemorySpace.VMEM),
    )(x2, *packed)
    return out.reshape(x.shape)


# ---------------- wrapper-side constant / weight packing ----------------
def pack_inputs(layer_params, cos, sin):
    half = HEAD_DIM // 2
    # Half-major column permutation: new column j holds old column perm[j].
    # First H/2 new columns = all heads' first halves, last H/2 = second halves.
    heads = jnp.arange(NUM_HEADS)
    d = jnp.arange(half)
    perm_first = (heads[:, None] * HEAD_DIM + d[None, :]).reshape(-1)
    perm = jnp.concatenate([perm_first, perm_first + half])          # (H,)

    ln1_all = jnp.stack([p[0] for p in layer_params])                # (L,1,H)
    wq_all = jnp.stack([p[1][:, perm] for p in layer_params])        # (L,H,H)
    wk_all = jnp.stack([p[2][:, perm] for p in layer_params])        # (L,H,H)
    wv_all = jnp.stack([p[3] for p in layer_params])                 # (L,H,H)
    wo_all = jnp.stack([p[4] for p in layer_params])                 # (L,H,H)
    ln2_all = jnp.stack([p[5] for p in layer_params])                # (L,1,H)
    wg_all = jnp.stack([p[6] for p in layer_params])                 # (L,H,I)
    wu_all = jnp.stack([p[7] for p in layer_params])                 # (L,H,I)
    wd_all = jnp.stack([p[8] for p in layer_params])                 # (L,I,H)

    # RoPE cos/sin tiled over heads and batch to match the (B*S, H) layout,
    # then permuted to the half-major layout used by q/k.
    cos_f = jnp.tile(jnp.tile(cos, (1, NUM_HEADS)), (B, 1))          # (BS,H)
    sin_f = jnp.tile(jnp.tile(sin, (1, NUM_HEADS)), (B, 1))          # (BS,H)
    cos_p = cos_f[:, perm]
    sin_p = sin_f[:, perm]

    # Per-head 0/1 column masks: original layout for V, permuted for Q/K.
    col = jnp.arange(H)
    hmv = (col[None, :] // HEAD_DIM ==
           jnp.arange(NUM_HEADS)[:, None]).astype(jnp.float32)[:, None, :]  # (NH,1,H)
    hmq = hmv[:, :, perm]                                            # (NH,1,H)

    # Additive attention bias for rows ordered (batch, pos): same batch + causal.
    idx = jnp.arange(BS)
    b_idx = idx // S
    s_idx = idx % S
    valid = (b_idx[:, None] == b_idx[None, :]) & (s_idx[None, :] <= s_idx[:, None])
    bias = jnp.where(valid, 0.0, NEG_INF).astype(jnp.float32)        # (BS,BS)

    return (ln1_all, wq_all, wk_all, wv_all, wo_all, ln2_all,
            wg_all, wu_all, wd_all, cos_p, sin_p, hmq, hmv, bias)


# -------------------------- pure-JAX reference --------------------------
def _ref_layer(x, ln1, wq, wk, wv, wo, ln2, wg, wu, wd, cos, sin):
    var = jnp.mean(x * x, axis=-1, keepdims=True)
    h = x * lax.rsqrt(var + EPS) * ln1[0]
    q, k, v = h @ wq, h @ wk, h @ wv

    def split(t):
        return t.reshape(B, S, NUM_HEADS, HEAD_DIM).transpose(0, 2, 1, 3)

    def rot(t):
        half = t.shape[-1] // 2
        return jnp.concatenate([-t[..., half:], t[..., :half]], axis=-1)

    qh, kh, vh = split(q), split(k), split(v)
    qh = qh * cos + rot(qh) * sin
    kh = kh * cos + rot(kh) * sin
    s = jnp.einsum('bhqd,bhkd->bhqk', qh, kh) / math.sqrt(HEAD_DIM)
    mask = jnp.tril(jnp.ones((S, S), dtype=bool))
    s = jnp.where(mask, s, NEG_INF)
    p = jax.nn.softmax(s, axis=-1)
    a = jnp.einsum('bhqk,bhkd->bhqd', p, vh)
    a = a.transpose(0, 2, 1, 3).reshape(B, S, H)
    x = x + a @ wo
    var2 = jnp.mean(x * x, axis=-1, keepdims=True)
    h2 = x * lax.rsqrt(var2 + EPS) * ln2[0]
    mlp = (jax.nn.silu(h2 @ wg) * (h2 @ wu)) @ wd
    return x + mlp


def _ref_forward(x, layer_params, cos, sin):
    for p in layer_params:
        x = _ref_layer(x, *p, cos, sin)
    return x


# ------------------------------- main -----------------------------------
if __name__ == "__main__":
    key = jax.random.PRNGKey(0)

    def init_layer(k):
        ks = jax.random.split(k, 7)
        scale = 0.05
        ln1 = jnp.ones((1, H), jnp.float32)
        ln2 = jnp.ones((1, H), jnp.float32)
        wq = scale * jax.random.normal(ks[0], (H, H), jnp.float32)
        wk = scale * jax.random.normal(ks[1], (H, H), jnp.float32)
        wv = scale * jax.random.normal(ks[2], (H, H), jnp.float32)
        wo = scale * jax.random.normal(ks[3], (H, H), jnp.float32)
        wg = scale * jax.random.normal(ks[4], (H, INTER), jnp.float32)
        wu = scale * jax.random.normal(ks[5], (H, INTER), jnp.float32)
        wd = scale * jax.random.normal(ks[6], (INTER, H), jnp.float32)
        return (ln1, wq, wk, wv, wo, ln2, wg, wu, wd)

    key, *layer_keys = jax.random.split(key, NUM_LAYERS + 1)
    layer_params = [init_layer(k) for k in layer_keys]

    key, xk = jax.random.split(key)
    x = jax.random.normal(xk, (B, S, H), jnp.float32)

    # RoPE tables (glue, precomputed in plain JAX)
    inv_freq = 1.0 / (10000.0 ** (jnp.arange(0, HEAD_DIM, 2,
                                              dtype=jnp.float32) / HEAD_DIM))
    pos = jnp.arange(S, dtype=jnp.float32)
    freqs = jnp.outer(pos, inv_freq)                 # (S, HEAD_DIM//2)
    emb = jnp.concatenate([freqs, freqs], axis=-1)   # (S, HEAD_DIM)
    cos, sin = jnp.cos(emb), jnp.sin(emb)

    packed = pack_inputs(layer_params, cos, sin)

    out = llama_layers_forward(x, packed)
    out = jax.block_until_ready(out)

    with jax.default_matmul_precision("highest"):
        ref = _ref_forward(x, layer_params, cos, sin)

    assert out.shape == (B, S, H) and out.dtype == jnp.float32
    # Exact softmax divide (approx reciprocal removed) -> tighter tolerance.
    assert jnp.allclose(out, ref, atol=1e-3, rtol=1e-3), "mismatch vs reference"

    print("KERNEL_OK")
</pallas_src>

<mosaic_0001>
module attributes {stable_mosaic.version = 11 : i64} {
  func.func @llama_stack_kernel(%arg0: memref<16x32xf32, #tpu.memory_space<vmem>>, %arg1: memref<2x1x32xf32, #tpu.memory_space<vmem>>, %arg2: memref<2x32x32xf32, #tpu.memory_space<vmem>>, %arg3: memref<2x32x32xf32, #tpu.memory_space<vmem>>, %arg4: memref<2x32x32xf32, #tpu.memory_space<vmem>>, %arg5: memref<2x32x32xf32, #tpu.memory_space<vmem>>, %arg6: memref<2x1x32xf32, #tpu.memory_space<vmem>>, %arg7: memref<2x32x64xf32, #tpu.memory_space<vmem>>, %arg8: memref<2x32x64xf32, #tpu.memory_space<vmem>>, %arg9: memref<2x64x32xf32, #tpu.memory_space<vmem>>, %arg10: memref<16x32xf32, #tpu.memory_space<vmem>>, %arg11: memref<16x32xf32, #tpu.memory_space<vmem>>, %arg12: memref<4x1x32xf32, #tpu.memory_space<vmem>>, %arg13: memref<4x1x32xf32, #tpu.memory_space<vmem>>, %arg14: memref<16x16xf32, #tpu.memory_space<vmem>>, %arg15: memref<16x32xf32, #tpu.memory_space<vmem>>) attributes {dimension_semantics = [], scalar_prefetch = 0 : i64, scratch_operands = 0 : i64, tpu.core_type = #tpu.core_type<tc>} {
    %c0 = arith.constant 0 : index
    %c0_0 = arith.constant 0 : index
    %0 = vector.load %arg0[%c0, %c0_0] : memref<16x32xf32, #tpu.memory_space<vmem>>, vector<16x32xf32>
    %c0_1 = arith.constant 0 : index
    %c0_2 = arith.constant 0 : index
    %1 = vector.load %arg10[%c0_1, %c0_2] : memref<16x32xf32, #tpu.memory_space<vmem>>, vector<16x32xf32>
    %c0_3 = arith.constant 0 : index
    %c0_4 = arith.constant 0 : index
    %2 = vector.load %arg11[%c0_3, %c0_4] : memref<16x32xf32, #tpu.memory_space<vmem>>, vector<16x32xf32>
    %c0_5 = arith.constant 0 : index
    %c0_6 = arith.constant 0 : index
    %3 = vector.load %arg14[%c0_5, %c0_6] : memref<16x16xf32, #tpu.memory_space<vmem>>, vector<16x16xf32>
    %4 = arith.mulf %0, %0 : vector<16x32xf32>
    %cst = arith.constant dense<0.000000e+00> : vector<16xf32>
    %5 = vector.multi_reduction <add>, %4, %cst [1] : vector<16x32xf32> to vector<16xf32>
    %6 = vector.shape_cast %5 : vector<16xf32> to vector<16x1xf32>
    %cst_7 = arith.constant 3.200000e+01 : f32
    %7 = vector.broadcast %cst_7 : f32 to vector<16x1xf32>
    %8 = arith.divf %6, %7 : vector<16x1xf32>
    %cst_8 = arith.constant 9.99999997E-7 : f32
    %9 = vector.broadcast %cst_8 : f32 to vector<16x1xf32>
    %10 = arith.addf %8, %9 : vector<16x1xf32>
    %11 = math.rsqrt %10 : vector<16x1xf32>
    %12 = vector.broadcast %11 : vector<16x1xf32> to vector<16x32xf32>
    %13 = arith.mulf %0, %12 : vector<16x32xf32>
    %c0_9 = arith.constant 0 : index
    %c0_10 = arith.constant 0 : index
    %c0_11 = arith.constant 0 : index
    %14 = vector.load %arg1[%c0_9, %c0_10, %c0_11] : memref<2x1x32xf32, #tpu.memory_space<vmem>>, vector<1x1x32xf32>
    %15 = vector.shape_cast %14 : vector<1x1x32xf32> to vector<1x32xf32>
    %16 = vector.broadcast %15 : vector<1x32xf32> to vector<16x32xf32>
    %17 = arith.mulf %13, %16 : vector<16x32xf32>
    %c0_12 = arith.constant 0 : index
    %c0_13 = arith.constant 0 : index
    %c0_14 = arith.constant 0 : index
    %18 = vector.load %arg2[%c0_12, %c0_13, %c0_14] : memref<2x32x32xf32, #tpu.memory_space<vmem>>, vector<1x32x32xf32>
    %19 = vector.shape_cast %18 : vector<1x32x32xf32> to vector<32x32xf32>
    %cst_15 = arith.constant dense<0.000000e+00> : vector<16x32xf32>
    %20 = tpu.matmul %17, %19, %cst_15 {dimension_numbers = #tpu.dot_dimension_numbers<[1], [0], [0], [1], [0, 0, 1, 1], [], []>} : vector<16x32xf32>, vector<32x32xf32>, vector<16x32xf32> -> vector<16x32xf32>
    %21 = vector.extract_strided_slice %20 {offsets = [0, 16], sizes = [16, 16], strides = [1, 1]} : vector<16x32xf32> to vector<16x16xf32>
    %cst_16 = arith.constant 0.000000e+00 : f32
    %22 = vector.broadcast %cst_16 : f32 to vector<16x16xf32>
    %23 = arith.subf %22, %21 : vector<16x16xf32>
    %24 = vector.extract_strided_slice %20 {offsets = [0, 0], sizes = [16, 16], strides = [1, 1]} : vector<16x32xf32> to vector<16x16xf32>
    %25 = tpu.concatenate %23, %24 in 1 : vector<16x16xf32>, vector<16x16xf32> -> vector<16x32xf32>
    %26 = arith.mulf %20, %1 : vector<16x32xf32>
    %27 = arith.mulf %25, %2 : vector<16x32xf32>
    %28 = arith.addf %26, %27 : vector<16x32xf32>
    %cst_17 = arith.constant 0.353553385 : f32
    %29 = vector.broadcast %cst_17 : f32 to vector<16x32xf32>
    %30 = arith.mulf %28, %29 : vector<16x32xf32>
    %c0_18 = arith.constant 0 : index
    %c0_19 = arith.constant 0 : index
    %c0_20 = arith.constant 0 : index
    %31 = vector.load %arg3[%c0_18, %c0_19, %c0_20] : memref<2x32x32xf32, #tpu.memory_space<vmem>>, vector<1x32x32xf32>
    %32 = vector.shape_cast %31 : vector<1x32x32xf32> to vector<32x32xf32>
    %cst_21 = arith.constant dense<0.000000e+00> : vector<16x32xf32>
    %33 = tpu.matmul %17, %32, %cst_21 {dimension_numbers = #tpu.dot_dimension_numbers<[1], [0], [0], [1], [0, 0, 1, 1], [], []>} : vector<16x32xf32>, vector<32x32xf32>, vector<16x32xf32> -> vector<16x32xf32>
    %34 = vector.extract_strided_slice %33 {offsets = [0, 16], sizes = [16, 16], strides = [1, 1]} : vector<16x32xf32> to vector<16x16xf32>
    %cst_22 = arith.constant 0.000000e+00 : f32
    %35 = vector.broadcast %cst_22 : f32 to vector<16x16xf32>
    %36 = arith.subf %35, %34 : vector<16x16xf32>
    %37 = vector.extract_strided_slice %33 {offsets = [0, 0], sizes = [16, 16], strides = [1, 1]} : vector<16x32xf32> to vector<16x16xf32>
    %38 = tpu.concatenate %36, %37 in 1 : vector<16x16xf32>, vector<16x16xf32> -> vector<16x32xf32>
    %39 = arith.mulf %33, %1 : vector<16x32xf32>
    %40 = arith.mulf %38, %2 : vector<16x32xf32>
    %41 = arith.addf %39, %40 : vector<16x32xf32>
    %c0_23 = arith.constant 0 : index
    %c0_24 = arith.constant 0 : index
    %c0_25 = arith.constant 0 : index
    %42 = vector.load %arg4[%c0_23, %c0_24, %c0_25] : memref<2x32x32xf32, #tpu.memory_space<vmem>>, vector<1x32x32xf32>
    %43 = vector.shape_cast %42 : vector<1x32x32xf32> to vector<32x32xf32>
    %cst_26 = arith.constant dense<0.000000e+00> : vector<16x32xf32>
    %44 = tpu.matmul %17, %43, %cst_26 {dimension_numbers = #tpu.dot_dimension_numbers<[1], [0], [0], [1], [0, 0, 1, 1], [], []>} : vector<16x32xf32>, vector<32x32xf32>, vector<16x32xf32> -> vector<16x32xf32>
    %cst_27 = arith.constant 0.000000e+00 : f32
    %45 = vector.broadcast %cst_27 : f32 to vector<16x32xf32>
    %c0_28 = arith.constant 0 : index
    %c0_29 = arith.constant 0 : index
    %c0_30 = arith.constant 0 : index
    %46 = vector.load %arg12[%c0_28, %c0_29, %c0_30] : memref<4x1x32xf32, #tpu.memory_space<vmem>>, vector<1x1x32xf32>
    %47 = vector.shape_cast %46 : vector<1x1x32xf32> to vector<1x32xf32>
    %48 = vector.broadcast %47 : vector<1x32xf32> to vector<16x32xf32>
    %49 = arith.mulf %30, %48 : vector<16x32xf32>
    %cst_31 = arith.constant dense<0.000000e+00> : vector<16x16xf32>
    %50 = tpu.matmul %49, %41, %cst_31 {dimension_numbers = #tpu.dot_dimension_numbers<[1], [1], [0], [0], [0, 0, 1, 0], [], []>} : vector<16x32xf32>, vector<16x32xf32>, vector<16x16xf32> -> vector<16x16xf32>
    %51 = arith.addf %50, %3 : vector<16x16xf32>
    %cst_32 = arith.constant dense<0xFF800000> : vector<16xf32>
    %52 = vector.multi_reduction <maximumf>, %51, %cst_32 [1] : vector<16x16xf32> to vector<16xf32>
    %53 = vector.shape_cast %52 : vector<16xf32> to vector<16x1xf32>
    %54 = vector.broadcast %53 : vector<16x1xf32> to vector<16x16xf32>
    %55 = arith.subf %51, %54 : vector<16x16xf32>
    %56 = math.exp %55 : vector<16x16xf32>
    %cst_33 = arith.constant dense<0.000000e+00> : vector<16xf32>
    %57 = vector.multi_reduction <add>, %56, %cst_33 [1] : vector<16x16xf32> to vector<16xf32>
    %58 = vector.shape_cast %57 : vector<16xf32> to vector<16x1xf32>
    %59 = vector.broadcast %58 : vector<16x1xf32> to vector<16x16xf32>
    %60 = arith.divf %56, %59 : vector<16x16xf32>
    %c0_34 = arith.constant 0 : index
    %c0_35 = arith.constant 0 : index
    %c0_36 = arith.constant 0 : index
    %61 = vector.load %arg13[%c0_34, %c0_35, %c0_36] : memref<4x1x32xf32, #tpu.memory_space<vmem>>, vector<1x1x32xf32>
    %62 = vector.shape_cast %61 : vector<1x1x32xf32> to vector<1x32xf32>
    %63 = vector.broadcast %62 : vector<1x32xf32> to vector<16x32xf32>
    %64 = arith.mulf %44, %63 : vector<16x32xf32>
    %cst_37 = arith.constant dense<0.000000e+00> : vector<16x32xf32>
    %65 = tpu.matmul %60, %64, %cst_37 {dimension_numbers = #tpu.dot_dimension_numbers<[1], [0], [0], [1], [0, 0, 1, 1], [], []>} : vector<16x16xf32>, vector<16x32xf32>, vector<16x32xf32> -> vector<16x32xf32>
    %66 = arith.addf %45, %65 : vector<16x32xf32>
    %c1 = arith.constant 1 : index
    %c0_38 = arith.constant 0 : index
    %c0_39 = arith.constant 0 : index
    %67 = vector.load %arg12[%c1, %c0_38, %c0_39] : memref<4x1x32xf32, #tpu.memory_space<vmem>>, vector<1x1x32xf32>
    %68 = vector.shape_cast %67 : vector<1x1x32xf32> to vector<1x32xf32>
    %69 = vector.broadcast %68 : vector<1x32xf32> to vector<16x32xf32>
    %70 = arith.mulf %30, %69 : vector<16x32xf32>
    %cst_40 = arith.constant dense<0.000000e+00> : vector<16x16xf32>
    %71 = tpu.matmul %70, %41, %cst_40 {dimension_numbers = #tpu.dot_dimension_numbers<[1], [1], [0], [0], [0, 0, 1, 0], [], []>} : vector<16x32xf32>, vector<16x32xf32>, vector<16x16xf32> -> vector<16x16xf32>
    %72 = arith.addf %71, %3 : vector<16x16xf32>
    %cst_41 = arith.constant dense<0xFF800000> : vector<16xf32>
    %73 = vector.multi_reduction <maximumf>, %72, %cst_41 [1] : vector<16x16xf32> to vector<16xf32>
    %74 = vector.shape_cast %73 : vector<16xf32> to vector<16x1xf32>
    %75 = vector.broadcast %74 : vector<16x1xf32> to vector<16x16xf32>
    %76 = arith.subf %72, %75 : vector<16x16xf32>
    %77 = math.exp %76 : vector<16x16xf32>
    %cst_42 = arith.constant dense<0.000000e+00> : vector<16xf32>
    %78 = vector.multi_reduction <add>, %77, %cst_42 [1] : vector<16x16xf32> to vector<16xf32>
    %79 = vector.shape_cast %78 : vector<16xf32> to vector<16x1xf32>
    %80 = vector.broadcast %79 : vector<16x1xf32> to vector<16x16xf32>
    %81 = arith.divf %77, %80 : vector<16x16xf32>
    %c1_43 = arith.constant 1 : index
    %c0_44 = arith.constant 0 : index
    %c0_45 = arith.constant 0 : index
    %82 = vector.load %arg13[%c1_43, %c0_44, %c0_45] : memref<4x1x32xf32, #tpu.memory_space<vmem>>, vector<1x1x32xf32>
    %83 = vector.shape_cast %82 : vector<1x1x32xf32> to vector<1x32xf32>
    %84 = vector.broadcast %83 : vector<1x32xf32> to vector<16x32xf32>
    %85 = arith.mulf %44, %84 : vector<16x32xf32>
    %cst_46 = arith.constant dense<0.000000e+00> : vector<16x32xf32>
    %86 = tpu.matmul %81, %85, %cst_46 {dimension_numbers = #tpu.dot_dimension_numbers<[1], [0], [0], [1], [0, 0, 1, 1], [], []>} : vector<16x16xf32>, vector<16x32xf32>, vector<16x32xf32> -> vector<16x32xf32>
    %87 = arith.addf %66, %86 : vector<16x32xf32>
    %c2 = arith.constant 2 : index
    %c0_47 = arith.constant 0 : index
    %c0_48 = arith.constant 0 : index
    %88 = vector.load %arg12[%c2, %c0_47, %c0_48] : memref<4x1x32xf32, #tpu.memory_space<vmem>>, vector<1x1x32xf32>
    %89 = vector.shape_cast %88 : vector<1x1x32xf32> to vector<1x32xf32>
    %90 = vector.broadcast %89 : vector<1x32xf32> to vector<16x32xf32>
    %91 = arith.mulf %30, %90 : vector<16x32xf32>
    %cst_49 = arith.constant dense<0.000000e+00> : vector<16x16xf32>
    %92 = tpu.matmul %91, %41, %cst_49 {dimension_numbers = #tpu.dot_dimension_numbers<[1], [1], [0], [0], [0, 0, 1, 0], [], []>} : vector<16x32xf32>, vector<16x32xf32>, vector<16x16xf32> -> vector<16x16xf32>
    %93 = arith.addf %92, %3 : vector<16x16xf32>
    %cst_50 = arith.constant dense<0xFF800000> : vector<16xf32>
    %94 = vector.multi_reduction <maximumf>, %93, %cst_50 [1] : vector<16x16xf32> to vector<16xf32>
    %95 = vector.shape_cast %94 : vector<16xf32> to vector<16x1xf32>
    %96 = vector.broadcast %95 : vector<16x1xf32> to vector<16x16xf32>
    %97 = arith.subf %93, %96 : vector<16x16xf32>
    %98 = math.exp %97 : vector<16x16xf32>
    %cst_51 = arith.constant dense<0.000000e+00> : vector<16xf32>
    %99 = vector.multi_reduction <add>, %98, %cst_51 [1] : vector<16x16xf32> to vector<16xf32>
    %100 = vector.shape_cast %99 : vector<16xf32> to vector<16x1xf32>
    %101 = vector.broadcast %100 : vector<16x1xf32> to vector<16x16xf32>
    %102 = arith.divf %98, %101 : vector<16x16xf32>
    %c2_52 = arith.constant 2 : index
    %c0_53 = arith.constant 0 : index
    %c0_54 = arith.constant 0 : index
    %103 = vector.load %arg13[%c2_52, %c0_53, %c0_54] : memref<4x1x32xf32, #tpu.memory_space<vmem>>, vector<1x1x32xf32>
    %104 = vector.shape_cast %103 : vector<1x1x32xf32> to vector<1x32xf32>
    %105 = vector.broadcast %104 : vector<1x32xf32> to vector<16x32xf32>
    %106 = arith.mulf %44, %105 : vector<16x32xf32>
    %cst_55 = arith.constant dense<0.000000e+00> : vector<16x32xf32>
    %107 = tpu.matmul %102, %106, %cst_55 {dimension_numbers = #tpu.dot_dimension_numbers<[1], [0], [0], [1], [0, 0, 1, 1], [], []>} : vector<16x16xf32>, vector<16x32xf32>, vector<16x32xf32> -> vector<16x32xf32>
    %108 = arith.addf %87, %107 : vector<16x32xf32>
    %c3 = arith.constant 3 : index
    %c0_56 = arith.constant 0 : index
    %c0_57 = arith.constant 0 : index
    %109 = vector.load %arg12[%c3, %c0_56, %c0_57] : memref<4x1x32xf32, #tpu.memory_space<vmem>>, vector<1x1x32xf32>
    %110 = vector.shape_cast %109 : vector<1x1x32xf32> to vector<1x32xf32>
    %111 = vector.broadcast %110 : vector<1x32xf32> to vector<16x32xf32>
    %112 = arith.mulf %30, %111 : vector<16x32xf32>
    %cst_58 = arith.constant dense<0.000000e+00> : vector<16x16xf32>
    %113 = tpu.matmul %112, %41, %cst_58 {dimension_numbers = #tpu.dot_dimension_numbers<[1], [1], [0], [0], [0, 0, 1, 0], [], []>} : vector<16x32xf32>, vector<16x32xf32>, vector<16x16xf32> -> vector<16x16xf32>
    %114 = arith.addf %113, %3 : vector<16x16xf32>
    %cst_59 = arith.constant dense<0xFF800000> : vector<16xf32>
    %115 = vector.multi_reduction <maximumf>, %114, %cst_59 [1] : vector<16x16xf32> to vector<16xf32>
    %116 = vector.shape_cast %115 : vector<16xf32> to vector<16x1xf32>
    %117 = vector.broadcast %116 : vector<16x1xf32> to vector<16x16xf32>
    %118 = arith.subf %114, %117 : vector<16x16xf32>
    %119 = math.exp %118 : vector<16x16xf32>
    %cst_60 = arith.constant dense<0.000000e+00> : vector<16xf32>
    %120 = vector.multi_reduction <add>, %119, %cst_60 [1] : vector<16x16xf32> to vector<16xf32>
    %121 = vector.shape_cast %120 : vector<16xf32> to vector<16x1xf32>
    %122 = vector.broadcast %121 : vector<16x1xf32> to vector<16x16xf32>
    %123 = arith.divf %119, %122 : vector<16x16xf32>
    %c3_61 = arith.constant 3 : index
    %c0_62 = arith.constant 0 : index
    %c0_63 = arith.constant 0 : index
    %124 = vector.load %arg13[%c3_61, %c0_62, %c0_63] : memref<4x1x32xf32, #tpu.memory_space<vmem>>, vector<1x1x32xf32>
    %125 = vector.shape_cast %124 : vector<1x1x32xf32> to vector<1x32xf32>
    %126 = vector.broadcast %125 : vector<1x32xf32> to vector<16x32xf32>
    %127 = arith.mulf %44, %126 : vector<16x32xf32>
    %cst_64 = arith.constant dense<0.000000e+00> : vector<16x32xf32>
    %128 = tpu.matmul %123, %127, %cst_64 {dimension_numbers = #tpu.dot_dimension_numbers<[1], [0], [0], [1], [0, 0, 1, 1], [], []>} : vector<16x16xf32>, vector<16x32xf32>, vector<16x32xf32> -> vector<16x32xf32>
    %129 = arith.addf %108, %128 : vector<16x32xf32>
    %c0_65 = arith.constant 0 : index
    %c0_66 = arith.constant 0 : index
    %c0_67 = arith.constant 0 : index
    %130 = vector.load %arg5[%c0_65, %c0_66, %c0_67] : memref<2x32x32xf32, #tpu.memory_space<vmem>>, vector<1x32x32xf32>
    %131 = vector.shape_cast %130 : vector<1x32x32xf32> to vector<32x32xf32>
    %cst_68 = arith.constant dense<0.000000e+00> : vector<16x32xf32>
    %132 = tpu.matmul %129, %131, %cst_68 {dimension_numbers = #tpu.dot_dimension_numbers<[1], [0], [0], [1], [0, 0, 1, 1], [], []>} : vector<16x32xf32>, vector<32x32xf32>, vector<16x32xf32> -> vector<16x32xf32>
    %133 = arith.addf %0, %132 : vector<16x32xf32>
    %134 = arith.mulf %133, %133 : vector<16x32xf32>
    %cst_69 = arith.constant dense<0.000000e+00> : vector<16xf32>
    %135 = vector.multi_reduction <add>, %134, %cst_69 [1] : vector<16x32xf32> to vector<16xf32>
    %136 = vector.shape_cast %135 : vector<16xf32> to vector<16x1xf32>
    %cst_70 = arith.constant 3.200000e+01 : f32
    %137 = vector.broadcast %cst_70 : f32 to vector<16x1xf32>
    %138 = arith.divf %136, %137 : vector<16x1xf32>
    %cst_71 = arith.constant 9.99999997E-7 : f32
    %139 = vector.broadcast %cst_71 : f32 to vector<16x1xf32>
    %140 = arith.addf %138, %139 : vector<16x1xf32>
    %141 = math.rsqrt %140 : vector<16x1xf32>
    %142 = vector.broadcast %141 : vector<16x1xf32> to vector<16x32xf32>
    %143 = arith.mulf %133, %142 : vector<16x32xf32>
    %c0_72 = arith.constant 0 : index
    %c0_73 = arith.constant 0 : index
    %c0_74 = arith.constant 0 : index
    %144 = vector.load %arg6[%c0_72, %c0_73, %c0_74] : memref<2x1x32xf32, #tpu.memory_space<vmem>>, vector<1x1x32xf32>
    %145 = vector.shape_cast %144 : vector<1x1x32xf32> to vector<1x32xf32>
    %146 = vector.broadcast %145 : vector<1x32xf32> to vector<16x32xf32>
    %147 = arith.mulf %143, %146 : vector<16x32xf32>
    %c0_75 = arith.constant 0 : index
    %c0_76 = arith.constant 0 : index
    %c0_77 = arith.constant 0 : index
    %148 = vector.load %arg7[%c0_75, %c0_76, %c0_77] : memref<2x32x64xf32, #tpu.memory_space<vmem>>, vector<1x32x64xf32>
    %149 = vector.shape_cast %148 : vector<1x32x64xf32> to vector<32x64xf32>
    %cst_78 = arith.constant dense<0.000000e+00> : vector<16x64xf32>
    %150 = tpu.matmul %147, %149, %cst_78 {dimension_numbers = #tpu.dot_dimension_numbers<[1], [0], [0], [1], [0, 0, 1, 1], [], []>} : vector<16x32xf32>, vector<32x64xf32>, vector<16x64xf32> -> vector<16x64xf32>
    %c0_79 = arith.constant 0 : index
    %c0_80 = arith.constant 0 : index
    %c0_81 = arith.constant 0 : index
    %151 = vector.load %arg8[%c0_79, %c0_80, %c0_81] : memref<2x32x64xf32, #tpu.memory_space<vmem>>, vector<1x32x64xf32>
    %152 = vector.shape_cast %151 : vector<1x32x64xf32> to vector<32x64xf32>
    %cst_82 = arith.constant dense<0.000000e+00> : vector<16x64xf32>
    %153 = tpu.matmul %147, %152, %cst_82 {dimension_numbers = #tpu.dot_dimension_numbers<[1], [0], [0], [1], [0, 0, 1, 1], [], []>} : vector<16x32xf32>, vector<32x64xf32>, vector<16x64xf32> -> vector<16x64xf32>
    %154 = arith.negf %150 : vector<16x64xf32>
    %155 = math.exp %154 : vector<16x64xf32>
    %cst_83 = arith.constant 1.000000e+00 : f32
    %156 = vector.broadcast %cst_83 : f32 to vector<16x64xf32>
    %157 = arith.addf %156, %155 : vector<16x64xf32>
    %158 = arith.divf %156, %157 : vector<16x64xf32>
    %159 = arith.mulf %150, %158 : vector<16x64xf32>
    %160 = arith.mulf %159, %153 : vector<16x64xf32>
    %c0_84 = arith.constant 0 : index
    %c0_85 = arith.constant 0 : index
    %c0_86 = arith.constant 0 : index
    %161 = vector.load %arg9[%c0_84, %c0_85, %c0_86] : memref<2x64x32xf32, #tpu.memory_space<vmem>>, vector<1x64x32xf32>
    %162 = vector.shape_cast %161 : vector<1x64x32xf32> to vector<64x32xf32>
    %cst_87 = arith.constant dense<0.000000e+00> : vector<16x32xf32>
    %163 = tpu.matmul %160, %162, %cst_87 {dimension_numbers = #tpu.dot_dimension_numbers<[1], [0], [0], [1], [0, 0, 1, 1], [], []>} : vector<16x64xf32>, vector<64x32xf32>, vector<16x32xf32> -> vector<16x32xf32>
    %164 = arith.addf %133, %163 : vector<16x32xf32>
    %165 = arith.mulf %164, %164 : vector<16x32xf32>
    %cst_88 = arith.constant dense<0.000000e+00> : vector<16xf32>
    %166 = vector.multi_reduction <add>, %165, %cst_88 [1] : vector<16x32xf32> to vector<16xf32>
    %167 = vector.shape_cast %166 : vector<16xf32> to vector<16x1xf32>
    %cst_89 = arith.constant 3.200000e+01 : f32
    %168 = vector.broadcast %cst_89 : f32 to vector<16x1xf32>
    %169 = arith.divf %167, %168 : vector<16x1xf32>
    %cst_90 = arith.constant 9.99999997E-7 : f32
    %170 = vector.broadcast %cst_90 : f32 to vector<16x1xf32>
    %171 = arith.addf %169, %170 : vector<16x1xf32>
    %172 = math.rsqrt %171 : vector<16x1xf32>
    %173 = vector.broadcast %172 : vector<16x1xf32> to vector<16x32xf32>
    %174 = arith.mulf %164, %173 : vector<16x32xf32>
    %c1_91 = arith.constant 1 : index
    %c0_92 = arith.constant 0 : index
    %c0_93 = arith.constant 0 : index
    %175 = vector.load %arg1[%c1_91, %c0_92, %c0_93] : memref<2x1x32xf32, #tpu.memory_space<vmem>>, vector<1x1x32xf32>
    %176 = vector.shape_cast %175 : vector<1x1x32xf32> to vector<1x32xf32>
    %177 = vector.broadcast %176 : vector<1x32xf32> to vector<16x32xf32>
    %178 = arith.mulf %174, %177 : vector<16x32xf32>
    %c1_94 = arith.constant 1 : index
    %c0_95 = arith.constant 0 : index
    %c0_96 = arith.constant 0 : index
    %179 = vector.load %arg2[%c1_94, %c0_95, %c0_96] : memref<2x32x32xf32, #tpu.memory_space<vmem>>, vector<1x32x32xf32>
    %180 = vector.shape_cast %179 : vector<1x32x32xf32> to vector<32x32xf32>
    %cst_97 = arith.constant dense<0.000000e+00> : vector<16x32xf32>
    %181 = tpu.matmul %178, %180, %cst_97 {dimension_numbers = #tpu.dot_dimension_numbers<[1], [0], [0], [1], [0, 0, 1, 1], [], []>} : vector<16x32xf32>, vector<32x32xf32>, vector<16x32xf32> -> vector<16x32xf32>
    %182 = vector.extract_strided_slice %181 {offsets = [0, 16], sizes = [16, 16], strides = [1, 1]} : vector<16x32xf32> to vector<16x16xf32>
    %cst_98 = arith.constant 0.000000e+00 : f32
    %183 = vector.broadcast %cst_98 : f32 to vector<16x16xf32>
    %184 = arith.subf %183, %182 : vector<16x16xf32>
    %185 = vector.extract_strided_slice %181 {offsets = [0, 0], sizes = [16, 16], strides = [1, 1]} : vector<16x32xf32> to vector<16x16xf32>
    %186 = tpu.concatenate %184, %185 in 1 : vector<16x16xf32>, vector<16x16xf32> -> vector<16x32xf32>
    %187 = arith.mulf %181, %1 : vector<16x32xf32>
    %188 = arith.mulf %186, %2 : vector<16x32xf32>
    %189 = arith.addf %187, %188 : vector<16x32xf32>
    %cst_99 = arith.constant 0.353553385 : f32
    %190 = vector.broadcast %cst_99 : f32 to vector<16x32xf32>
    %191 = arith.mulf %189, %190 : vector<16x32xf32>
    %c1_100 = arith.constant 1 : index
    %c0_101 = arith.constant 0 : index
    %c0_102 = arith.constant 0 : index
    %192 = vector.load %arg3[%c1_100, %c0_101, %c0_102] : memref<2x32x32xf32, #tpu.memory_space<vmem>>, vector<1x32x32xf32>
    %193 = vector.shape_cast %192 : vector<1x32x32xf32> to vector<32x32xf32>
    %cst_103 = arith.constant dense<0.000000e+00> : vector<16x32xf32>
    %194 = tpu.matmul %178, %193, %cst_103 {dimension_numbers = #tpu.dot_dimension_numbers<[1], [0], [0], [1], [0, 0, 1, 1], [], []>} : vector<16x32xf32>, vector<32x32xf32>, vector<16x32xf32> -> vector<16x32xf32>
    %195 = vector.extract_strided_slice %194 {offsets = [0, 16], sizes = [16, 16], strides = [1, 1]} : vector<16x32xf32> to vector<16x16xf32>
    %cst_104 = arith.constant 0.000000e+00 : f32
    %196 = vector.broadcast %cst_104 : f32 to vector<16x16xf32>
    %197 = arith.subf %196, %195 : vector<16x16xf32>
    %198 = vector.extract_strided_slice %194 {offsets = [0, 0], sizes = [16, 16], strides = [1, 1]} : vector<16x32xf32> to vector<16x16xf32>
    %199 = tpu.concatenate %197, %198 in 1 : vector<16x16xf32>, vector<16x16xf32> -> vector<16x32xf32>
    %200 = arith.mulf %194, %1 : vector<16x32xf32>
    %201 = arith.mulf %199, %2 : vector<16x32xf32>
    %202 = arith.addf %200, %201 : vector<16x32xf32>
    %c1_105 = arith.constant 1 : index
    %c0_106 = arith.constant 0 : index
    %c0_107 = arith.constant 0 : index
    %203 = vector.load %arg4[%c1_105, %c0_106, %c0_107] : memref<2x32x32xf32, #tpu.memory_space<vmem>>, vector<1x32x32xf32>
    %204 = vector.shape_cast %203 : vector<1x32x32xf32> to vector<32x32xf32>
    %cst_108 = arith.constant dense<0.000000e+00> : vector<16x32xf32>
    %205 = tpu.matmul %178, %204, %cst_108 {dimension_numbers = #tpu.dot_dimension_numbers<[1], [0], [0], [1], [0, 0, 1, 1], [], []>} : vector<16x32xf32>, vector<32x32xf32>, vector<16x32xf32> -> vector<16x32xf32>
    %cst_109 = arith.constant 0.000000e+00 : f32
    %206 = vector.broadcast %cst_109 : f32 to vector<16x32xf32>
    %c0_110 = arith.constant 0 : index
    %c0_111 = arith.constant 0 : index
    %c0_112 = arith.constant 0 : index
    %207 = vector.load %arg12[%c0_110, %c0_111, %c0_112] : memref<4x1x32xf32, #tpu.memory_space<vmem>>, vector<1x1x32xf32>
    %208 = vector.shape_cast %207 : vector<1x1x32xf32> to vector<1x32xf32>
    %209 = vector.broadcast %208 : vector<1x32xf32> to vector<16x32xf32>
    %210 = arith.mulf %191, %209 : vector<16x32xf32>
    %cst_113 = arith.constant dense<0.000000e+00> : vector<16x16xf32>
    %211 = tpu.matmul %210, %202, %cst_113 {dimension_numbers = #tpu.dot_dimension_numbers<[1], [1], [0], [0], [0, 0, 1, 0], [], []>} : vector<16x32xf32>, vector<16x32xf32>, vector<16x16xf32> -> vector<16x16xf32>
    %212 = arith.addf %211, %3 : vector<16x16xf32>
    %cst_114 = arith.constant dense<0xFF800000> : vector<16xf32>
    %213 = vector.multi_reduction <maximumf>, %212, %cst_114 [1] : vector<16x16xf32> to vector<16xf32>
    %214 = vector.shape_cast %213 : vector<16xf32> to vector<16x1xf32>
    %215 = vector.broadcast %214 : vector<16x1xf32> to vector<16x16xf32>
    %216 = arith.subf %212, %215 : vector<16x16xf32>
    %217 = math.exp %216 : vector<16x16xf32>
    %cst_115 = arith.constant dense<0.000000e+00> : vector<16xf32>
    %218 = vector.multi_reduction <add>, %217, %cst_115 [1] : vector<16x16xf32> to vector<16xf32>
    %219 = vector.shape_cast %218 : vector<16xf32> to vector<16x1xf32>
    %220 = vector.broadcast %219 : vector<16x1xf32> to vector<16x16xf32>
    %221 = arith.divf %217, %220 : vector<16x16xf32>
    %c0_116 = arith.constant 0 : index
    %c0_117 = arith.constant 0 : index
    %c0_118 = arith.constant 0 : index
    %222 = vector.load %arg13[%c0_116, %c0_117, %c0_118] : memref<4x1x32xf32, #tpu.memory_space<vmem>>, vector<1x1x32xf32>
    %223 = vector.shape_cast %222 : vector<1x1x32xf32> to vector<1x32xf32>
    %224 = vector.broadcast %223 : vector<1x32xf32> to vector<16x32xf32>
    %225 = arith.mulf %205, %224 : vector<16x32xf32>
    %cst_119 = arith.constant dense<0.000000e+00> : vector<16x32xf32>
    %226 = tpu.matmul %221, %225, %cst_119 {dimension_numbers = #tpu.dot_dimension_numbers<[1], [0], [0], [1], [0, 0, 1, 1], [], []>} : vector<16x16xf32>, vector<16x32xf32>, vector<16x32xf32> -> vector<16x32xf32>
    %227 = arith.addf %206, %226 : vector<16x32xf32>
    %c1_120 = arith.constant 1 : index
    %c0_121 = arith.constant 0 : index
    %c0_122 = arith.constant 0 : index
    %228 = vector.load %arg12[%c1_120, %c0_121, %c0_122] : memref<4x1x32xf32, #tpu.memory_space<vmem>>, vector<1x1x32xf32>
    %229 = vector.shape_cast %228 : vector<1x1x32xf32> to vector<1x32xf32>
    %230 = vector.broadcast %229 : vector<1x32xf32> to vector<16x32xf32>
    %231 = arith.mulf %191, %230 : vector<16x32xf32>
    %cst_123 = arith.constant dense<0.000000e+00> : vector<16x16xf32>
    %232 = tpu.matmul %231, %202, %cst_123 {dimension_numbers = #tpu.dot_dimension_numbers<[1], [1], [0], [0], [0, 0, 1, 0], [], []>} : vector<16x32xf32>, vector<16x32xf32>, vector<16x16xf32> -> vector<16x16xf32>
    %233 = arith.addf %232, %3 : vector<16x16xf32>
    %cst_124 = arith.constant dense<0xFF800000> : vector<16xf32>
    %234 = vector.multi_reduction <maximumf>, %233, %cst_124 [1] : vector<16x16xf32> to vector<16xf32>
    %235 = vector.shape_cast %234 : vector<16xf32> to vector<16x1xf32>
    %236 = vector.broadcast %235 : vector<16x1xf32> to vector<16x16xf32>
    %237 = arith.subf %233, %236 : vector<16x16xf32>
    %238 = math.exp %237 : vector<16x16xf32>
    %cst_125 = arith.constant dense<0.000000e+00> : vector<16xf32>
    %239 = vector.multi_reduction <add>, %238, %cst_125 [1] : vector<16x16xf32> to vector<16xf32>
    %240 = vector.shape_cast %239 : vector<16xf32> to vector<16x1xf32>
    %241 = vector.broadcast %240 : vector<16x1xf32> to vector<16x16xf32>
    %242 = arith.divf %238, %241 : vector<16x16xf32>
    %c1_126 = arith.constant 1 : index
    %c0_127 = arith.constant 0 : index
    %c0_128 = arith.constant 0 : index
    %243 = vector.load %arg13[%c1_126, %c0_127, %c0_128] : memref<4x1x32xf32, #tpu.memory_space<vmem>>, vector<1x1x32xf32>
    %244 = vector.shape_cast %243 : vector<1x1x32xf32> to vector<1x32xf32>
    %245 = vector.broadcast %244 : vector<1x32xf32> to vector<16x32xf32>
    %246 = arith.mulf %205, %245 : vector<16x32xf32>
    %cst_129 = arith.constant dense<0.000000e+00> : vector<16x32xf32>
    %247 = tpu.matmul %242, %246, %cst_129 {dimension_numbers = #tpu.dot_dimension_numbers<[1], [0], [0], [1], [0, 0, 1, 1], [], []>} : vector<16x16xf32>, vector<16x32xf32>, vector<16x32xf32> -> vector<16x32xf32>
    %248 = arith.addf %227, %247 : vector<16x32xf32>
    %c2_130 = arith.constant 2 : index
    %c0_131 = arith.constant 0 : index
    %c0_132 = arith.constant 0 : index
    %249 = vector.load %arg12[%c2_130, %c0_131, %c0_132] : memref<4x1x32xf32, #tpu.memory_space<vmem>>, vector<1x1x32xf32>
    %250 = vector.shape_cast %249 : vector<1x1x32xf32> to vector<1x32xf32>
    %251 = vector.broadcast %250 : vector<1x32xf32> to vector<16x32xf32>
    %252 = arith.mulf %191, %251 : vector<16x32xf32>
    %cst_133 = arith.constant dense<0.000000e+00> : vector<16x16xf32>
    %253 = tpu.matmul %252, %202, %cst_133 {dimension_numbers = #tpu.dot_dimension_numbers<[1], [1], [0], [0], [0, 0, 1, 0], [], []>} : vector<16x32xf32>, vector<16x32xf32>, vector<16x16xf32> -> vector<16x16xf32>
    %254 = arith.addf %253, %3 : vector<16x16xf32>
    %cst_134 = arith.constant dense<0xFF800000> : vector<16xf32>
    %255 = vector.multi_reduction <maximumf>, %254, %cst_134 [1] : vector<16x16xf32> to vector<16xf32>
    %256 = vector.shape_cast %255 : vector<16xf32> to vector<16x1xf32>
    %257 = vector.broadcast %256 : vector<16x1xf32> to vector<16x16xf32>
    %258 = arith.subf %254, %257 : vector<16x16xf32>
    %259 = math.exp %258 : vector<16x16xf32>
    %cst_135 = arith.constant dense<0.000000e+00> : vector<16xf32>
    %260 = vector.multi_reduction <add>, %259, %cst_135 [1] : vector<16x16xf32> to vector<16xf32>
    %261 = vector.shape_cast %260 : vector<16xf32> to vector<16x1xf32>
    %262 = vector.broadcast %261 : vector<16x1xf32> to vector<16x16xf32>
    %263 = arith.divf %259, %262 : vector<16x16xf32>
    %c2_136 = arith.constant 2 : index
    %c0_137 = arith.constant 0 : index
    %c0_138 = arith.constant 0 : index
    %264 = vector.load %arg13[%c2_136, %c0_137, %c0_138] : memref<4x1x32xf32, #tpu.memory_space<vmem>>, vector<1x1x32xf32>
    %265 = vector.shape_cast %264 : vector<1x1x32xf32> to vector<1x32xf32>
    %266 = vector.broadcast %265 : vector<1x32xf32> to vector<16x32xf32>
    %267 = arith.mulf %205, %266 : vector<16x32xf32>
    %cst_139 = arith.constant dense<0.000000e+00> : vector<16x32xf32>
    %268 = tpu.matmul %263, %267, %cst_139 {dimension_numbers = #tpu.dot_dimension_numbers<[1], [0], [0], [1], [0, 0, 1, 1], [], []>} : vector<16x16xf32>, vector<16x32xf32>, vector<16x32xf32> -> vector<16x32xf32>
    %269 = arith.addf %248, %268 : vector<16x32xf32>
    %c3_140 = arith.constant 3 : index
    %c0_141 = arith.constant 0 : index
    %c0_142 = arith.constant 0 : index
    %270 = vector.load %arg12[%c3_140, %c0_141, %c0_142] : memref<4x1x32xf32, #tpu.memory_space<vmem>>, vector<1x1x32xf32>
    %271 = vector.shape_cast %270 : vector<1x1x32xf32> to vector<1x32xf32>
    %272 = vector.broadcast %271 : vector<1x32xf32> to vector<16x32xf32>
    %273 = arith.mulf %191, %272 : vector<16x32xf32>
    %cst_143 = arith.constant dense<0.000000e+00> : vector<16x16xf32>
    %274 = tpu.matmul %273, %202, %cst_143 {dimension_numbers = #tpu.dot_dimension_numbers<[1], [1], [0], [0], [0, 0, 1, 0], [], []>} : vector<16x32xf32>, vector<16x32xf32>, vector<16x16xf32> -> vector<16x16xf32>
    %275 = arith.addf %274, %3 : vector<16x16xf32>
    %cst_144 = arith.constant dense<0xFF800000> : vector<16xf32>
    %276 = vector.multi_reduction <maximumf>, %275, %cst_144 [1] : vector<16x16xf32> to vector<16xf32>
    %277 = vector.shape_cast %276 : vector<16xf32> to vector<16x1xf32>
    %278 = vector.broadcast %277 : vector<16x1xf32> to vector<16x16xf32>
    %279 = arith.subf %275, %278 : vector<16x16xf32>
    %280 = math.exp %279 : vector<16x16xf32>
    %cst_145 = arith.constant dense<0.000000e+00> : vector<16xf32>
    %281 = vector.multi_reduction <add>, %280, %cst_145 [1] : vector<16x16xf32> to vector<16xf32>
    %282 = vector.shape_cast %281 : vector<16xf32> to vector<16x1xf32>
    %283 = vector.broadcast %282 : vector<16x1xf32> to vector<16x16xf32>
    %284 = arith.divf %280, %283 : vector<16x16xf32>
    %c3_146 = arith.constant 3 : index
    %c0_147 = arith.constant 0 : index
    %c0_148 = arith.constant 0 : index
    %285 = vector.load %arg13[%c3_146, %c0_147, %c0_148] : memref<4x1x32xf32, #tpu.memory_space<vmem>>, vector<1x1x32xf32>
    %286 = vector.shape_cast %285 : vector<1x1x32xf32> to vector<1x32xf32>
    %287 = vector.broadcast %286 : vector<1x32xf32> to vector<16x32xf32>
    %288 = arith.mulf %205, %287 : vector<16x32xf32>
    %cst_149 = arith.constant dense<0.000000e+00> : vector<16x32xf32>
    %289 = tpu.matmul %284, %288, %cst_149 {dimension_numbers = #tpu.dot_dimension_numbers<[1], [0], [0], [1], [0, 0, 1, 1], [], []>} : vector<16x16xf32>, vector<16x32xf32>, vector<16x32xf32> -> vector<16x32xf32>
    %290 = arith.addf %269, %289 : vector<16x32xf32>
    %c1_150 = arith.constant 1 : index
    %c0_151 = arith.constant 0 : index
    %c0_152 = arith.constant 0 : index
    %291 = vector.load %arg5[%c1_150, %c0_151, %c0_152] : memref<2x32x32xf32, #tpu.memory_space<vmem>>, vector<1x32x32xf32>
    %292 = vector.shape_cast %291 : vector<1x32x32xf32> to vector<32x32xf32>
    %cst_153 = arith.constant dense<0.000000e+00> : vector<16x32xf32>
    %293 = tpu.matmul %290, %292, %cst_153 {dimension_numbers = #tpu.dot_dimension_numbers<[1], [0], [0], [1], [0, 0, 1, 1], [], []>} : vector<16x32xf32>, vector<32x32xf32>, vector<16x32xf32> -> vector<16x32xf32>
    %294 = arith.addf %164, %293 : vector<16x32xf32>
    %295 = arith.mulf %294, %294 : vector<16x32xf32>
    %cst_154 = arith.constant dense<0.000000e+00> : vector<16xf32>
    %296 = vector.multi_reduction <add>, %295, %cst_154 [1] : vector<16x32xf32> to vector<16xf32>
    %297 = vector.shape_cast %296 : vector<16xf32> to vector<16x1xf32>
    %cst_155 = arith.constant 3.200000e+01 : f32
    %298 = vector.broadcast %cst_155 : f32 to vector<16x1xf32>
    %299 = arith.divf %297, %298 : vector<16x1xf32>
    %cst_156 = arith.constant 9.99999997E-7 : f32
    %300 = vector.broadcast %cst_156 : f32 to vector<16x1xf32>
    %301 = arith.addf %299, %300 : vector<16x1xf32>
    %302 = math.rsqrt %301 : vector<16x1xf32>
    %303 = vector.broadcast %302 : vector<16x1xf32> to vector<16x32xf32>
    %304 = arith.mulf %294, %303 : vector<16x32xf32>
    %c1_157 = arith.constant 1 : index
    %c0_158 = arith.constant 0 : index
    %c0_159 = arith.constant 0 : index
    %305 = vector.load %arg6[%c1_157, %c0_158, %c0_159] : memref<2x1x32xf32, #tpu.memory_space<vmem>>, vector<1x1x32xf32>
    %306 = vector.shape_cast %305 : vector<1x1x32xf32> to vector<1x32xf32>
    %307 = vector.broadcast %306 : vector<1x32xf32> to vector<16x32xf32>
    %308 = arith.mulf %304, %307 : vector<16x32xf32>
    %c1_160 = arith.constant 1 : index
    %c0_161 = arith.constant 0 : index
    %c0_162 = arith.constant 0 : index
    %309 = vector.load %arg7[%c1_160, %c0_161, %c0_162] : memref<2x32x64xf32, #tpu.memory_space<vmem>>, vector<1x32x64xf32>
    %310 = vector.shape_cast %309 : vector<1x32x64xf32> to vector<32x64xf32>
    %cst_163 = arith.constant dense<0.000000e+00> : vector<16x64xf32>
    %311 = tpu.matmul %308, %310, %cst_163 {dimension_numbers = #tpu.dot_dimension_numbers<[1], [0], [0], [1], [0, 0, 1, 1], [], []>} : vector<16x32xf32>, vector<32x64xf32>, vector<16x64xf32> -> vector<16x64xf32>
    %c1_164 = arith.constant 1 : index
    %c0_165 = arith.constant 0 : index
    %c0_166 = arith.constant 0 : index
    %312 = vector.load %arg8[%c1_164, %c0_165, %c0_166] : memref<2x32x64xf32, #tpu.memory_space<vmem>>, vector<1x32x64xf32>
    %313 = vector.shape_cast %312 : vector<1x32x64xf32> to vector<32x64xf32>
    %cst_167 = arith.constant dense<0.000000e+00> : vector<16x64xf32>
    %314 = tpu.matmul %308, %313, %cst_167 {dimension_numbers = #tpu.dot_dimension_numbers<[1], [0], [0], [1], [0, 0, 1, 1], [], []>} : vector<16x32xf32>, vector<32x64xf32>, vector<16x64xf32> -> vector<16x64xf32>
    %315 = arith.negf %311 : vector<16x64xf32>
    %316 = math.exp %315 : vector<16x64xf32>
    %cst_168 = arith.constant 1.000000e+00 : f32
    %317 = vector.broadcast %cst_168 : f32 to vector<16x64xf32>
    %318 = arith.addf %317, %316 : vector<16x64xf32>
    %319 = arith.divf %317, %318 : vector<16x64xf32>
    %320 = arith.mulf %311, %319 : vector<16x64xf32>
    %321 = arith.mulf %320, %314 : vector<16x64xf32>
    %c1_169 = arith.constant 1 : index
    %c0_170 = arith.constant 0 : index
    %c0_171 = arith.constant 0 : index
    %322 = vector.load %arg9[%c1_169, %c0_170, %c0_171] : memref<2x64x32xf32, #tpu.memory_space<vmem>>, vector<1x64x32xf32>
    %323 = vector.shape_cast %322 : vector<1x64x32xf32> to vector<64x32xf32>
    %cst_172 = arith.constant dense<0.000000e+00> : vector<16x32xf32>
    %324 = tpu.matmul %321, %323, %cst_172 {dimension_numbers = #tpu.dot_dimension_numbers<[1], [0], [0], [1], [0, 0, 1, 1], [], []>} : vector<16x64xf32>, vector<64x32xf32>, vector<16x32xf32> -> vector<16x32xf32>
    %325 = arith.addf %294, %324 : vector<16x32xf32>
    %c0_173 = arith.constant 0 : index
    %c0_174 = arith.constant 0 : index
    %326 = vector.load %arg15[%c0_173, %c0_174] : memref<16x32xf32, #tpu.memory_space<vmem>>, vector<16x32xf32>
    tpu.vector_store %arg15[%c0_173, %c0_174], %325 {strides = array<i32>} : memref<16x32xf32, #tpu.memory_space<vmem>>, vector<16x32xf32>,
    return
  }
}

</mosaic_0001>

<llo_original>
// kernel: llama_layers_forward.1
$region0: #{llama_layers_forward.1}
  #allocation0 [shape = 'u32[]', space=smem, size = 0x4, offset = 0x4, fixed_abs, tag = 'smem constant byte address 0x4 - core index']
  #allocation1 [shape = 'u32[144,128]{1,0:T(1,128)}', space=vmem, size = 0x12000, scoped, tag = 'internal scratch']
  %s0 = inlined_call_operand.hbm [shape: f32[16,32], index: 0, kind: input, shape index: {}]
  %s1 = inlined_call_operand.hbm [shape: f32[2,1,32], index: 1, kind: input, shape index: {}]
  %s2 = inlined_call_operand.vmem [shape: f32[2,32,32], index: 2, kind: input, shape index: {}]
  %s3 = inlined_call_operand.vmem [shape: f32[2,32,32], index: 3, kind: input, shape index: {}]
  %s4 = inlined_call_operand.vmem [shape: f32[2,32,32], index: 4, kind: input, shape index: {}]
  %s5 = inlined_call_operand.hbm [shape: f32[2,32,32], index: 5, kind: input, shape index: {}]
  %s6 = inlined_call_operand.hbm [shape: f32[2,1,32], index: 6, kind: input, shape index: {}]
  %s7 = inlined_call_operand.hbm [shape: f32[2,32,64], index: 7, kind: input, shape index: {}]
  %s8 = inlined_call_operand.hbm [shape: f32[2,32,64], index: 8, kind: input, shape index: {}]
  %s9 = inlined_call_operand.vmem [shape: f32[2,64,32], index: 9, kind: input, shape index: {}]
  %s10 = inlined_call_operand.vmem [shape: f32[16,32], index: 10, kind: input, shape index: {}]
  %s11 = inlined_call_operand.vmem [shape: f32[16,32], index: 11, kind: input, shape index: {}]
  %s12 = inlined_call_operand.hbm [shape: f32[4,1,32], index: 12, kind: input, shape index: {}]
  %s13 = inlined_call_operand.vmem [shape: f32[4,1,32], index: 13, kind: input, shape index: {}]
  %s14 = inlined_call_operand.vmem [shape: f32[16,16], index: 14, kind: input, shape index: {}]
  %s15 = inlined_call_operand.hbm [shape: f32[16,32], index: 15, kind: output, shape index: {}]
  %s16 = sld [smem:[#allocation0]]
  $region98: #{llama_layers_forward.1} parent=0
    _
  %s18 = ssub.s32 1, %s16
  %s19 = scalar_select 0, %s18, %s16
  $region1: #{llama_layers_forward.1} parent=0
    #allocation2 [shape = 'u8[8192]{0}', space=vmem, size = 0x2000, scoped, tag = 'input window, operand 0, single buffered']
    #allocation3 [shape = 's32[1]{0}', space=sflag, size = 0x4, scoped, tag = 'scoped memory for llama_layers_forward.1']
    #allocation4 [shape = 's32[1]{0}', space=sflag, size = 0x4, scoped, tag = 'scoped memory for llama_layers_forward.1']
    #allocation5 [shape = 'u8[1024]{0}', space=vmem, size = 0x400, scoped, tag = 'input window, operand 1, single buffered']
    #allocation6 [shape = 's32[1]{0}', space=sflag, size = 0x4, scoped, tag = 'scoped memory for llama_layers_forward.1']
    #allocation7 [shape = 'u8[32768]{0}', space=vmem, size = 0x8000, scoped, tag = 'input window, operand 5, single buffered']
    #allocation8 [shape = 'u8[1024]{0}', space=vmem, size = 0x400, scoped, tag = 'input window, operand 6, single buffered']
    #allocation9 [shape = 's32[1]{0}', space=sflag, size = 0x4, scoped, tag = 'scoped memory for llama_layers_forward.1']
    #allocation10 [shape = 'u8[32768]{0}', space=vmem, size = 0x8000, scoped, tag = 'input window, operand 7, single buffered']
    #allocation11 [shape = 'u8[32768]{0}', space=vmem, size = 0x8000, scoped, tag = 'input window, operand 8, single buffered']
    #allocation12 [shape = 's32[1]{0}', space=sflag, size = 0x4, scoped, tag = 'scoped memory for llama_layers_forward.1']
    #allocation13 [shape = 'u8[2048]{0}', space=vmem, size = 0x800, scoped, tag = 'input window, operand 12, single buffered']
    #allocation14 [shape = 'u8[8192]{0}', space=vmem, size = 0x2000, scoped, tag = 'output window, operand 0, single buffered']
    %20 = vsyncpa [#allocation3], 0
    %21 = vsyncpa [#allocation6], 0
    %22 = vsyncpa [#allocation9], 0
    %23 = vsyncpa [#allocation12], 0
    %24 = vsyncpa [#allocation4], 0
    // Predicated region
    $region2: #{llama_layers_forward.1} parent=1 // pred_check
      _
    $region3: #{llama_layers_forward.1} parent=1 // pred_check_branch
      %26 = sbr.rel (0) target = $region5
    $region4: #{llama_layers_forward.1} parent=1 // pred_region
      %s28 = ssub.s32 256, 256
      %29 = vsyncadd [#allocation3], %s28
      %s30 = sshll.u32 [#allocation2], 4
      %s31 = int_to_ptr.vmem [resolvable:$true] %s30
      %36 = dma.hbm_to_vmem [thread:$0]  %s0, 256, %s31, [#allocation3], 128, 128, 8
    $region5: #{llama_layers_forward.1} parent=1 // pred_fallthru
      _
    // Predicated region
    $region6: #{llama_layers_forward.1} parent=1 // pred_check
      _
    $region7: #{llama_layers_forward.1} parent=1 // pred_check_branch
      %38 = sbr.rel (0) target = $region9
    $region8: #{llama_layers_forward.1} parent=1 // pred_region
      %s40 = ssub.s32 32, 32
      %41 = vsyncadd [#allocation6], %s40
      %s42 = sshll.u32 [#allocation5], 4
      %s43 = int_to_ptr.vmem [resolvable:$true] %s42
      %48 = dma.hbm_to_vmem [thread:$0]  %s1, 32, %s43, [#allocation6], 16, 16, 1
    $region9: #{llama_layers_forward.1} parent=1 // pred_fallthru
      _
    // Predicated region
    $region10: #{llama_layers_forward.1} parent=1 // pred_check
      _
    $region11: #{llama_layers_forward.1} parent=1 // pred_check_branch
      %50 = sbr.rel (0) target = $region13
    $region12: #{llama_layers_forward.1} parent=1 // pred_region
      _
    $region13: #{llama_layers_forward.1} parent=1 // pred_fallthru
      _
    // Predicated region
    $region14: #{llama_layers_forward.1} parent=1 // pred_check
      _
    $region15: #{llama_layers_forward.1} parent=1 // pred_check_branch
      %52 = sbr.rel (0) target = $region17
    $region16: #{llama_layers_forward.1} parent=1 // pred_region
      _
    $region17: #{llama_layers_forward.1} parent=1 // pred_fallthru
      _
    // Predicated region
    $region18: #{llama_layers_forward.1} parent=1 // pred_check
      _
    $region19: #{llama_layers_forward.1} parent=1 // pred_check_branch
      %54 = sbr.rel (0) target = $region21
    $region20: #{llama_layers_forward.1} parent=1 // pred_region
      _
    $region21: #{llama_layers_forward.1} parent=1 // pred_fallthru
      _
    // Predicated region
    $region22: #{llama_layers_forward.1} parent=1 // pred_check
      _
    $region23: #{llama_layers_forward.1} parent=1 // pred_check_branch
      %56 = sbr.rel (0) target = $region25
    $region24: #{llama_layers_forward.1} parent=1 // pred_region
      %s58 = ssub.s32 1024, 1024
      %59 = vsyncadd [#allocation6], %s58
      %s60 = sshll.u32 [#allocation7], 4
      %s61 = int_to_ptr.vmem [resolvable:$true] %s60
      %66 = dma.hbm_to_vmem [thread:$0]  %s5, 1024, %s61, [#allocation6], 128, 128, 8
    $region25: #{llama_layers_forward.1} parent=1 // pred_fallthru
      _
    // Predicated region
    $region26: #{llama_layers_forward.1} parent=1 // pred_check
      _
    $region27: #{llama_layers_forward.1} parent=1 // pred_check_branch
      %68 = sbr.rel (0) target = $region29
    $region28: #{llama_layers_forward.1} parent=1 // pred_region
      %s70 = ssub.s32 32, 32
      %71 = vsyncadd [#allocation9], %s70
      %s72 = sshll.u32 [#allocation8], 4
      %s73 = int_to_ptr.vmem [resolvable:$true] %s72
      %78 = dma.hbm_to_vmem [thread:$0]  %s6, 32, %s73, [#allocation9], 16, 16, 1
    $region29: #{llama_layers_forward.1} parent=1 // pred_fallthru
      _
    // Predicated region
    $region30: #{llama_layers_forward.1} parent=1 // pred_check
      _
    $region31: #{llama_layers_forward.1} parent=1 // pred_check_branch
      %80 = sbr.rel (0) target = $region33
    $region32: #{llama_layers_forward.1} parent=1 // pred_region
      %s82 = ssub.s32 1024, 1024
      %83 = vsyncadd [#allocation9], %s82
      %s84 = sshll.u32 [#allocation10], 4
      %s85 = int_to_ptr.vmem [resolvable:$true] %s84
      %90 = dma.hbm_to_vmem [thread:$0]  %s7, 1024, %s85, [#allocation9], 128, 128, 8
    $region33: #{llama_layers_forward.1} parent=1 // pred_fallthru
      _
    // Predicated region
    $region34: #{llama_layers_forward.1} parent=1 // pred_check
      _
    $region35: #{llama_layers_forward.1} parent=1 // pred_check_branch
      %92 = sbr.rel (0) target = $region37
    $region36: #{llama_layers_forward.1} parent=1 // pred_region
      %s94 = ssub.s32 1024, 1024
      %95 = vsyncadd [#allocation12], %s94
      %s96 = sshll.u32 [#allocation11], 4
      %s97 = int_to_ptr.vmem [resolvable:$true] %s96
      %102 = dma.hbm_to_vmem [thread:$0]  %s8, 1024, %s97, [#allocation12], 128, 128, 8
    $region37: #{llama_layers_forward.1} parent=1 // pred_fallthru
      _
    // Predicated region
    $region38: #{llama_layers_forward.1} parent=1 // pred_check
      _
    $region39: #{llama_layers_forward.1} parent=1 // pred_check_branch
      %104 = sbr.rel (0) target = $region41
    $region40: #{llama_layers_forward.1} parent=1 // pred_region
      _
    $region41: #{llama_layers_forward.1} parent=1 // pred_fallthru
      _
    // Predicated region
    $region42: #{llama_layers_forward.1} parent=1 // pred_check
      _
    $region43: #{llama_layers_forward.1} parent=1 // pred_check_branch
      %106 = sbr.rel (0) target = $region45
    $region44: #{llama_layers_forward.1} parent=1 // pred_region
      _
    $region45: #{llama_layers_forward.1} parent=1 // pred_fallthru
      _
    // Predicated region
    $region46: #{llama_layers_forward.1} parent=1 // pred_check
      _
    $region47: #{llama_layers_forward.1} parent=1 // pred_check_branch
      %108 = sbr.rel (0) target = $region49
    $region48: #{llama_layers_forward.1} parent=1 // pred_region
      _
    $region49: #{llama_layers_forward.1} parent=1 // pred_fallthru
      _
    // Predicated region
    $region50: #{llama_layers_forward.1} parent=1 // pred_check
      _
    $region51: #{llama_layers_forward.1} parent=1 // pred_check_branch
      %110 = sbr.rel (0) target = $region53
    $region52: #{llama_layers_forward.1} parent=1 // pred_region
      %s112 = ssub.s32 64, 64
      %113 = vsyncadd [#allocation12], %s112
      %s114 = sshll.u32 [#allocation13], 4
      %s115 = int_to_ptr.vmem [resolvable:$true] %s114
      %120 = dma.hbm_to_vmem [thread:$0]  %s12, 64, %s115, [#allocation12], 16, 16, 1
    $region53: #{llama_layers_forward.1} parent=1 // pred_fallthru
      _
    // Predicated region
    $region54: #{llama_layers_forward.1} parent=1 // pred_check
      _
    $region55: #{llama_layers_forward.1} parent=1 // pred_check_branch
      %122 = sbr.rel (0) target = $region57
    $region56: #{llama_layers_forward.1} parent=1 // pred_region
      _
    $region57: #{llama_layers_forward.1} parent=1 // pred_fallthru
      _
    // Predicated region
    $region58: #{llama_layers_forward.1} parent=1 // pred_check
      _
    $region59: #{llama_layers_forward.1} parent=1 // pred_check_branch
      %124 = sbr.rel (0) target = $region61
    $region60: #{llama_layers_forward.1} parent=1 // pred_region
      _
    $region61: #{llama_layers_forward.1} parent=1 // pred_fallthru
      _
    // Predicated region
    $region62: #{llama_layers_forward.1} parent=1 // pred_check
      _
    $region63: #{llama_layers_forward.1} parent=1 // pred_check_branch
      %126 = sbr.rel (0) target = $region65
    $region64: #{llama_layers_forward.1} parent=1 // pred_region
      %127 = dma.done [#allocation3], 256
    $region65: #{llama_layers_forward.1} parent=1 // pred_fallthru
      _
    // Predicated region
    $region66: #{llama_layers_forward.1} parent=1 // pred_check
      _
    $region67: #{llama_layers_forward.1} parent=1 // pred_check_branch
      %129 = sbr.rel (0) target = $region69
    $region68: #{llama_layers_forward.1} parent=1 // pred_region
      %130 = dma.done [#allocation6], 32
    $region69: #{llama_layers_forward.1} parent=1 // pred_fallthru
      _
    // Predicated region
    $region70: #{llama_layers_forward.1} parent=1 // pred_check
      _
    $region71: #{llama_layers_forward.1} parent=1 // pred_check_branch
      %132 = sbr.rel (0) target = $region73
    $region72: #{llama_layers_forward.1} parent=1 // pred_region
      %133 = dma.done [#allocation6], 1024
    $region73: #{llama_layers_forward.1} parent=1 // pred_fallthru
      _
    // Predicated region
    $region74: #{llama_layers_forward.1} parent=1 // pred_check
      _
    $region75: #{llama_layers_forward.1} parent=1 // pred_check_branch
      %135 = sbr.rel (0) target = $region77
    $region76: #{llama_layers_forward.1} parent=1 // pred_region
      %136 = dma.done [#allocation9], 32
    $region77: #{llama_layers_forward.1} parent=1 // pred_fallthru
      _
    // Predicated region
    $region78: #{llama_layers_forward.1} parent=1 // pred_check
      _
    $region79: #{llama_layers_forward.1} parent=1 // pred_check_branch
      %138 = sbr.rel (0) target = $region81
    $region80: #{llama_layers_forward.1} parent=1 // pred_region
      %139 = dma.done [#allocation9], 1024
    $region81: #{llama_layers_forward.1} parent=1 // pred_fallthru
      _
    // Predicated region
    $region82: #{llama_layers_forward.1} parent=1 // pred_check
      _
    $region83: #{llama_layers_forward.1} parent=1 // pred_check_branch
      %141 = sbr.rel (0) target = $region85
    $region84: #{llama_layers_forward.1} parent=1 // pred_region
      %142 = dma.done [#allocation12], 1024
    $region85: #{llama_layers_forward.1} parent=1 // pred_fallthru
      _
    // Predicated region
    $region86: #{llama_layers_forward.1} parent=1 // pred_check
      _
    $region87: #{llama_layers_forward.1} parent=1 // pred_check_branch
      %144 = sbr.rel (0) target = $region89
    $region88: #{llama_layers_forward.1} parent=1 // pred_region
      %145 = dma.done [#allocation12], 64
    $region89: #{llama_layers_forward.1} parent=1 // pred_fallthru
      _
    %v146 = vld [vmem:[#allocation2] sm:$0xff]
    %v147 = vld [vmem:[#allocation2 + $0x8] sm:$0xff]
    %v148 = vld [vmem:[%s10] sm:$0xff]
    %v149 = vld [vmem:[%s10 + $0x8] sm:$0xff]
    %v150 = vld [vmem:[%s11] sm:$0xff]
    %v151 = vld [vmem:[%s11 + $0x8] sm:$0xff]
    %v152 = vld [vmem:[%s14] sm:$0xff]
    %v153 = vld [vmem:[%s14 + $0x8] sm:$0xff]
    %v154 = vmul.f32 %v146, %v146
    %v155 = vmul.f32 %v147, %v147
    %vm156 = vcmask 261120
    %v157 = vsel %vm156, %v154, 0.0
    %158 = vadd.xlane.f32.xlu0 %v157
    %v159 = vpop.xlane.xlu0 %158
    %v160 = vsel %vm156, %v155, 0.0
    %161 = vadd.xlane.f32.xlu0 %v160
    %v162 = vpop.xlane.xlu0 %161
    %v163 = vrcp.pop 32.0
    %v164 = vmul.f32 %v159, %v163
    %v165 = vmul.f32 %v162, %v163
    %v166 = vadd.f32 %v164, 1e-06
    %v167 = vadd.f32 %v165, 1e-06
    %v168 = vrsqrt.pop %v166
    %v169 = vrsqrt.pop %v167
    %v170 = vmul.f32 %v146, %v168
    %v171 = vmul.f32 %v147, %v169
    %v172 = vld [vmem:[#allocation5] sm:$0x1]
    %v174 = vlaneseq
    %v175 = vshrl.u32 %v174, 7
    %v176 = vsub.s32 0, %v175
    %v177 = vrot.slane %v172, %v176
    %v179 = vmul.f32 %v170, %v177
    %v180 = vmul.f32 %v171, %v177
    %v181 = vld [vmem:[%s2] sm:$0xff]
    %v182 = vld [vmem:[%s2 + $0x8] sm:$0xff]
    %v183 = vld [vmem:[%s2 + $0x10] sm:$0xff]
    %v184 = vld [vmem:[%s2 + $0x18] sm:$0xff]
    %v186 = vsel %vm156, %v179, 0
    %v189 = vsel %vm156, %v180, 0
    %191 = vmatprep.subr.mxu0 0.0
    %192 = vmatpush1.msra.mxu0 %v181
    %193 = vmatprep.subr.mxu0 0.0
    %194 = vmatpush1.msra.mxu0 %v182
    %195 = vmatprep.subr.mxu0 0.0
    %196 = vmatpush1.msra.mxu0 %v183
    %197 = vmatprep.subr.mxu0 0.0
    %198 = vmatpush1.msra.mxu0 %v184
    %199 = vmatprep.subr.mxu0 0.0
    %200 = vmatpush1.msra.mxu0 0.0
    %201 = vmatprep.subr.mxu0 0.0
    %202 = vmatpush1.msra.mxu0 0.0
    %203 = vmatprep.subr.mxu0 0.0
    %204 = vmatpush1.msra.mxu0 0.0
    %205 = vmatprep.subr.mxu0 0.0
    %206 = vmatpush1.msra.mxu0 0.0
    %207 = vmatprep.subr.mxu0 0.0
    %208 = vmatpush1.msra.mxu0 0.0
    %209 = vmatprep.subr.mxu0 0.0
    %210 = vmatpush1.msra.mxu0 0.0
    %211 = vmatprep.subr.mxu0 0.0
    %212 = vmatpush1.msra.mxu0 0.0
    %213 = vmatprep.subr.mxu0 0.0
    %214 = vmatpush1.msra.mxu0 0.0
    %215 = vmatprep.subr.mxu0 0.0
    %216 = vmatpush1.msra.mxu0 0.0
    %217 = vmatprep.subr.mxu0 0.0
    %218 = vmatpush1.msra.mxu0 0.0
    %219 = vmatprep.subr.mxu0 0.0
    %220 = vmatpush1.msra.mxu0 0.0
    %221 = vmatprep.subr.mxu0 0.0
    %222 = vmatpush1.msra.mxu0 0.0
    %223 = vmatprep.subr.mxu0 0.0
    %224 = vmatpush1.msra.mxu0 0.0
    %225 = vmatprep.subr.mxu0 0.0
    %226 = vmatpush1.msra.mxu0 0.0
    %227 = vmatprep.subr.mxu0 0.0
    %228 = vmatpush1.msra.mxu0 0.0
    %229 = vmatprep.subr.mxu0 0.0
    %230 = vmatpush1.msra.mxu0 0.0
    %231 = vmatprep.subr.mxu0 0.0
    %232 = vmatpush1.msra.mxu0 0.0
    %233 = vmatprep.subr.mxu0 0.0
    %234 = vmatpush1.msra.mxu0 0.0
    %235 = vmatprep.subr.mxu0 0.0
    %236 = vmatpush1.msra.mxu0 0.0
    %237 = vmatprep.subr.mxu0 0.0
    %238 = vmatpush1.msra.mxu0 0.0
    %239 = vmatprep.subr.mxu0 0.0
    %240 = vmatpush1.msra.mxu0 0.0
    %241 = vmatprep.subr.mxu0 0.0
    %242 = vmatpush1.msra.mxu0 0.0
    %243 = vmatprep.subr.mxu0 0.0
    %244 = vmatpush1.msra.mxu0 0.0
    %245 = vmatprep.subr.mxu0 0.0
    %246 = vmatpush1.msra.mxu0 0.0
    %247 = vmatprep.subr.mxu0 0.0
    %248 = vmatpush1.msra.mxu0 0.0
    %249 = vmatprep.subr.mxu0 0.0
    %250 = vmatpush1.msra.mxu0 0.0
    %251 = vmatprep.subr.mxu0 0.0
    %252 = vmatpush1.msra.mxu0 0.0
    %253 = vmatprep.subr.mxu0 0.0
    %254 = vmatpush1.msra.mxu0 0.0
    %255 = vmatprep.mubr.f32.mxu0 0.0
    %256 = vmatmul.mubr.f32.gmra.mrb[0].mxu0 %v186
    %v257 = vpop.f32.mrb[0].mxu0
    %v258 = vadd.f32 0.0, %v257
    %v259 = vpop.f32.mrb[0].mxu0
    %260 = vmatprep.mubr.f32.mxu0 0.0
    %261 = vmatmul.mubr.f32.gmra.mrb[0].mxu0 %v189
    %v262 = vpop.f32.mrb[0].mxu0
    %v263 = vadd.f32 0.0, %v262
    %v264 = vpop.f32.mrb[0].mxu0
    %265 = vdwg.mxu0
    %v266 = vsub.f32 0.0, %v258
    %v267 = vsub.f32 0.0, %v263
    %270 = vrot.lane.b32.xlu0 %v266, 112
    %v271 = vpop.permute.xlu0 %270
    %272 = vrot.lane.b32.xlu0 %v267, 112
    %v273 = vpop.permute.xlu0 %272
    %278 = vrot.lane.b32.xlu0 %v258, 16
    %v279 = vpop.permute.xlu0 %278
    %280 = vrot.lane.b32.xlu0 %v263, 16
    %v281 = vpop.permute.xlu0 %280
    %vm284 = vcmask 130048
    %v285 = vsel %vm284, %v271, %v279
    %v286 = vsel %vm284, %v273, %v281
    %v287 = vmul.f32 %v258, %v148
    %v288 = vmul.f32 %v263, %v149
    %v289 = vmul.f32 %v285, %v150
    %v290 = vmul.f32 %v286, %v151
    %v291 = vadd.f32 %v287, %v289
    %v292 = vadd.f32 %v288, %v290
    %v293 = vmul.f32 %v291, 0.35355338
    %v294 = vmul.f32 %v292, 0.35355338
    %v295 = vld [vmem:[%s3] sm:$0xff]
    %v296 = vld [vmem:[%s3 + $0x8] sm:$0xff]
    %v297 = vld [vmem:[%s3 + $0x10] sm:$0xff]
    %v298 = vld [vmem:[%s3 + $0x18] sm:$0xff]
    %299 = vmatprep.subr.mxu0 0.0
    %300 = vmatpush1.msra.mxu0 %v295
    %301 = vmatprep.subr.mxu0 0.0
    %302 = vmatpush1.msra.mxu0 %v296
    %303 = vmatprep.subr.mxu0 0.0
    %304 = vmatpush1.msra.mxu0 %v297
    %305 = vmatprep.subr.mxu0 0.0
    %306 = vmatpush1.msra.mxu0 %v298
    %307 = vmatprep.subr.mxu0 0.0
    %308 = vmatpush1.msra.mxu0 0.0
    %309 = vmatprep.subr.mxu0 0.0
    %310 = vmatpush1.msra.mxu0 0.0
    %311 = vmatprep.subr.mxu0 0.0
    %312 = vmatpush1.msra.mxu0 0.0
    %313 = vmatprep.subr.mxu0 0.0
    %314 = vmatpush1.msra.mxu0 0.0
    %315 = vmatprep.subr.mxu0 0.0
    %316 = vmatpush1.msra.mxu0 0.0
    %317 = vmatprep.subr.mxu0 0.0
    %318 = vmatpush1.msra.mxu0 0.0
    %319 = vmatprep.subr.mxu0 0.0
    %320 = vmatpush1.msra.mxu0 0.0
    %321 = vmatprep.subr.mxu0 0.0
    %322 = vmatpush1.msra.mxu0 0.0
    %323 = vmatprep.subr.mxu0 0.0
    %324 = vmatpush1.msra.mxu0 0.0
    %325 = vmatprep.subr.mxu0 0.0
    %326 = vmatpush1.msra.mxu0 0.0
    %327 = vmatprep.subr.mxu0 0.0
    %328 = vmatpush1.msra.mxu0 0.0
    %329 = vmatprep.subr.mxu0 0.0
    %330 = vmatpush1.msra.mxu0 0.0
    %331 = vmatprep.subr.mxu0 0.0
    %332 = vmatpush1.msra.mxu0 0.0
    %333 = vmatprep.subr.mxu0 0.0
    %334 = vmatpush1.msra.mxu0 0.0
    %335 = vmatprep.subr.mxu0 0.0
    %336 = vmatpush1.msra.mxu0 0.0
    %337 = vmatprep.subr.mxu0 0.0
    %338 = vmatpush1.msra.mxu0 0.0
    %339 = vmatprep.subr.mxu0 0.0
    %340 = vmatpush1.msra.mxu0 0.0
    %341 = vmatprep.subr.mxu0 0.0
    %342 = vmatpush1.msra.mxu0 0.0
    %343 = vmatprep.subr.mxu0 0.0
    %344 = vmatpush1.msra.mxu0 0.0
    %345 = vmatprep.subr.mxu0 0.0
    %346 = vmatpush1.msra.mxu0 0.0
    %347 = vmatprep.subr.mxu0 0.0
    %348 = vmatpush1.msra.mxu0 0.0
    %349 = vmatprep.subr.mxu0 0.0
    %350 = vmatpush1.msra.mxu0 0.0
    %351 = vmatprep.subr.mxu0 0.0
    %352 = vmatpush1.msra.mxu0 0.0
    %353 = vmatprep.subr.mxu0 0.0
    %354 = vmatpush1.msra.mxu0 0.0
    %355 = vmatprep.subr.mxu0 0.0
    %356 = vmatpush1.msra.mxu0 0.0
    %357 = vmatprep.subr.mxu0 0.0
    %358 = vmatpush1.msra.mxu0 0.0
    %359 = vmatprep.subr.mxu0 0.0
    %360 = vmatpush1.msra.mxu0 0.0
    %361 = vmatprep.subr.mxu0 0.0
    %362 = vmatpush1.msra.mxu0 0.0
    %363 = vmatprep.mubr.f32.mxu0 0.0
    %364 = vmatmul.mubr.f32.gmra.mrb[0].mxu0 %v186
    %v365 = vpop.f32.mrb[0].mxu0
    %v366 = vadd.f32 0.0, %v365
    %v367 = vpop.f32.mrb[0].mxu0
    %368 = vmatprep.mubr.f32.mxu0 0.0
    %369 = vmatmul.mubr.f32.gmra.mrb[0].mxu0 %v189
    %v370 = vpop.f32.mrb[0].mxu0
    %v371 = vadd.f32 0.0, %v370
    %v372 = vpop.f32.mrb[0].mxu0
    %373 = vdwg.mxu0
    %v374 = vsub.f32 0.0, %v366
    %v375 = vsub.f32 0.0, %v371
    %378 = vrot.lane.b32.xlu0 %v374, 112
    %v379 = vpop.permute.xlu0 %378
    %380 = vrot.lane.b32.xlu0 %v375, 112
    %v381 = vpop.permute.xlu0 %380
    %386 = vrot.lane.b32.xlu0 %v366, 16
    %v387 = vpop.permute.xlu0 %386
    %388 = vrot.lane.b32.xlu0 %v371, 16
    %v389 = vpop.permute.xlu0 %388
    %v392 = vsel %vm284, %v379, %v387
    %v393 = vsel %vm284, %v381, %v389
    %v394 = vmul.f32 %v366, %v148
    %v395 = vmul.f32 %v371, %v149
    %v396 = vmul.f32 %v392, %v150
    %v397 = vmul.f32 %v393, %v151
    %v398 = vadd.f32 %v394, %v396
    %v399 = vadd.f32 %v395, %v397
    %v400 = vld [vmem:[%s4] sm:$0xff]
    %v401 = vld [vmem:[%s4 + $0x8] sm:$0xff]
    %v402 = vld [vmem:[%s4 + $0x10] sm:$0xff]
    %v403 = vld [vmem:[%s4 + $0x18] sm:$0xff]
    %404 = vmatprep.subr.mxu0 0.0
    %405 = vmatpush1.msra.mxu0 %v400
    %406 = vmatprep.subr.mxu0 0.0
    %407 = vmatpush1.msra.mxu0 %v401
    %408 = vmatprep.subr.mxu0 0.0
    %409 = vmatpush1.msra.mxu0 %v402
    %410 = vmatprep.subr.mxu0 0.0
    %411 = vmatpush1.msra.mxu0 %v403
    %412 = vmatprep.subr.mxu0 0.0
    %413 = vmatpush1.msra.mxu0 0.0
    %414 = vmatprep.subr.mxu0 0.0
    %415 = vmatpush1.msra.mxu0 0.0
    %416 = vmatprep.subr.mxu0 0.0
    %417 = vmatpush1.msra.mxu0 0.0
    %418 = vmatprep.subr.mxu0 0.0
    %419 = vmatpush1.msra.mxu0 0.0
    %420 = vmatprep.subr.mxu0 0.0
    %421 = vmatpush1.msra.mxu0 0.0
    %422 = vmatprep.subr.mxu0 0.0
    %423 = vmatpush1.msra.mxu0 0.0
    %424 = vmatprep.subr.mxu0 0.0
    %425 = vmatpush1.msra.mxu0 0.0
    %426 = vmatprep.subr.mxu0 0.0
    %427 = vmatpush1.msra.mxu0 0.0
    %428 = vmatprep.subr.mxu0 0.0
    %429 = vmatpush1.msra.mxu0 0.0
    %430 = vmatprep.subr.mxu0 0.0
    %431 = vmatpush1.msra.mxu0 0.0
    %432 = vmatprep.subr.mxu0 0.0
    %433 = vmatpush1.msra.mxu0 0.0
    %434 = vmatprep.subr.mxu0 0.0
    %435 = vmatpush1.msra.mxu0 0.0
    %436 = vmatprep.subr.mxu0 0.0
    %437 = vmatpush1.msra.mxu0 0.0
    %438 = vmatprep.subr.mxu0 0.0
    %439 = vmatpush1.msra.mxu0 0.0
    %440 = vmatprep.subr.mxu0 0.0
    %441 = vmatpush1.msra.mxu0 0.0
    %442 = vmatprep.subr.mxu0 0.0
    %443 = vmatpush1.msra.mxu0 0.0
    %444 = vmatprep.subr.mxu0 0.0
    %445 = vmatpush1.msra.mxu0 0.0
    %446 = vmatprep.subr.mxu0 0.0
    %447 = vmatpush1.msra.mxu0 0.0
    %448 = vmatprep.subr.mxu0 0.0
    %449 = vmatpush1.msra.mxu0 0.0
    %450 = vmatprep.subr.mxu0 0.0
    %451 = vmatpush1.msra.mxu0 0.0
    %452 = vmatprep.subr.mxu0 0.0
    %453 = vmatpush1.msra.mxu0 0.0
    %454 = vmatprep.subr.mxu0 0.0
    %455 = vmatpush1.msra.mxu0 0.0
    %456 = vmatprep.subr.mxu0 0.0
    %457 = vmatpush1.msra.mxu0 0.0
    %458 = vmatprep.subr.mxu0 0.0
    %459 = vmatpush1.msra.mxu0 0.0
    %460 = vmatprep.subr.mxu0 0.0
    %461 = vmatpush1.msra.mxu0 0.0
    %462 = vmatprep.subr.mxu0 0.0
    %463 = vmatpush1.msra.mxu0 0.0
    %464 = vmatprep.subr.mxu0 0.0
    %465 = vmatpush1.msra.mxu0 0.0
    %466 = vmatprep.subr.mxu0 0.0
    %467 = vmatpush1.msra.mxu0 0.0
    %468 = vmatprep.mubr.f32.mxu0 0.0
    %469 = vmatmul.mubr.f32.gmra.mrb[0].mxu0 %v186
    %v470 = vpop.f32.mrb[0].mxu0
    %v471 = vadd.f32 0.0, %v470
    %v472 = vpop.f32.mrb[0].mxu0
    %473 = vmatprep.mubr.f32.mxu0 0.0
    %474 = vmatmul.mubr.f32.gmra.mrb[0].mxu0 %v189
    %v475 = vpop.f32.mrb[0].mxu0
    %v476 = vadd.f32 0.0, %v475
    %v477 = vpop.f32.mrb[0].mxu0
    %478 = vdwg.mxu0
    %v479 = vld [vmem:[#allocation13] sm:$0x1]
    %v481 = vlaneseq
    %v482 = vshrl.u32 %v481, 7
    %v483 = vsub.s32 0, %v482
    %v484 = vrot.slane %v479, %v483
    %v486 = vmul.f32 %v293, %v484
    %v487 = vmul.f32 %v294, %v484
    %v489 = vsel %vm156, %v486, 0
    %v492 = vsel %vm156, %v487, 0
    %v495 = vsel %vm156, %v398, 0
    %v498 = vsel %vm156, %v399, 0
    %500 = vmatprep.subr.mxu0 0.0
    %501 = vmatpush1.xpose.msra.mxu0 %v495
    %502 = vmatprep.subr.mxu0 0.0
    %503 = vmatpush1.xpose.msra.mxu0 %v498
    %504 = vmatprep.subr.mxu0 0.0
    %505 = vmatpush1.xpose.msra.mxu0 0.0
    %506 = vmatprep.subr.mxu0 0.0
    %507 = vmatpush1.xpose.msra.mxu0 0.0
    %508 = vmatprep.subr.mxu0 0.0
    %509 = vmatpush1.xpose.msra.mxu0 0.0
    %510 = vmatprep.subr.mxu0 0.0
    %511 = vmatpush1.xpose.msra.mxu0 0.0
    %512 = vmatprep.subr.mxu0 0.0
    %513 = vmatpush1.xpose.msra.mxu0 0.0
    %514 = vmatprep.subr.mxu0 0.0
    %515 = vmatpush1.xpose.msra.mxu0 0.0
    %516 = vmatprep.subr.mxu0 0.0
    %517 = vmatpush1.xpose.msra.mxu0 0.0
    %518 = vmatprep.subr.mxu0 0.0
    %519 = vmatpush1.xpose.msra.mxu0 0.0
    %520 = vmatprep.subr.mxu0 0.0
    %521 = vmatpush1.xpose.msra.mxu0 0.0
    %522 = vmatprep.subr.mxu0 0.0
    %523 = vmatpush1.xpose.msra.mxu0 0.0
    %524 = vmatprep.subr.mxu0 0.0
    %525 = vmatpush1.xpose.msra.mxu0 0.0
    %526 = vmatprep.subr.mxu0 0.0
    %527 = vmatpush1.xpose.msra.mxu0 0.0
    %528 = vmatprep.subr.mxu0 0.0
    %529 = vmatpush1.xpose.msra.mxu0 0.0
    %530 = vmatprep.subr.mxu0 0.0
    %531 = vmatpush1.xpose.msra.mxu0 0.0
    %532 = vmatprep.subr.mxu0 0.0
    %533 = vmatpush1.xpose.msra.mxu0 0.0
    %534 = vmatprep.subr.mxu0 0.0
    %535 = vmatpush1.xpose.msra.mxu0 0.0
    %536 = vmatprep.subr.mxu0 0.0
    %537 = vmatpush1.xpose.msra.mxu0 0.0
    %538 = vmatprep.subr.mxu0 0.0
    %539 = vmatpush1.xpose.msra.mxu0 0.0
    %540 = vmatprep.subr.mxu0 0.0
    %541 = vmatpush1.xpose.msra.mxu0 0.0
    %542 = vmatprep.subr.mxu0 0.0
    %543 = vmatpush1.xpose.msra.mxu0 0.0
    %544 = vmatprep.subr.mxu0 0.0
    %545 = vmatpush1.xpose.msra.mxu0 0.0
    %546 = vmatprep.subr.mxu0 0.0
    %547 = vmatpush1.xpose.msra.mxu0 0.0
    %548 = vmatprep.subr.mxu0 0.0
    %549 = vmatpush1.xpose.msra.mxu0 0.0
    %550 = vmatprep.subr.mxu0 0.0
    %551 = vmatpush1.xpose.msra.mxu0 0.0
    %552 = vmatprep.subr.mxu0 0.0
    %553 = vmatpush1.xpose.msra.mxu0 0.0
    %554 = vmatprep.subr.mxu0 0.0
    %555 = vmatpush1.xpose.msra.mxu0 0.0
    %556 = vmatprep.subr.mxu0 0.0
    %557 = vmatpush1.xpose.msra.mxu0 0.0
    %558 = vmatprep.subr.mxu0 0.0
    %559 = vmatpush1.xpose.msra.mxu0 0.0
    %560 = vmatprep.subr.mxu0 0.0
    %561 = vmatpush1.xpose.msra.mxu0 0.0
    %562 = vmatprep.subr.mxu0 0.0
    %563 = vmatpush1.xpose.msra.mxu0 0.0
    %564 = vmatprep.mubr.f32.mxu0 0.0
    %565 = vmatmul.mubr.f32.gmra.mrb[0].mxu0 %v489
    %v566 = vpop.f32.mrb[0].mxu0
    %v567 = vadd.f32 %v152, %v566
    %v568 = vpop.f32.mrb[0].mxu0
    %569 = vmatprep.mubr.f32.mxu0 0.0
    %570 = vmatmul.mubr.f32.gmra.mrb[0].mxu0 %v492
    %v571 = vpop.f32.mrb[0].mxu0
    %v572 = vadd.f32 %v153, %v571
    %v573 = vpop.f32.mrb[0].mxu0
    %574 = vdwg.mxu0
    %v575 = vsel %vm284, %v567, -inf
    %576 = vmax.xlane.f32.xlu0 %v575
    %v577 = vpop.xlane.xlu0 %576
    %v578 = vsel %vm284, %v572, -inf
    %579 = vmax.xlane.f32.xlu0 %v578
    %v580 = vpop.xlane.xlu0 %579
    %v581 = vsub.f32 %v567, %v577
    %v582 = vsub.f32 %v572, %v580
    %v583 = vmul.f32 %v581, 1.442695
    %v584 = vpow.pop %v583
    %v585 = vmul.f32 %v582, 1.442695
    %v586 = vpow.pop %v585
    %v587 = vsel %vm284, %v584, 0.0
    %588 = vadd.xlane.f32.xlu0 %v587
    %v589 = vpop.xlane.xlu0 %588
    %v590 = vsel %vm284, %v586, 0.0
    %591 = vadd.xlane.f32.xlu0 %v590
    %v592 = vpop.xlane.xlu0 %591
    %v593 = vrcp.pop %v589
    %v594 = vmul.f32 %v584, %v593
    %v595 = vrcp.pop %v592
    %v596 = vmul.f32 %v586, %v595
    %v597 = vld [vmem:[%s13] sm:$0x1]
    %v599 = vlaneseq
    %v600 = vshrl.u32 %v599, 7
    %v601 = vsub.s32 0, %v600
    %v602 = vrot.slane %v597, %v601
    %v604 = vmul.f32 %v471, %v602
    %v605 = vmul.f32 %v476, %v602
    %s606 = scalar_lea.vmem [#allocation13], 1
    %v607 = vld [vmem:[%s606] sm:$0x1]
    %v609 = vlaneseq
    %v610 = vshrl.u32 %v609, 7
    %v611 = vsub.s32 0, %v610
    %v612 = vrot.slane %v607, %v611
    %v614 = vmul.f32 %v293, %v612
    %v615 = vmul.f32 %v294, %v612
    %v617 = vsel %vm156, %v614, 0
    %v620 = vsel %vm156, %v615, 0
    %622 = vmatprep.subr.mxu0 0.0
    %623 = vmatpush1.xpose.msra.mxu0 %v495
    %624 = vmatprep.subr.mxu0 0.0
    %625 = vmatpush1.xpose.msra.mxu0 %v498
    %626 = vmatprep.subr.mxu0 0.0
    %627 = vmatpush1.xpose.msra.mxu0 0.0
    %628 = vmatprep.subr.mxu0 0.0
    %629 = vmatpush1.xpose.msra.mxu0 0.0
    %630 = vmatprep.subr.mxu0 0.0
    %631 = vmatpush1.xpose.msra.mxu0 0.0
    %632 = vmatprep.subr.mxu0 0.0
    %633 = vmatpush1.xpose.msra.mxu0 0.0
    %634 = vmatprep.subr.mxu0 0.0
    %635 = vmatpush1.xpose.msra.mxu0 0.0
    %636 = vmatprep.subr.mxu0 0.0
    %637 = vmatpush1.xpose.msra.mxu0 0.0
    %638 = vmatprep.subr.mxu0 0.0
    %639 = vmatpush1.xpose.msra.mxu0 0.0
    %640 = vmatprep.subr.mxu0 0.0
    %641 = vmatpush1.xpose.msra.mxu0 0.0
    %642 = vmatprep.subr.mxu0 0.0
    %643 = vmatpush1.xpose.msra.mxu0 0.0
    %644 = vmatprep.subr.mxu0 0.0
    %645 = vmatpush1.xpose.msra.mxu0 0.0
    %646 = vmatprep.subr.mxu0 0.0
    %647 = vmatpush1.xpose.msra.mxu0 0.0
    %648 = vmatprep.subr.mxu0 0.0
    %649 = vmatpush1.xpose.msra.mxu0 0.0
    %650 = vmatprep.subr.mxu0 0.0
    %651 = vmatpush1.xpose.msra.mxu0 0.0
    %652 = vmatprep.subr.mxu0 0.0
    %653 = vmatpush1.xpose.msra.mxu0 0.0
    %654 = vmatprep.subr.mxu0 0.0
    %655 = vmatpush1.xpose.msra.mxu0 0.0
    %656 = vmatprep.subr.mxu0 0.0
    %657 = vmatpush1.xpose.msra.mxu0 0.0
    %658 = vmatprep.subr.mxu0 0.0
    %659 = vmatpush1.xpose.msra.mxu0 0.0
    %660 = vmatprep.subr.mxu0 0.0
    %661 = vmatpush1.xpose.msra.mxu0 0.0
    %662 = vmatprep.subr.mxu0 0.0
    %663 = vmatpush1.xpose.msra.mxu0 0.0
    %664 = vmatprep.subr.mxu0 0.0
    %665 = vmatpush1.xpose.msra.mxu0 0.0
    %666 = vmatprep.subr.mxu0 0.0
    %667 = vmatpush1.xpose.msra.mxu0 0.0
    %668 = vmatprep.subr.mxu0 0.0
    %669 = vmatpush1.xpose.msra.mxu0 0.0
    %670 = vmatprep.subr.mxu0 0.0
    %671 = vmatpush1.xpose.msra.mxu0 0.0
    %672 = vmatprep.subr.mxu0 0.0
    %673 = vmatpush1.xpose.msra.mxu0 0.0
    %674 = vmatprep.subr.mxu0 0.0
    %675 = vmatpush1.xpose.msra.mxu0 0.0
    %676 = vmatprep.subr.mxu0 0.0
    %677 = vmatpush1.xpose.msra.mxu0 0.0
    %678 = vmatprep.subr.mxu0 0.0
    %679 = vmatpush1.xpose.msra.mxu0 0.0
    %680 = vmatprep.subr.mxu0 0.0
    %681 = vmatpush1.xpose.msra.mxu0 0.0
    %682 = vmatprep.subr.mxu0 0.0
    %683 = vmatpush1.xpose.msra.mxu0 0.0
    %684 = vmatprep.subr.mxu0 0.0
    %685 = vmatpush1.xpose.msra.mxu0 0.0
    %686 = vmatprep.mubr.f32.mxu0 0.0
    %687 = vmatmul.mubr.f32.gmra.mrb[0].mxu0 %v617
    %v688 = vpop.f32.mrb[0].mxu0
    %v689 = vadd.f32 %v152, %v688
    %v690 = vpop.f32.mrb[0].mxu0
    %691 = vmatprep.mubr.f32.mxu0 0.0
    %692 = vmatmul.mubr.f32.gmra.mrb[0].mxu0 %v620
    %v693 = vpop.f32.mrb[0].mxu0
    %v694 = vadd.f32 %v153, %v693
    %v695 = vpop.f32.mrb[0].mxu0
    %696 = vdwg.mxu0
    %v697 = vsel %vm284, %v689, -inf
    %698 = vmax.xlane.f32.xlu0 %v697
    %v699 = vpop.xlane.xlu0 %698
    %v700 = vsel %vm284, %v694, -inf
    %701 = vmax.xlane.f32.xlu0 %v700
    %v702 = vpop.xlane.xlu0 %701
    %v703 = vsub.f32 %v689, %v699
    %v704 = vsub.f32 %v694, %v702
    %v705 = vmul.f32 %v703, 1.442695
    %v706 = vpow.pop %v705
    %v707 = vmul.f32 %v704, 1.442695
    %v708 = vpow.pop %v707
    %v709 = vsel %vm284, %v706, 0.0
    %710 = vadd.xlane.f32.xlu0 %v709
    %v711 = vpop.xlane.xlu0 %710
    %v712 = vsel %vm284, %v708, 0.0
    %713 = vadd.xlane.f32.xlu0 %v712
    %v714 = vpop.xlane.xlu0 %713
    %v715 = vrcp.pop %v711
    %v716 = vmul.f32 %v706, %v715
    %v717 = vrcp.pop %v714
    %v718 = vmul.f32 %v708, %v717
    %s719 = scalar_lea.vmem %s13, 1
    %v720 = vld [vmem:[%s719] sm:$0x1]
    %v722 = vlaneseq
    %v723 = vshrl.u32 %v722, 7
    %v724 = vsub.s32 0, %v723
    %v725 = vrot.slane %v720, %v724
    %v727 = vmul.f32 %v471, %v725
    %v728 = vmul.f32 %v476, %v725
    %v730 = vsel %vm284, %v716, 0
    %v733 = vsel %vm284, %v718, 0
    %735 = vmatprep.subr.mxu0 0.0
    %736 = vmatpush1.msra.mxu0 %v727
    %737 = vmatprep.subr.mxu0 0.0
    %738 = vmatpush1.msra.mxu0 %v728
    %739 = vmatprep.subr.mxu0 0.0
    %740 = vmatpush1.msra.mxu0 0.0
    %741 = vmatprep.subr.mxu0 0.0
    %742 = vmatpush1.msra.mxu0 0.0
    %743 = vmatprep.subr.mxu0 0.0
    %744 = vmatpush1.msra.mxu0 0.0
    %745 = vmatprep.subr.mxu0 0.0
    %746 = vmatpush1.msra.mxu0 0.0
    %747 = vmatprep.subr.mxu0 0.0
    %748 = vmatpush1.msra.mxu0 0.0
    %749 = vmatprep.subr.mxu0 0.0
    %750 = vmatpush1.msra.mxu0 0.0
    %751 = vmatprep.subr.mxu0 0.0
    %752 = vmatpush1.msra.mxu0 0.0
    %753 = vmatprep.subr.mxu0 0.0
    %754 = vmatpush1.msra.mxu0 0.0
    %755 = vmatprep.subr.mxu0 0.0
    %756 = vmatpush1.msra.mxu0 0.0
    %757 = vmatprep.subr.mxu0 0.0
    %758 = vmatpush1.msra.mxu0 0.0
    %759 = vmatprep.subr.mxu0 0.0
    %760 = vmatpush1.msra.mxu0 0.0
    %761 = vmatprep.subr.mxu0 0.0
    %762 = vmatpush1.msra.mxu0 0.0
    %763 = vmatprep.subr.mxu0 0.0
    %764 = vmatpush1.msra.mxu0 0.0
    %765 = vmatprep.subr.mxu0 0.0
    %766 = vmatpush1.msra.mxu0 0.0
    %767 = vmatprep.subr.mxu0 0.0
    %768 = vmatpush1.msra.mxu0 0.0
    %769 = vmatprep.subr.mxu0 0.0
    %770 = vmatpush1.msra.mxu0 0.0
    %771 = vmatprep.subr.mxu0 0.0
    %772 = vmatpush1.msra.mxu0 0.0
    %773 = vmatprep.subr.mxu0 0.0
    %774 = vmatpush1.msra.mxu0 0.0
    %775 = vmatprep.subr.mxu0 0.0
    %776 = vmatpush1.msra.mxu0 0.0
    %777 = vmatprep.subr.mxu0 0.0
    %778 = vmatpush1.msra.mxu0 0.0
    %779 = vmatprep.subr.mxu0 0.0
    %780 = vmatpush1.msra.mxu0 0.0
    %781 = vmatprep.subr.mxu0 0.0
    %782 = vmatpush1.msra.mxu0 0.0
    %783 = vmatprep.subr.mxu0 0.0
    %784 = vmatpush1.msra.mxu0 0.0
    %785 = vmatprep.subr.mxu0 0.0
    %786 = vmatpush1.msra.mxu0 0.0
    %787 = vmatprep.subr.mxu0 0.0
    %788 = vmatpush1.msra.mxu0 0.0
    %789 = vmatprep.subr.mxu0 0.0
    %790 = vmatpush1.msra.mxu0 0.0
    %791 = vmatprep.subr.mxu0 0.0
    %792 = vmatpush1.msra.mxu0 0.0
    %793 = vmatprep.subr.mxu0 0.0
    %794 = vmatpush1.msra.mxu0 0.0
    %795 = vmatprep.subr.mxu0 0.0
    %796 = vmatpush1.msra.mxu0 0.0
    %797 = vmatprep.subr.mxu0 0.0
    %798 = vmatpush1.msra.mxu0 0.0
    %799 = vmatprep.mubr.f32.mxu0 0.0
    %800 = vmatmul.mubr.f32.gmra.mrb[0].mxu0 %v730
    %v801 = vpop.f32.mrb[0].mxu0
    %v802 = vadd.f32 0.0, %v801
    %v803 = vpop.f32.mrb[0].mxu0
    %804 = vmatprep.mubr.f32.mxu0 0.0
    %805 = vmatmul.mubr.f32.gmra.mrb[0].mxu0 %v733
    %v806 = vpop.f32.mrb[0].mxu0
    %v807 = vadd.f32 0.0, %v806
    %v808 = vpop.f32.mrb[0].mxu0
    %809 = vdwg.mxu0
    %v811 = vsel %vm284, %v594, 0
    %v814 = vsel %vm284, %v596, 0
    %816 = vmatprep.subr.mxu0 0.0
    %817 = vmatpush1.msra.mxu0 %v604
    %818 = vmatprep.subr.mxu0 0.0
    %819 = vmatpush1.msra.mxu0 %v605
    %820 = vmatprep.subr.mxu0 0.0
    %821 = vmatpush1.msra.mxu0 0.0
    %822 = vmatprep.subr.mxu0 0.0
    %823 = vmatpush1.msra.mxu0 0.0
    %824 = vmatprep.subr.mxu0 0.0
    %825 = vmatpush1.msra.mxu0 0.0
    %826 = vmatprep.subr.mxu0 0.0
    %827 = vmatpush1.msra.mxu0 0.0
    %828 = vmatprep.subr.mxu0 0.0
    %829 = vmatpush1.msra.mxu0 0.0
    %830 = vmatprep.subr.mxu0 0.0
    %831 = vmatpush1.msra.mxu0 0.0
    %832 = vmatprep.subr.mxu0 0.0
    %833 = vmatpush1.msra.mxu0 0.0
    %834 = vmatprep.subr.mxu0 0.0
    %835 = vmatpush1.msra.mxu0 0.0
    %836 = vmatprep.subr.mxu0 0.0
    %837 = vmatpush1.msra.mxu0 0.0
    %838 = vmatprep.subr.mxu0 0.0
    %839 = vmatpush1.msra.mxu0 0.0
    %840 = vmatprep.subr.mxu0 0.0
    %841 = vmatpush1.msra.mxu0 0.0
    %842 = vmatprep.subr.mxu0 0.0
    %843 = vmatpush1.msra.mxu0 0.0
    %844 = vmatprep.subr.mxu0 0.0
    %845 = vmatpush1.msra.mxu0 0.0
    %846 = vmatprep.subr.mxu0 0.0
    %847 = vmatpush1.msra.mxu0 0.0
    %848 = vmatprep.subr.mxu0 0.0
    %849 = vmatpush1.msra.mxu0 0.0
    %850 = vmatprep.subr.mxu0 0.0
    %851 = vmatpush1.msra.mxu0 0.0
    %852 = vmatprep.subr.mxu0 0.0
    %853 = vmatpush1.msra.mxu0 0.0
    %854 = vmatprep.subr.mxu0 0.0
    %855 = vmatpush1.msra.mxu0 0.0
    %856 = vmatprep.subr.mxu0 0.0
    %857 = vmatpush1.msra.mxu0 0.0
    %858 = vmatprep.subr.mxu0 0.0
    %859 = vmatpush1.msra.mxu0 0.0
    %860 = vmatprep.subr.mxu0 0.0
    %861 = vmatpush1.msra.mxu0 0.0
    %862 = vmatprep.subr.mxu0 0.0
    %863 = vmatpush1.msra.mxu0 0.0
    %864 = vmatprep.subr.mxu0 0.0
    %865 = vmatpush1.msra.mxu0 0.0
    %866 = vmatprep.subr.mxu0 0.0
    %867 = vmatpush1.msra.mxu0 0.0
    %868 = vmatprep.subr.mxu0 0.0
    %869 = vmatpush1.msra.mxu0 0.0
    %870 = vmatprep.subr.mxu0 0.0
    %871 = vmatpush1.msra.mxu0 0.0
    %872 = vmatprep.subr.mxu0 0.0
    %873 = vmatpush1.msra.mxu0 0.0
    %874 = vmatprep.subr.mxu0 0.0
    %875 = vmatpush1.msra.mxu0 0.0
    %876 = vmatprep.subr.mxu0 0.0
    %877 = vmatpush1.msra.mxu0 0.0
    %878 = vmatprep.subr.mxu0 0.0
    %879 = vmatpush1.msra.mxu0 0.0
    %880 = vmatprep.mubr.f32.mxu0 0.0
    %881 = vmatmul.mubr.f32.gmra.mrb[0].mxu0 %v811
    %v882 = vpop.f32.mrb[0].mxu0
    %v883 = vadd.f32 %v802, %v882
    %v884 = vpop.f32.mrb[0].mxu0
    %885 = vmatprep.mubr.f32.mxu0 0.0
    %886 = vmatmul.mubr.f32.gmra.mrb[0].mxu0 %v814
    %v887 = vpop.f32.mrb[0].mxu0
    %v888 = vadd.f32 %v807, %v887
    %v889 = vpop.f32.mrb[0].mxu0
    %890 = vdwg.mxu0
    %s891 = scalar_lea.vmem [#allocation13], 2
    %v892 = vld [vmem:[%s891] sm:$0x1]
    %v894 = vlaneseq
    %v895 = vshrl.u32 %v894, 7
    %v896 = vsub.s32 0, %v895
    %v897 = vrot.slane %v892, %v896
    %v899 = vmul.f32 %v293, %v897
    %v900 = vmul.f32 %v294, %v897
    %v902 = vsel %vm156, %v899, 0
    %v905 = vsel %vm156, %v900, 0
    %907 = vmatprep.subr.mxu0 0.0
    %908 = vmatpush1.xpose.msra.mxu0 %v495
    %909 = vmatprep.subr.mxu0 0.0
    %910 = vmatpush1.xpose.msra.mxu0 %v498
    %911 = vmatprep.subr.mxu0 0.0
    %912 = vmatpush1.xpose.msra.mxu0 0.0
    %913 = vmatprep.subr.mxu0 0.0
    %914 = vmatpush1.xpose.msra.mxu0 0.0
    %915 = vmatprep.subr.mxu0 0.0
    %916 = vmatpush1.xpose.msra.mxu0 0.0
    %917 = vmatprep.subr.mxu0 0.0
    %918 = vmatpush1.xpose.msra.mxu0 0.0
    %919 = vmatprep.subr.mxu0 0.0
    %920 = vmatpush1.xpose.msra.mxu0 0.0
    %921 = vmatprep.subr.mxu0 0.0
    %922 = vmatpush1.xpose.msra.mxu0 0.0
    %923 = vmatprep.subr.mxu0 0.0
    %924 = vmatpush1.xpose.msra.mxu0 0.0
    %925 = vmatprep.subr.mxu0 0.0
    %926 = vmatpush1.xpose.msra.mxu0 0.0
    %927 = vmatprep.subr.mxu0 0.0
    %928 = vmatpush1.xpose.msra.mxu0 0.0
    %929 = vmatprep.subr.mxu0 0.0
    %930 = vmatpush1.xpose.msra.mxu0 0.0
    %931 = vmatprep.subr.mxu0 0.0
    %932 = vmatpush1.xpose.msra.mxu0 0.0
    %933 = vmatprep.subr.mxu0 0.0
    %934 = vmatpush1.xpose.msra.mxu0 0.0
    %935 = vmatprep.subr.mxu0 0.0
    %936 = vmatpush1.xpose.msra.mxu0 0.0
    %937 = vmatprep.subr.mxu0 0.0
    %938 = vmatpush1.xpose.msra.mxu0 0.0
    %939 = vmatprep.subr.mxu0 0.0
    %940 = vmatpush1.xpose.msra.mxu0 0.0
    %941 = vmatprep.subr.mxu0 0.0
    %942 = vmatpush1.xpose.msra.mxu0 0.0
    %943 = vmatprep.subr.mxu0 0.0
    %944 = vmatpush1.xpose.msra.mxu0 0.0
    %945 = vmatprep.subr.mxu0 0.0
    %946 = vmatpush1.xpose.msra.mxu0 0.0
    %947 = vmatprep.subr.mxu0 0.0
    %948 = vmatpush1.xpose.msra.mxu0 0.0
    %949 = vmatprep.subr.mxu0 0.0
    %950 = vmatpush1.xpose.msra.mxu0 0.0
    %951 = vmatprep.subr.mxu0 0.0
    %952 = vmatpush1.xpose.msra.mxu0 0.0
    %953 = vmatprep.subr.mxu0 0.0
    %954 = vmatpush1.xpose.msra.mxu0 0.0
    %955 = vmatprep.subr.mxu0 0.0
    %956 = vmatpush1.xpose.msra.mxu0 0.0
    %957 = vmatprep.subr.mxu0 0.0
    %958 = vmatpush1.xpose.msra.mxu0 0.0
    %959 = vmatprep.subr.mxu0 0.0
    %960 = vmatpush1.xpose.msra.mxu0 0.0
    %961 = vmatprep.subr.mxu0 0.0
    %962 = vmatpush1.xpose.msra.mxu0 0.0
    %963 = vmatprep.subr.mxu0 0.0
    %964 = vmatpush1.xpose.msra.mxu0 0.0
    %965 = vmatprep.subr.mxu0 0.0
    %966 = vmatpush1.xpose.msra.mxu0 0.0
    %967 = vmatprep.subr.mxu0 0.0
    %968 = vmatpush1.xpose.msra.mxu0 0.0
    %969 = vmatprep.subr.mxu0 0.0
    %970 = vmatpush1.xpose.msra.mxu0 0.0
    %971 = vmatprep.mubr.f32.mxu0 0.0
    %972 = vmatmul.mubr.f32.gmra.mrb[0].mxu0 %v902
    %v973 = vpop.f32.mrb[0].mxu0
    %v974 = vadd.f32 %v152, %v973
    %v975 = vpop.f32.mrb[0].mxu0
    %976 = vmatprep.mubr.f32.mxu0 0.0
    %977 = vmatmul.mubr.f32.gmra.mrb[0].mxu0 %v905
    %v978 = vpop.f32.mrb[0].mxu0
    %v979 = vadd.f32 %v153, %v978
    %v980 = vpop.f32.mrb[0].mxu0
    %981 = vdwg.mxu0
    %v982 = vsel %vm284, %v974, -inf
    %983 = vmax.xlane.f32.xlu0 %v982
    %v984 = vpop.xlane.xlu0 %983
    %v985 = vsel %vm284, %v979, -inf
    %986 = vmax.xlane.f32.xlu0 %v985
    %v987 = vpop.xlane.xlu0 %986
    %v988 = vsub.f32 %v974, %v984
    %v989 = vsub.f32 %v979, %v987
    %v990 = vmul.f32 %v988, 1.442695
    %v991 = vpow.pop %v990
    %v992 = vmul.f32 %v989, 1.442695
    %v993 = vpow.pop %v992
    %v994 = vsel %vm284, %v991, 0.0
    %995 = vadd.xlane.f32.xlu0 %v994
    %v996 = vpop.xlane.xlu0 %995
    %v997 = vsel %vm284, %v993, 0.0
    %998 = vadd.xlane.f32.xlu0 %v997
    %v999 = vpop.xlane.xlu0 %998
    %v1000 = vrcp.pop %v996
    %v1001 = vmul.f32 %v991, %v1000
    %v1002 = vrcp.pop %v999
    %v1003 = vmul.f32 %v993, %v1002
    %s1004 = scalar_lea.vmem %s13, 2
    %v1005 = vld [vmem:[%s1004] sm:$0x1]
    %v1007 = vlaneseq
    %v1008 = vshrl.u32 %v1007, 7
    %v1009 = vsub.s32 0, %v1008
    %v1010 = vrot.slane %v1005, %v1009
    %v1012 = vmul.f32 %v471, %v1010
    %v1013 = vmul.f32 %v476, %v1010
    %v1015 = vsel %vm284, %v1001, 0
    %v1018 = vsel %vm284, %v1003, 0
    %1020 = vmatprep.subr.mxu0 0.0
    %1021 = vmatpush1.msra.mxu0 %v1012
    %1022 = vmatprep.subr.mxu0 0.0
    %1023 = vmatpush1.msra.mxu0 %v1013
    %1024 = vmatprep.subr.mxu0 0.0
    %1025 = vmatpush1.msra.mxu0 0.0
    %1026 = vmatprep.subr.mxu0 0.0
    %1027 = vmatpush1.msra.mxu0 0.0
    %1028 = vmatprep.subr.mxu0 0.0
    %1029 = vmatpush1.msra.mxu0 0.0
    %1030 = vmatprep.subr.mxu0 0.0
    %1031 = vmatpush1.msra.mxu0 0.0
    %1032 = vmatprep.subr.mxu0 0.0
    %1033 = vmatpush1.msra.mxu0 0.0
    %1034 = vmatprep.subr.mxu0 0.0
    %1035 = vmatpush1.msra.mxu0 0.0
    %1036 = vmatprep.subr.mxu0 0.0
    %1037 = vmatpush1.msra.mxu0 0.0
    %1038 = vmatprep.subr.mxu0 0.0
    %1039 = vmatpush1.msra.mxu0 0.0
    %1040 = vmatprep.subr.mxu0 0.0
    %1041 = vmatpush1.msra.mxu0 0.0
    %1042 = vmatprep.subr.mxu0 0.0
    %1043 = vmatpush1.msra.mxu0 0.0
    %1044 = vmatprep.subr.mxu0 0.0
    %1045 = vmatpush1.msra.mxu0 0.0
    %1046 = vmatprep.subr.mxu0 0.0
    %1047 = vmatpush1.msra.mxu0 0.0
    %1048 = vmatprep.subr.mxu0 0.0
    %1049 = vmatpush1.msra.mxu0 0.0
    %1050 = vmatprep.subr.mxu0 0.0
    %1051 = vmatpush1.msra.mxu0 0.0
    %1052 = vmatprep.subr.mxu0 0.0
    %1053 = vmatpush1.msra.mxu0 0.0
    %1054 = vmatprep.subr.mxu0 0.0
    %1055 = vmatpush1.msra.mxu0 0.0
    %1056 = vmatprep.subr.mxu0 0.0
    %1057 = vmatpush1.msra.mxu0 0.0
    %1058 = vmatprep.subr.mxu0 0.0
    %1059 = vmatpush1.msra.mxu0 0.0
    %1060 = vmatprep.subr.mxu0 0.0
    %1061 = vmatpush1.msra.mxu0 0.0
    %1062 = vmatprep.subr.mxu0 0.0
    %1063 = vmatpush1.msra.mxu0 0.0
    %1064 = vmatprep.subr.mxu0 0.0
    %1065 = vmatpush1.msra.mxu0 0.0
    %1066 = vmatprep.subr.mxu0 0.0
    %1067 = vmatpush1.msra.mxu0 0.0
    %1068 = vmatprep.subr.mxu0 0.0
    %1069 = vmatpush1.msra.mxu0 0.0
    %1070 = vmatprep.subr.mxu0 0.0
    %1071 = vmatpush1.msra.mxu0 0.0
    %1072 = vmatprep.subr.mxu0 0.0
    %1073 = vmatpush1.msra.mxu0 0.0
    %1074 = vmatprep.subr.mxu0 0.0
    %1075 = vmatpush1.msra.mxu0 0.0
    %1076 = vmatprep.subr.mxu0 0.0
    %1077 = vmatpush1.msra.mxu0 0.0
    %1078 = vmatprep.subr.mxu0 0.0
    %1079 = vmatpush1.msra.mxu0 0.0
    %1080 = vmatprep.subr.mxu0 0.0
    %1081 = vmatpush1.msra.mxu0 0.0
    %1082 = vmatprep.subr.mxu0 0.0
    %1083 = vmatpush1.msra.mxu0 0.0
    %1084 = vmatprep.mubr.f32.mxu0 0.0
    %1085 = vmatmul.mubr.f32.gmra.mrb[0].mxu0 %v1015
    %v1086 = vpop.f32.mrb[0].mxu0
    %v1087 = vadd.f32 0.0, %v1086
    %v1088 = vpop.f32.mrb[0].mxu0
    %1089 = vmatprep.mubr.f32.mxu0 0.0
    %1090 = vmatmul.mubr.f32.gmra.mrb[0].mxu0 %v1018
    %v1091 = vpop.f32.mrb[0].mxu0
    %v1092 = vadd.f32 0.0, %v1091
    %v1093 = vpop.f32.mrb[0].mxu0
    %1094 = vdwg.mxu0
    %v1095 = vadd.f32 %v883, %v1087
    %v1096 = vadd.f32 %v888, %v1092
    %s1097 = scalar_lea.vmem [#allocation13], 3
    %v1098 = vld [vmem:[%s1097] sm:$0x1]
    %v1100 = vlaneseq
    %v1101 = vshrl.u32 %v1100, 7
    %v1102 = vsub.s32 0, %v1101
    %v1103 = vrot.slane %v1098, %v1102
    %v1105 = vmul.f32 %v293, %v1103
    %v1106 = vmul.f32 %v294, %v1103
    %v1108 = vsel %vm156, %v1105, 0
    %v1111 = vsel %vm156, %v1106, 0
    %1113 = vmatprep.subr.mxu0 0.0
    %1114 = vmatpush1.xpose.msra.mxu0 %v495
    %1115 = vmatprep.subr.mxu0 0.0
    %1116 = vmatpush1.xpose.msra.mxu0 %v498
    %1117 = vmatprep.subr.mxu0 0.0
    %1118 = vmatpush1.xpose.msra.mxu0 0.0
    %1119 = vmatprep.subr.mxu0 0.0
    %1120 = vmatpush1.xpose.msra.mxu0 0.0
    %1121 = vmatprep.subr.mxu0 0.0
    %1122 = vmatpush1.xpose.msra.mxu0 0.0
    %1123 = vmatprep.subr.mxu0 0.0
    %1124 = vmatpush1.xpose.msra.mxu0 0.0
    %1125 = vmatprep.subr.mxu0 0.0
    %1126 = vmatpush1.xpose.msra.mxu0 0.0
    %1127 = vmatprep.subr.mxu0 0.0
    %1128 = vmatpush1.xpose.msra.mxu0 0.0
    %1129 = vmatprep.subr.mxu0 0.0
    %1130 = vmatpush1.xpose.msra.mxu0 0.0
    %1131 = vmatprep.subr.mxu0 0.0
    %1132 = vmatpush1.xpose.msra.mxu0 0.0
    %1133 = vmatprep.subr.mxu0 0.0
    %1134 = vmatpush1.xpose.msra.mxu0 0.0
    %1135 = vmatprep.subr.mxu0 0.0
    %1136 = vmatpush1.xpose.msra.mxu0 0.0
    %1137 = vmatprep.subr.mxu0 0.0
    %1138 = vmatpush1.xpose.msra.mxu0 0.0
    %1139 = vmatprep.subr.mxu0 0.0
    %1140 = vmatpush1.xpose.msra.mxu0 0.0
    %1141 = vmatprep.subr.mxu0 0.0
    %1142 = vmatpush1.xpose.msra.mxu0 0.0
    %1143 = vmatprep.subr.mxu0 0.0
    %1144 = vmatpush1.xpose.msra.mxu0 0.0
    %1145 = vmatprep.subr.mxu0 0.0
    %1146 = vmatpush1.xpose.msra.mxu0 0.0
    %1147 = vmatprep.subr.mxu0 0.0
    %1148 = vmatpush1.xpose.msra.mxu0 0.0
    %1149 = vmatprep.subr.mxu0 0.0
    %1150 = vmatpush1.xpose.msra.mxu0 0.0
    %1151 = vmatprep.subr.mxu0 0.0
    %1152 = vmatpush1.xpose.msra.mxu0 0.0
    %1153 = vmatprep.subr.mxu0 0.0
    %1154 = vmatpush1.xpose.msra.mxu0 0.0
    %1155 = vmatprep.subr.mxu0 0.0
    %1156 = vmatpush1.xpose.msra.mxu0 0.0
    %1157 = vmatprep.subr.mxu0 0.0
    %1158 = vmatpush1.xpose.msra.mxu0 0.0
    %1159 = vmatprep.subr.mxu0 0.0
    %1160 = vmatpush1.xpose.msra.mxu0 0.0
    %1161 = vmatprep.subr.mxu0 0.0
    %1162 = vmatpush1.xpose.msra.mxu0 0.0
    %1163 = vmatprep.subr.mxu0 0.0
    %1164 = vmatpush1.xpose.msra.mxu0 0.0
    %1165 = vmatprep.subr.mxu0 0.0
    %1166 = vmatpush1.xpose.msra.mxu0 0.0
    %1167 = vmatprep.subr.mxu0 0.0
    %1168 = vmatpush1.xpose.msra.mxu0 0.0
    %1169 = vmatprep.subr.mxu0 0.0
    %1170 = vmatpush1.xpose.msra.mxu0 0.0
    %1171 = vmatprep.subr.mxu0 0.0
    %1172 = vmatpush1.xpose.msra.mxu0 0.0
    %1173 = vmatprep.subr.mxu0 0.0
    %1174 = vmatpush1.xpose.msra.mxu0 0.0
    %1175 = vmatprep.subr.mxu0 0.0
    %1176 = vmatpush1.xpose.msra.mxu0 0.0
    %1177 = vmatprep.mubr.f32.mxu0 0.0
    %1178 = vmatmul.mubr.f32.gmra.mrb[0].mxu0 %v1108
    %v1179 = vpop.f32.mrb[0].mxu0
    %v1180 = vadd.f32 %v152, %v1179
    %v1181 = vpop.f32.mrb[0].mxu0
    %1182 = vmatprep.mubr.f32.mxu0 0.0
    %1183 = vmatmul.mubr.f32.gmra.mrb[0].mxu0 %v1111
    %v1184 = vpop.f32.mrb[0].mxu0
    %v1185 = vadd.f32 %v153, %v1184
    %v1186 = vpop.f32.mrb[0].mxu0
    %1187 = vdwg.mxu0
    %v1188 = vsel %vm284, %v1180, -inf
    %1189 = vmax.xlane.f32.xlu0 %v1188
    %v1190 = vpop.xlane.xlu0 %1189
    %v1191 = vsel %vm284, %v1185, -inf
    %1192 = vmax.xlane.f32.xlu0 %v1191
    %v1193 = vpop.xlane.xlu0 %1192
    %v1194 = vsub.f32 %v1180, %v1190
    %v1195 = vsub.f32 %v1185, %v1193
    %v1196 = vmul.f32 %v1194, 1.442695
    %v1197 = vpow.pop %v1196
    %v1198 = vmul.f32 %v1195, 1.442695
    %v1199 = vpow.pop %v1198
    %v1200 = vsel %vm284, %v1197, 0.0
    %1201 = vadd.xlane.f32.xlu0 %v1200
    %v1202 = vpop.xlane.xlu0 %1201
    %v1203 = vsel %vm284, %v1199, 0.0
    %1204 = vadd.xlane.f32.xlu0 %v1203
    %v1205 = vpop.xlane.xlu0 %1204
    %v1206 = vrcp.pop %v1202
    %v1207 = vmul.f32 %v1197, %v1206
    %v1208 = vrcp.pop %v1205
    %v1209 = vmul.f32 %v1199, %v1208
    %s1210 = scalar_lea.vmem %s13, 3
    %v1211 = vld [vmem:[%s1210] sm:$0x1]
    %v1213 = vlaneseq
    %v1214 = vshrl.u32 %v1213, 7
    %v1215 = vsub.s32 0, %v1214
    %v1216 = vrot.slane %v1211, %v1215
    %v1218 = vmul.f32 %v471, %v1216
    %v1219 = vmul.f32 %v476, %v1216
    %v1221 = vsel %vm284, %v1207, 0
    %v1224 = vsel %vm284, %v1209, 0
    %1226 = vmatprep.subr.mxu0 0.0
    %1227 = vmatpush1.msra.mxu0 %v1218
    %1228 = vmatprep.subr.mxu0 0.0
    %1229 = vmatpush1.msra.mxu0 %v1219
    %1230 = vmatprep.subr.mxu0 0.0
    %1231 = vmatpush1.msra.mxu0 0.0
    %1232 = vmatprep.subr.mxu0 0.0
    %1233 = vmatpush1.msra.mxu0 0.0
    %1234 = vmatprep.subr.mxu0 0.0
    %1235 = vmatpush1.msra.mxu0 0.0
    %1236 = vmatprep.subr.mxu0 0.0
    %1237 = vmatpush1.msra.mxu0 0.0
    %1238 = vmatprep.subr.mxu0 0.0
    %1239 = vmatpush1.msra.mxu0 0.0
    %1240 = vmatprep.subr.mxu0 0.0
    %1241 = vmatpush1.msra.mxu0 0.0
    %1242 = vmatprep.subr.mxu0 0.0
    %1243 = vmatpush1.msra.mxu0 0.0
    %1244 = vmatprep.subr.mxu0 0.0
    %1245 = vmatpush1.msra.mxu0 0.0
    %1246 = vmatprep.subr.mxu0 0.0
    %1247 = vmatpush1.msra.mxu0 0.0
    %1248 = vmatprep.subr.mxu0 0.0
    %1249 = vmatpush1.msra.mxu0 0.0
    %1250 = vmatprep.subr.mxu0 0.0
    %1251 = vmatpush1.msra.mxu0 0.0
    %1252 = vmatprep.subr.mxu0 0.0
    %1253 = vmatpush1.msra.mxu0 0.0
    %1254 = vmatprep.subr.mxu0 0.0
    %1255 = vmatpush1.msra.mxu0 0.0
    %1256 = vmatprep.subr.mxu0 0.0
    %1257 = vmatpush1.msra.mxu0 0.0
    %1258 = vmatprep.subr.mxu0 0.0
    %1259 = vmatpush1.msra.mxu0 0.0
    %1260 = vmatprep.subr.mxu0 0.0
    %1261 = vmatpush1.msra.mxu0 0.0
    %1262 = vmatprep.subr.mxu0 0.0
    %1263 = vmatpush1.msra.mxu0 0.0
    %1264 = vmatprep.subr.mxu0 0.0
    %1265 = vmatpush1.msra.mxu0 0.0
    %1266 = vmatprep.subr.mxu0 0.0
    %1267 = vmatpush1.msra.mxu0 0.0
    %1268 = vmatprep.subr.mxu0 0.0
    %1269 = vmatpush1.msra.mxu0 0.0
    %1270 = vmatprep.subr.mxu0 0.0
    %1271 = vmatpush1.msra.mxu0 0.0
    %1272 = vmatprep.subr.mxu0 0.0
    %1273 = vmatpush1.msra.mxu0 0.0
    %1274 = vmatprep.subr.mxu0 0.0
    %1275 = vmatpush1.msra.mxu0 0.0
    %1276 = vmatprep.subr.mxu0 0.0
    %1277 = vmatpush1.msra.mxu0 0.0
    %1278 = vmatprep.subr.mxu0 0.0
    %1279 = vmatpush1.msra.mxu0 0.0
    %1280 = vmatprep.subr.mxu0 0.0
    %1281 = vmatpush1.msra.mxu0 0.0
    %1282 = vmatprep.subr.mxu0 0.0
    %1283 = vmatpush1.msra.mxu0 0.0
    %1284 = vmatprep.subr.mxu0 0.0
    %1285 = vmatpush1.msra.mxu0 0.0
    %1286 = vmatprep.subr.mxu0 0.0
    %1287 = vmatpush1.msra.mxu0 0.0
    %1288 = vmatprep.subr.mxu0 0.0
    %1289 = vmatpush1.msra.mxu0 0.0
    %1290 = vmatprep.mubr.f32.mxu0 0.0
    %1291 = vmatmul.mubr.f32.gmra.mrb[0].mxu0 %v1221
    %v1292 = vpop.f32.mrb[0].mxu0
    %v1293 = vadd.f32 0.0, %v1292
    %v1294 = vpop.f32.mrb[0].mxu0
    %1295 = vmatprep.mubr.f32.mxu0 0.0
    %1296 = vmatmul.mubr.f32.gmra.mrb[0].mxu0 %v1224
    %v1297 = vpop.f32.mrb[0].mxu0
    %v1298 = vadd.f32 0.0, %v1297
    %v1299 = vpop.f32.mrb[0].mxu0
    %1300 = vdwg.mxu0
    %v1301 = vadd.f32 %v1095, %v1293
    %v1302 = vadd.f32 %v1096, %v1298
    %v1303 = vld [vmem:[#allocation7] sm:$0xff]
    %v1304 = vld [vmem:[#allocation7 + $0x8] sm:$0xff]
    %v1305 = vld [vmem:[#allocation7 + $0x10] sm:$0xff]
    %v1306 = vld [vmem:[#allocation7 + $0x18] sm:$0xff]
    %v1308 = vsel %vm156, %v1301, 0
    %v1311 = vsel %vm156, %v1302, 0
    %1313 = vmatprep.subr.mxu0 0.0
    %1314 = vmatpush1.msra.mxu0 %v1303
    %1315 = vmatprep.subr.mxu0 0.0
    %1316 = vmatpush1.msra.mxu0 %v1304
    %1317 = vmatprep.subr.mxu0 0.0
    %1318 = vmatpush1.msra.mxu0 %v1305
    %1319 = vmatprep.subr.mxu0 0.0
    %1320 = vmatpush1.msra.mxu0 %v1306
    %1321 = vmatprep.subr.mxu0 0.0
    %1322 = vmatpush1.msra.mxu0 0.0
    %1323 = vmatprep.subr.mxu0 0.0
    %1324 = vmatpush1.msra.mxu0 0.0
    %1325 = vmatprep.subr.mxu0 0.0
    %1326 = vmatpush1.msra.mxu0 0.0
    %1327 = vmatprep.subr.mxu0 0.0
    %1328 = vmatpush1.msra.mxu0 0.0
    %1329 = vmatprep.subr.mxu0 0.0
    %1330 = vmatpush1.msra.mxu0 0.0
    %1331 = vmatprep.subr.mxu0 0.0
    %1332 = vmatpush1.msra.mxu0 0.0
    %1333 = vmatprep.subr.mxu0 0.0
    %1334 = vmatpush1.msra.mxu0 0.0
    %1335 = vmatprep.subr.mxu0 0.0
    %1336 = vmatpush1.msra.mxu0 0.0
    %1337 = vmatprep.subr.mxu0 0.0
    %1338 = vmatpush1.msra.mxu0 0.0
    %1339 = vmatprep.subr.mxu0 0.0
    %1340 = vmatpush1.msra.mxu0 0.0
    %1341 = vmatprep.subr.mxu0 0.0
    %1342 = vmatpush1.msra.mxu0 0.0
    %1343 = vmatprep.subr.mxu0 0.0
    %1344 = vmatpush1.msra.mxu0 0.0
    %1345 = vmatprep.subr.mxu0 0.0
    %1346 = vmatpush1.msra.mxu0 0.0
    %1347 = vmatprep.subr.mxu0 0.0
    %1348 = vmatpush1.msra.mxu0 0.0
    %1349 = vmatprep.subr.mxu0 0.0
    %1350 = vmatpush1.msra.mxu0 0.0
    %1351 = vmatprep.subr.mxu0 0.0
    %1352 = vmatpush1.msra.mxu0 0.0
    %1353 = vmatprep.subr.mxu0 0.0
    %1354 = vmatpush1.msra.mxu0 0.0
    %1355 = vmatprep.subr.mxu0 0.0
    %1356 = vmatpush1.msra.mxu0 0.0
    %1357 = vmatprep.subr.mxu0 0.0
    %1358 = vmatpush1.msra.mxu0 0.0
    %1359 = vmatprep.subr.mxu0 0.0
    %1360 = vmatpush1.msra.mxu0 0.0
    %1361 = vmatprep.subr.mxu0 0.0
    %1362 = vmatpush1.msra.mxu0 0.0
    %1363 = vmatprep.subr.mxu0 0.0
    %1364 = vmatpush1.msra.mxu0 0.0
    %1365 = vmatprep.subr.mxu0 0.0
    %1366 = vmatpush1.msra.mxu0 0.0
    %1367 = vmatprep.subr.mxu0 0.0
    %1368 = vmatpush1.msra.mxu0 0.0
    %1369 = vmatprep.subr.mxu0 0.0
    %1370 = vmatpush1.msra.mxu0 0.0
    %1371 = vmatprep.subr.mxu0 0.0
    %1372 = vmatpush1.msra.mxu0 0.0
    %1373 = vmatprep.subr.mxu0 0.0
    %1374 = vmatpush1.msra.mxu0 0.0
    %1375 = vmatprep.subr.mxu0 0.0
    %1376 = vmatpush1.msra.mxu0 0.0
    %1377 = vmatprep.mubr.f32.mxu0 0.0
    %1378 = vmatmul.mubr.f32.gmra.mrb[0].mxu0 %v1308
    %v1379 = vpop.f32.mrb[0].mxu0
    %v1380 = vadd.f32 0.0, %v1379
    %v1381 = vpop.f32.mrb[0].mxu0
    %1382 = vmatprep.mubr.f32.mxu0 0.0
    %1383 = vmatmul.mubr.f32.gmra.mrb[0].mxu0 %v1311
    %v1384 = vpop.f32.mrb[0].mxu0
    %v1385 = vadd.f32 0.0, %v1384
    %v1386 = vpop.f32.mrb[0].mxu0
    %1387 = vdwg.mxu0
    %v1388 = vadd.f32 %v146, %v1380
    %v1389 = vadd.f32 %v147, %v1385
    %v1390 = vmul.f32 %v1388, %v1388
    %v1391 = vmul.f32 %v1389, %v1389
    %v1392 = vsel %vm156, %v1390, 0.0
    %1393 = vadd.xlane.f32.xlu0 %v1392
    %v1394 = vpop.xlane.xlu0 %1393
    %v1395 = vsel %vm156, %v1391, 0.0
    %1396 = vadd.xlane.f32.xlu0 %v1395
    %v1397 = vpop.xlane.xlu0 %1396
    %v1398 = vmul.f32 %v1394, %v163
    %v1399 = vmul.f32 %v1397, %v163
    %v1400 = vadd.f32 %v1398, 1e-06
    %v1401 = vadd.f32 %v1399, 1e-06
    %v1402 = vrsqrt.pop %v1400
    %v1403 = vrsqrt.pop %v1401
    %v1404 = vmul.f32 %v1388, %v1402
    %v1405 = vmul.f32 %v1389, %v1403
    %v1406 = vld [vmem:[#allocation8] sm:$0x1]
    %v1408 = vlaneseq
    %v1409 = vshrl.u32 %v1408, 7
    %v1410 = vsub.s32 0, %v1409
    %v1411 = vrot.slane %v1406, %v1410
    %v1413 = vmul.f32 %v1404, %v1411
    %v1414 = vmul.f32 %v1405, %v1411
    %v1415 = vld [vmem:[#allocation10] sm:$0xff]
    %v1416 = vld [vmem:[#allocation10 + $0x8] sm:$0xff]
    %v1417 = vld [vmem:[#allocation10 + $0x10] sm:$0xff]
    %v1418 = vld [vmem:[#allocation10 + $0x18] sm:$0xff]
    %v1420 = vsel %vm156, %v1413, 0
    %v1423 = vsel %vm156, %v1414, 0
    %1425 = vmatprep.subr.mxu0 0.0
    %1426 = vmatpush1.msra.mxu0 %v1415
    %1427 = vmatprep.subr.mxu0 0.0
    %1428 = vmatpush1.msra.mxu0 %v1416
    %1429 = vmatprep.subr.mxu0 0.0
    %1430 = vmatpush1.msra.mxu0 %v1417
    %1431 = vmatprep.subr.mxu0 0.0
    %1432 = vmatpush1.msra.mxu0 %v1418
    %1433 = vmatprep.subr.mxu0 0.0
    %1434 = vmatpush1.msra.mxu0 0.0
    %1435 = vmatprep.subr.mxu0 0.0
    %1436 = vmatpush1.msra.mxu0 0.0
    %1437 = vmatprep.subr.mxu0 0.0
    %1438 = vmatpush1.msra.mxu0 0.0
    %1439 = vmatprep.subr.mxu0 0.0
    %1440 = vmatpush1.msra.mxu0 0.0
    %1441 = vmatprep.subr.mxu0 0.0
    %1442 = vmatpush1.msra.mxu0 0.0
    %1443 = vmatprep.subr.mxu0 0.0
    %1444 = vmatpush1.msra.mxu0 0.0
    %1445 = vmatprep.subr.mxu0 0.0
    %1446 = vmatpush1.msra.mxu0 0.0
    %1447 = vmatprep.subr.mxu0 0.0
    %1448 = vmatpush1.msra.mxu0 0.0
    %1449 = vmatprep.subr.mxu0 0.0
    %1450 = vmatpush1.msra.mxu0 0.0
    %1451 = vmatprep.subr.mxu0 0.0
    %1452 = vmatpush1.msra.mxu0 0.0
    %1453 = vmatprep.subr.mxu0 0.0
    %1454 = vmatpush1.msra.mxu0 0.0
    %1455 = vmatprep.subr.mxu0 0.0
    %1456 = vmatpush1.msra.mxu0 0.0
    %1457 = vmatprep.subr.mxu0 0.0
    %1458 = vmatpush1.msra.mxu0 0.0
    %1459 = vmatprep.subr.mxu0 0.0
    %1460 = vmatpush1.msra.mxu0 0.0
    %1461 = vmatprep.subr.mxu0 0.0
    %1462 = vmatpush1.msra.mxu0 0.0
    %1463 = vmatprep.subr.mxu0 0.0
    %1464 = vmatpush1.msra.mxu0 0.0
    %1465 = vmatprep.subr.mxu0 0.0
    %1466 = vmatpush1.msra.mxu0 0.0
    %1467 = vmatprep.subr.mxu0 0.0
    %1468 = vmatpush1.msra.mxu0 0.0
    %1469 = vmatprep.subr.mxu0 0.0
    %1470 = vmatpush1.msra.mxu0 0.0
    %1471 = vmatprep.subr.mxu0 0.0
    %1472 = vmatpush1.msra.mxu0 0.0
    %1473 = vmatprep.subr.mxu0 0.0
    %1474 = vmatpush1.msra.mxu0 0.0
    %1475 = vmatprep.subr.mxu0 0.0
    %1476 = vmatpush1.msra.mxu0 0.0
    %1477 = vmatprep.subr.mxu0 0.0
    %1478 = vmatpush1.msra.mxu0 0.0
    %1479 = vmatprep.subr.mxu0 0.0
    %1480 = vmatpush1.msra.mxu0 0.0
    %1481 = vmatprep.subr.mxu0 0.0
    %1482 = vmatpush1.msra.mxu0 0.0
    %1483 = vmatprep.subr.mxu0 0.0
    %1484 = vmatpush1.msra.mxu0 0.0
    %1485 = vmatprep.subr.mxu0 0.0
    %1486 = vmatpush1.msra.mxu0 0.0
    %1487 = vmatprep.subr.mxu0 0.0
    %1488 = vmatpush1.msra.mxu0 0.0
    %1489 = vmatprep.mubr.f32.mxu0 0.0
    %1490 = vmatmul.mubr.f32.gmra.mrb[0].mxu0 %v1420
    %v1491 = vpop.f32.mrb[0].mxu0
    %v1492 = vadd.f32 0.0, %v1491
    %v1493 = vpop.f32.mrb[0].mxu0
    %1494 = vmatprep.mubr.f32.mxu0 0.0
    %1495 = vmatmul.mubr.f32.gmra.mrb[0].mxu0 %v1423
    %v1496 = vpop.f32.mrb[0].mxu0
    %v1497 = vadd.f32 0.0, %v1496
    %v1498 = vpop.f32.mrb[0].mxu0
    %1499 = vdwg.mxu0
    %v1500 = vld [vmem:[#allocation11] sm:$0xff]
    %v1501 = vld [vmem:[#allocation11 + $0x8] sm:$0xff]
    %v1502 = vld [vmem:[#allocation11 + $0x10] sm:$0xff]
    %v1503 = vld [vmem:[#allocation11 + $0x18] sm:$0xff]
    %1504 = vmatprep.subr.mxu0 0.0
    %1505 = vmatpush1.msra.mxu0 %v1500
    %1506 = vmatprep.subr.mxu0 0.0
    %1507 = vmatpush1.msra.mxu0 %v1501
    %1508 = vmatprep.subr.mxu0 0.0
    %1509 = vmatpush1.msra.mxu0 %v1502
    %1510 = vmatprep.subr.mxu0 0.0
    %1511 = vmatpush1.msra.mxu0 %v1503
    %1512 = vmatprep.subr.mxu0 0.0
    %1513 = vmatpush1.msra.mxu0 0.0
    %1514 = vmatprep.subr.mxu0 0.0
    %1515 = vmatpush1.msra.mxu0 0.0
    %1516 = vmatprep.subr.mxu0 0.0
    %1517 = vmatpush1.msra.mxu0 0.0
    %1518 = vmatprep.subr.mxu0 0.0
    %1519 = vmatpush1.msra.mxu0 0.0
    %1520 = vmatprep.subr.mxu0 0.0
    %1521 = vmatpush1.msra.mxu0 0.0
    %1522 = vmatprep.subr.mxu0 0.0
    %1523 = vmatpush1.msra.mxu0 0.0
    %1524 = vmatprep.subr.mxu0 0.0
    %1525 = vmatpush1.msra.mxu0 0.0
    %1526 = vmatprep.subr.mxu0 0.0
    %1527 = vmatpush1.msra.mxu0 0.0
    %1528 = vmatprep.subr.mxu0 0.0
    %1529 = vmatpush1.msra.mxu0 0.0
    %1530 = vmatprep.subr.mxu0 0.0
    %1531 = vmatpush1.msra.mxu0 0.0
    %1532 = vmatprep.subr.mxu0 0.0
    %1533 = vmatpush1.msra.mxu0 0.0
    %1534 = vmatprep.subr.mxu0 0.0
    %1535 = vmatpush1.msra.mxu0 0.0
    %1536 = vmatprep.subr.mxu0 0.0
    %1537 = vmatpush1.msra.mxu0 0.0
    %1538 = vmatprep.subr.mxu0 0.0
    %1539 = vmatpush1.msra.mxu0 0.0
    %1540 = vmatprep.subr.mxu0 0.0
    %1541 = vmatpush1.msra.mxu0 0.0
    %1542 = vmatprep.subr.mxu0 0.0
    %1543 = vmatpush1.msra.mxu0 0.0
    %1544 = vmatprep.subr.mxu0 0.0
    %1545 = vmatpush1.msra.mxu0 0.0
    %1546 = vmatprep.subr.mxu0 0.0
    %1547 = vmatpush1.msra.mxu0 0.0
    %1548 = vmatprep.subr.mxu0 0.0
    %1549 = vmatpush1.msra.mxu0 0.0
    %1550 = vmatprep.subr.mxu0 0.0
    %1551 = vmatpush1.msra.mxu0 0.0
    %1552 = vmatprep.subr.mxu0 0.0
    %1553 = vmatpush1.msra.mxu0 0.0
    %1554 = vmatprep.subr.mxu0 0.0
    %1555 = vmatpush1.msra.mxu0 0.0
    %1556 = vmatprep.subr.mxu0 0.0
    %1557 = vmatpush1.msra.mxu0 0.0
    %1558 = vmatprep.subr.mxu0 0.0
    %1559 = vmatpush1.msra.mxu0 0.0
    %1560 = vmatprep.subr.mxu0 0.0
    %1561 = vmatpush1.msra.mxu0 0.0
    %1562 = vmatprep.subr.mxu0 0.0
    %1563 = vmatpush1.msra.mxu0 0.0
    %1564 = vmatprep.subr.mxu0 0.0
    %1565 = vmatpush1.msra.mxu0 0.0
    %1566 = vmatprep.subr.mxu0 0.0
    %1567 = vmatpush1.msra.mxu0 0.0
    %1568 = vmatprep.mubr.f32.mxu0 0.0
    %1569 = vmatmul.mubr.f32.gmra.mrb[0].mxu0 %v1420
    %v1570 = vpop.f32.mrb[0].mxu0
    %v1571 = vadd.f32 0.0, %v1570
    %v1572 = vpop.f32.mrb[0].mxu0
    %1573 = vmatprep.mubr.f32.mxu0 0.0
    %1574 = vmatmul.mubr.f32.gmra.mrb[0].mxu0 %v1423
    %v1575 = vpop.f32.mrb[0].mxu0
    %v1576 = vadd.f32 0.0, %v1575
    %v1577 = vpop.f32.mrb[0].mxu0
    %1578 = vdwg.mxu0
    %v1579 = vxor.u32 %v1492, 2147483648
    %v1580 = vxor.u32 %v1497, 2147483648
    %v1581 = vmul.f32 %v1579, 1.442695
    %v1582 = vpow.pop %v1581
    %v1583 = vmul.f32 %v1580, 1.442695
    %v1584 = vpow.pop %v1583
    %v1585 = vadd.f32 %v1582, 1.0
    %v1586 = vadd.f32 %v1584, 1.0
    %v1587 = vrcp.pop %v1585
    %v1588 = vmul.f32 1.0, %v1587
    %v1589 = vrcp.pop %v1586
    %v1590 = vmul.f32 1.0, %v1589
    %v1591 = vmul.f32 %v1492, %v1588
    %v1592 = vmul.f32 %v1497, %v1590
    %v1593 = vmul.f32 %v1591, %v1571
    %v1594 = vmul.f32 %v1592, %v1576
    %v1595 = vld [vmem:[%s9] sm:$0xff]
    %v1596 = vld [vmem:[%s9 + $0x8] sm:$0xff]
    %v1597 = vld [vmem:[%s9 + $0x10] sm:$0xff]
    %v1598 = vld [vmem:[%s9 + $0x18] sm:$0xff]
    %v1599 = vld [vmem:[%s9 + $0x20] sm:$0xff]
    %v1600 = vld [vmem:[%s9 + $0x28] sm:$0xff]
    %v1601 = vld [vmem:[%s9 + $0x30] sm:$0xff]
    %v1602 = vld [vmem:[%s9 + $0x38] sm:$0xff]
    %vm1603 = vcmask 523264
    %v1605 = vsel %vm1603, %v1593, 0
    %v1608 = vsel %vm1603, %v1594, 0
    %1610 = vmatprep.subr.mxu0 0.0
    %1611 = vmatpush1.msra.mxu0 %v1595
    %1612 = vmatprep.subr.mxu0 0.0
    %1613 = vmatpush1.msra.mxu0 %v1596
    %1614 = vmatprep.subr.mxu0 0.0
    %1615 = vmatpush1.msra.mxu0 %v1597
    %1616 = vmatprep.subr.mxu0 0.0
    %1617 = vmatpush1.msra.mxu0 %v1598
    %1618 = vmatprep.subr.mxu0 0.0
    %1619 = vmatpush1.msra.mxu0 %v1599
    %1620 = vmatprep.subr.mxu0 0.0
    %1621 = vmatpush1.msra.mxu0 %v1600
    %1622 = vmatprep.subr.mxu0 0.0
    %1623 = vmatpush1.msra.mxu0 %v1601
    %1624 = vmatprep.subr.mxu0 0.0
    %1625 = vmatpush1.msra.mxu0 %v1602
    %1626 = vmatprep.subr.mxu0 0.0
    %1627 = vmatpush1.msra.mxu0 0.0
    %1628 = vmatprep.subr.mxu0 0.0
    %1629 = vmatpush1.msra.mxu0 0.0
    %1630 = vmatprep.subr.mxu0 0.0
    %1631 = vmatpush1.msra.mxu0 0.0
    %1632 = vmatprep.subr.mxu0 0.0
    %1633 = vmatpush1.msra.mxu0 0.0
    %1634 = vmatprep.subr.mxu0 0.0
    %1635 = vmatpush1.msra.mxu0 0.0
    %1636 = vmatprep.subr.mxu0 0.0
    %1637 = vmatpush1.msra.mxu0 0.0
    %1638 = vmatprep.subr.mxu0 0.0
    %1639 = vmatpush1.msra.mxu0 0.0
    %1640 = vmatprep.subr.mxu0 0.0
    %1641 = vmatpush1.msra.mxu0 0.0
    %1642 = vmatprep.subr.mxu0 0.0
    %1643 = vmatpush1.msra.mxu0 0.0
    %1644 = vmatprep.subr.mxu0 0.0
    %1645 = vmatpush1.msra.mxu0 0.0
    %1646 = vmatprep.subr.mxu0 0.0
    %1647 = vmatpush1.msra.mxu0 0.0
    %1648 = vmatprep.subr.mxu0 0.0
    %1649 = vmatpush1.msra.mxu0 0.0
    %1650 = vmatprep.subr.mxu0 0.0
    %1651 = vmatpush1.msra.mxu0 0.0
    %1652 = vmatprep.subr.mxu0 0.0
    %1653 = vmatpush1.msra.mxu0 0.0
    %1654 = vmatprep.subr.mxu0 0.0
    %1655 = vmatpush1.msra.mxu0 0.0
    %1656 = vmatprep.subr.mxu0 0.0
    %1657 = vmatpush1.msra.mxu0 0.0
    %1658 = vmatprep.subr.mxu0 0.0
    %1659 = vmatpush1.msra.mxu0 0.0
    %1660 = vmatprep.subr.mxu0 0.0
    %1661 = vmatpush1.msra.mxu0 0.0
    %1662 = vmatprep.subr.mxu0 0.0
    %1663 = vmatpush1.msra.mxu0 0.0
    %1664 = vmatprep.subr.mxu0 0.0
    %1665 = vmatpush1.msra.mxu0 0.0
    %1666 = vmatprep.subr.mxu0 0.0
    %1667 = vmatpush1.msra.mxu0 0.0
    %1668 = vmatprep.subr.mxu0 0.0
    %1669 = vmatpush1.msra.mxu0 0.0
    %1670 = vmatprep.subr.mxu0 0.0
    %1671 = vmatpush1.msra.mxu0 0.0
    %1672 = vmatprep.subr.mxu0 0.0
    %1673 = vmatpush1.msra.mxu0 0.0
    %1674 = vmatprep.mubr.f32.mxu0 0.0
    %1675 = vmatmul.mubr.f32.gmra.mrb[0].mxu0 %v1605
    %v1676 = vpop.f32.mrb[0].mxu0
    %v1677 = vadd.f32 0.0, %v1676
    %v1678 = vpop.f32.mrb[0].mxu0
    %1679 = vmatprep.mubr.f32.mxu0 0.0
    %1680 = vmatmul.mubr.f32.gmra.mrb[0].mxu0 %v1608
    %v1681 = vpop.f32.mrb[0].mxu0
    %v1682 = vadd.f32 0.0, %v1681
    %v1683 = vpop.f32.mrb[0].mxu0
    %1684 = vdwg.mxu0
    %v1685 = vadd.f32 %v1388, %v1677
    %v1686 = vadd.f32 %v1389, %v1682
    %v1687 = vmul.f32 %v1685, %v1685
    %v1688 = vmul.f32 %v1686, %v1686
    %v1689 = vsel %vm156, %v1687, 0.0
    %1690 = vadd.xlane.f32.xlu0 %v1689
    %v1691 = vpop.xlane.xlu0 %1690
    %v1692 = vsel %vm156, %v1688, 0.0
    %1693 = vadd.xlane.f32.xlu0 %v1692
    %v1694 = vpop.xlane.xlu0 %1693
    %v1695 = vmul.f32 %v1691, %v163
    %v1696 = vmul.f32 %v1694, %v163
    %v1697 = vadd.f32 %v1695, 1e-06
    %v1698 = vadd.f32 %v1696, 1e-06
    %v1699 = vrsqrt.pop %v1697
    %v1700 = vrsqrt.pop %v1698
    %v1701 = vmul.f32 %v1685, %v1699
    %v1702 = vmul.f32 %v1686, %v1700
    %s1703 = scalar_lea.vmem [#allocation5], 1
    %v1704 = vld [vmem:[%s1703] sm:$0x1]
    %v1706 = vlaneseq
    %v1707 = vshrl.u32 %v1706, 7
    %v1708 = vsub.s32 0, %v1707
    %v1709 = vrot.slane %v1704, %v1708
    %v1711 = vmul.f32 %v1701, %v1709
    %v1712 = vmul.f32 %v1702, %v1709
    %s1713 = scalar_lea.vmem %s2, 32
    %v1714 = vld [vmem:[%s1713] sm:$0xff]
    %v1715 = vld [vmem:[%s1713 + $0x8] sm:$0xff]
    %v1716 = vld [vmem:[%s1713 + $0x10] sm:$0xff]
    %v1717 = vld [vmem:[%s1713 + $0x18] sm:$0xff]
    %v1719 = vsel %vm156, %v1711, 0
    %v1722 = vsel %vm156, %v1712, 0
    %1724 = vmatprep.subr.mxu0 0.0
    %1725 = vmatpush1.msra.mxu0 %v1714
    %1726 = vmatprep.subr.mxu0 0.0
    %1727 = vmatpush1.msra.mxu0 %v1715
    %1728 = vmatprep.subr.mxu0 0.0
    %1729 = vmatpush1.msra.mxu0 %v1716
    %1730 = vmatprep.subr.mxu0 0.0
    %1731 = vmatpush1.msra.mxu0 %v1717
    %1732 = vmatprep.subr.mxu0 0.0
    %1733 = vmatpush1.msra.mxu0 0.0
    %1734 = vmatprep.subr.mxu0 0.0
    %1735 = vmatpush1.msra.mxu0 0.0
    %1736 = vmatprep.subr.mxu0 0.0
    %1737 = vmatpush1.msra.mxu0 0.0
    %1738 = vmatprep.subr.mxu0 0.0
    %1739 = vmatpush1.msra.mxu0 0.0
    %1740 = vmatprep.subr.mxu0 0.0
    %1741 = vmatpush1.msra.mxu0 0.0
    %1742 = vmatprep.subr.mxu0 0.0
    %1743 = vmatpush1.msra.mxu0 0.0
    %1744 = vmatprep.subr.mxu0 0.0
    %1745 = vmatpush1.msra.mxu0 0.0
    %1746 = vmatprep.subr.mxu0 0.0
    %1747 = vmatpush1.msra.mxu0 0.0
    %1748 = vmatprep.subr.mxu0 0.0
    %1749 = vmatpush1.msra.mxu0 0.0
    %1750 = vmatprep.subr.mxu0 0.0
    %1751 = vmatpush1.msra.mxu0 0.0
    %1752 = vmatprep.subr.mxu0 0.0
    %1753 = vmatpush1.msra.mxu0 0.0
    %1754 = vmatprep.subr.mxu0 0.0
    %1755 = vmatpush1.msra.mxu0 0.0
    %1756 = vmatprep.subr.mxu0 0.0
    %1757 = vmatpush1.msra.mxu0 0.0
    %1758 = vmatprep.subr.mxu0 0.0
    %1759 = vmatpush1.msra.mxu0 0.0
    %1760 = vmatprep.subr.mxu0 0.0
    %1761 = vmatpush1.msra.mxu0 0.0
    %1762 = vmatprep.subr.mxu0 0.0
    %1763 = vmatpush1.msra.mxu0 0.0
    %1764 = vmatprep.subr.mxu0 0.0
    %1765 = vmatpush1.msra.mxu0 0.0
    %1766 = vmatprep.subr.mxu0 0.0
    %1767 = vmatpush1.msra.mxu0 0.0
    %1768 = vmatprep.subr.mxu0 0.0
    %1769 = vmatpush1.msra.mxu0 0.0
    %1770 = vmatprep.subr.mxu0 0.0
    %1771 = vmatpush1.msra.mxu0 0.0
    %1772 = vmatprep.subr.mxu0 0.0
    %1773 = vmatpush1.msra.mxu0 0.0
    %1774 = vmatprep.subr.mxu0 0.0
    %1775 = vmatpush1.msra.mxu0 0.0
    %1776 = vmatprep.subr.mxu0 0.0
    %1777 = vmatpush1.msra.mxu0 0.0
    %1778 = vmatprep.subr.mxu0 0.0
    %1779 = vmatpush1.msra.mxu0 0.0
    %1780 = vmatprep.subr.mxu0 0.0
    %1781 = vmatpush1.msra.mxu0 0.0
    %1782 = vmatprep.subr.mxu0 0.0
    %1783 = vmatpush1.msra.mxu0 0.0
    %1784 = vmatprep.subr.mxu0 0.0
    %1785 = vmatpush1.msra.mxu0 0.0
    %1786 = vmatprep.subr.mxu0 0.0
    %1787 = vmatpush1.msra.mxu0 0.0
    %1788 = vmatprep.mubr.f32.mxu0 0.0
    %1789 = vmatmul.mubr.f32.gmra.mrb[0].mxu0 %v1719
    %v1790 = vpop.f32.mrb[0].mxu0
    %v1791 = vadd.f32 0.0, %v1790
    %v1792 = vpop.f32.mrb[0].mxu0
    %1793 = vmatprep.mubr.f32.mxu0 0.0
    %1794 = vmatmul.mubr.f32.gmra.mrb[0].mxu0 %v1722
    %v1795 = vpop.f32.mrb[0].mxu0
    %v1796 = vadd.f32 0.0, %v1795
    %v1797 = vpop.f32.mrb[0].mxu0
    %1798 = vdwg.mxu0
    %v1799 = vsub.f32 0.0, %v1791
    %v1800 = vsub.f32 0.0, %v1796
    %1803 = vrot.lane.b32.xlu0 %v1799, 112
    %v1804 = vpop.permute.xlu0 %1803
    %1805 = vrot.lane.b32.xlu0 %v1800, 112
    %v1806 = vpop.permute.xlu0 %1805
    %1811 = vrot.lane.b32.xlu0 %v1791, 16
    %v1812 = vpop.permute.xlu0 %1811
    %1813 = vrot.lane.b32.xlu0 %v1796, 16
    %v1814 = vpop.permute.xlu0 %1813
    %v1817 = vsel %vm284, %v1804, %v1812
    %v1818 = vsel %vm284, %v1806, %v1814
    %v1819 = vmul.f32 %v1791, %v148
    %v1820 = vmul.f32 %v1796, %v149
    %v1821 = vmul.f32 %v1817, %v150
    %v1822 = vmul.f32 %v1818, %v151
    %v1823 = vadd.f32 %v1819, %v1821
    %v1824 = vadd.f32 %v1820, %v1822
    %v1825 = vmul.f32 %v1823, 0.35355338
    %v1826 = vmul.f32 %v1824, 0.35355338
    %s1827 = scalar_lea.vmem %s3, 32
    %v1828 = vld [vmem:[%s1827] sm:$0xff]
    %v1829 = vld [vmem:[%s1827 + $0x8] sm:$0xff]
    %v1830 = vld [vmem:[%s1827 + $0x10] sm:$0xff]
    %v1831 = vld [vmem:[%s1827 + $0x18] sm:$0xff]
    %1832 = vmatprep.subr.mxu0 0.0
    %1833 = vmatpush1.msra.mxu0 %v1828
    %1834 = vmatprep.subr.mxu0 0.0
    %1835 = vmatpush1.msra.mxu0 %v1829
    %1836 = vmatprep.subr.mxu0 0.0
    %1837 = vmatpush1.msra.mxu0 %v1830
    %1838 = vmatprep.subr.mxu0 0.0
    %1839 = vmatpush1.msra.mxu0 %v1831
    %1840 = vmatprep.subr.mxu0 0.0
    %1841 = vmatpush1.msra.mxu0 0.0
    %1842 = vmatprep.subr.mxu0 0.0
    %1843 = vmatpush1.msra.mxu0 0.0
    %1844 = vmatprep.subr.mxu0 0.0
    %1845 = vmatpush1.msra.mxu0 0.0
    %1846 = vmatprep.subr.mxu0 0.0
    %1847 = vmatpush1.msra.mxu0 0.0
    %1848 = vmatprep.subr.mxu0 0.0
    %1849 = vmatpush1.msra.mxu0 0.0
    %1850 = vmatprep.subr.mxu0 0.0
    %1851 = vmatpush1.msra.mxu0 0.0
    %1852 = vmatprep.subr.mxu0 0.0
    %1853 = vmatpush1.msra.mxu0 0.0
    %1854 = vmatprep.subr.mxu0 0.0
    %1855 = vmatpush1.msra.mxu0 0.0
    %1856 = vmatprep.subr.mxu0 0.0
    %1857 = vmatpush1.msra.mxu0 0.0
    %1858 = vmatprep.subr.mxu0 0.0
    %1859 = vmatpush1.msra.mxu0 0.0
    %1860 = vmatprep.subr.mxu0 0.0
    %1861 = vmatpush1.msra.mxu0 0.0
    %1862 = vmatprep.subr.mxu0 0.0
    %1863 = vmatpush1.msra.mxu0 0.0
    %1864 = vmatprep.subr.mxu0 0.0
    %1865 = vmatpush1.msra.mxu0 0.0
    %1866 = vmatprep.subr.mxu0 0.0
    %1867 = vmatpush1.msra.mxu0 0.0
    %1868 = vmatprep.subr.mxu0 0.0
    %1869 = vmatpush1.msra.mxu0 0.0
    %1870 = vmatprep.subr.mxu0 0.0
    %1871 = vmatpush1.msra.mxu0 0.0
    %1872 = vmatprep.subr.mxu0 0.0
    %1873 = vmatpush1.msra.mxu0 0.0
    %1874 = vmatprep.subr.mxu0 0.0
    %1875 = vmatpush1.msra.mxu0 0.0
    %1876 = vmatprep.subr.mxu0 0.0
    %1877 = vmatpush1.msra.mxu0 0.0
    %1878 = vmatprep.subr.mxu0 0.0
    %1879 = vmatpush1.msra.mxu0 0.0
    %1880 = vmatprep.subr.mxu0 0.0
    %1881 = vmatpush1.msra.mxu0 0.0
    %1882 = vmatprep.subr.mxu0 0.0
    %1883 = vmatpush1.msra.mxu0 0.0
    %1884 = vmatprep.subr.mxu0 0.0
    %1885 = vmatpush1.msra.mxu0 0.0
    %1886 = vmatprep.subr.mxu0 0.0
    %1887 = vmatpush1.msra.mxu0 0.0
    %1888 = vmatprep.subr.mxu0 0.0
    %1889 = vmatpush1.msra.mxu0 0.0
    %1890 = vmatprep.subr.mxu0 0.0
    %1891 = vmatpush1.msra.mxu0 0.0
    %1892 = vmatprep.subr.mxu0 0.0
    %1893 = vmatpush1.msra.mxu0 0.0
    %1894 = vmatprep.subr.mxu0 0.0
    %1895 = vmatpush1.msra.mxu0 0.0
    %1896 = vmatprep.mubr.f32.mxu0 0.0
    %1897 = vmatmul.mubr.f32.gmra.mrb[0].mxu0 %v1719
    %v1898 = vpop.f32.mrb[0].mxu0
    %v1899 = vadd.f32 0.0, %v1898
    %v1900 = vpop.f32.mrb[0].mxu0
    %1901 = vmatprep.mubr.f32.mxu0 0.0
    %1902 = vmatmul.mubr.f32.gmra.mrb[0].mxu0 %v1722
    %v1903 = vpop.f32.mrb[0].mxu0
    %v1904 = vadd.f32 0.0, %v1903
    %v1905 = vpop.f32.mrb[0].mxu0
    %1906 = vdwg.mxu0
    %v1907 = vsub.f32 0.0, %v1899
    %v1908 = vsub.f32 0.0, %v1904
    %1911 = vrot.lane.b32.xlu0 %v1907, 112
    %v1912 = vpop.permute.xlu0 %1911
    %1913 = vrot.lane.b32.xlu0 %v1908, 112
    %v1914 = vpop.permute.xlu0 %1913
    %1919 = vrot.lane.b32.xlu0 %v1899, 16
    %v1920 = vpop.permute.xlu0 %1919
    %1921 = vrot.lane.b32.xlu0 %v1904, 16
    %v1922 = vpop.permute.xlu0 %1921
    %v1925 = vsel %vm284, %v1912, %v1920
    %v1926 = vsel %vm284, %v1914, %v1922
    %v1927 = vmul.f32 %v1899, %v148
    %v1928 = vmul.f32 %v1904, %v149
    %v1929 = vmul.f32 %v1925, %v150
    %v1930 = vmul.f32 %v1926, %v151
    %v1931 = vadd.f32 %v1927, %v1929
    %v1932 = vadd.f32 %v1928, %v1930
    %s1933 = scalar_lea.vmem %s4, 32
    %v1934 = vld [vmem:[%s1933] sm:$0xff]
    %v1935 = vld [vmem:[%s1933 + $0x8] sm:$0xff]
    %v1936 = vld [vmem:[%s1933 + $0x10] sm:$0xff]
    %v1937 = vld [vmem:[%s1933 + $0x18] sm:$0xff]
    %1938 = vmatprep.subr.mxu0 0.0
    %1939 = vmatpush1.msra.mxu0 %v1934
    %1940 = vmatprep.subr.mxu0 0.0
    %1941 = vmatpush1.msra.mxu0 %v1935
    %1942 = vmatprep.subr.mxu0 0.0
    %1943 = vmatpush1.msra.mxu0 %v1936
    %1944 = vmatprep.subr.mxu0 0.0
    %1945 = vmatpush1.msra.mxu0 %v1937
    %1946 = vmatprep.subr.mxu0 0.0
    %1947 = vmatpush1.msra.mxu0 0.0
    %1948 = vmatprep.subr.mxu0 0.0
    %1949 = vmatpush1.msra.mxu0 0.0
    %1950 = vmatprep.subr.mxu0 0.0
    %1951 = vmatpush1.msra.mxu0 0.0
    %1952 = vmatprep.subr.mxu0 0.0
    %1953 = vmatpush1.msra.mxu0 0.0
    %1954 = vmatprep.subr.mxu0 0.0
    %1955 = vmatpush1.msra.mxu0 0.0
    %1956 = vmatprep.subr.mxu0 0.0
    %1957 = vmatpush1.msra.mxu0 0.0
    %1958 = vmatprep.subr.mxu0 0.0
    %1959 = vmatpush1.msra.mxu0 0.0
    %1960 = vmatprep.subr.mxu0 0.0
    %1961 = vmatpush1.msra.mxu0 0.0
    %1962 = vmatprep.subr.mxu0 0.0
    %1963 = vmatpush1.msra.mxu0 0.0
    %1964 = vmatprep.subr.mxu0 0.0
    %1965 = vmatpush1.msra.mxu0 0.0
    %1966 = vmatprep.subr.mxu0 0.0
    %1967 = vmatpush1.msra.mxu0 0.0
    %1968 = vmatprep.subr.mxu0 0.0
    %1969 = vmatpush1.msra.mxu0 0.0
    %1970 = vmatprep.subr.mxu0 0.0
    %1971 = vmatpush1.msra.mxu0 0.0
    %1972 = vmatprep.subr.mxu0 0.0
    %1973 = vmatpush1.msra.mxu0 0.0
    %1974 = vmatprep.subr.mxu0 0.0
    %1975 = vmatpush1.msra.mxu0 0.0
    %1976 = vmatprep.subr.mxu0 0.0
    %1977 = vmatpush1.msra.mxu0 0.0
    %1978 = vmatprep.subr.mxu0 0.0
    %1979 = vmatpush1.msra.mxu0 0.0
    %1980 = vmatprep.subr.mxu0 0.0
    %1981 = vmatpush1.msra.mxu0 0.0
    %1982 = vmatprep.subr.mxu0 0.0
    %1983 = vmatpush1.msra.mxu0 0.0
    %1984 = vmatprep.subr.mxu0 0.0
    %1985 = vmatpush1.msra.mxu0 0.0
    %1986 = vmatprep.subr.mxu0 0.0
    %1987 = vmatpush1.msra.mxu0 0.0
    %1988 = vmatprep.subr.mxu0 0.0
    %1989 = vmatpush1.msra.mxu0 0.0
    %1990 = vmatprep.subr.mxu0 0.0
    %1991 = vmatpush1.msra.mxu0 0.0
    %1992 = vmatprep.subr.mxu0 0.0
    %1993 = vmatpush1.msra.mxu0 0.0
    %1994 = vmatprep.subr.mxu0 0.0
    %1995 = vmatpush1.msra.mxu0 0.0
    %1996 = vmatprep.subr.mxu0 0.0
    %1997 = vmatpush1.msra.mxu0 0.0
    %1998 = vmatprep.subr.mxu0 0.0
    %1999 = vmatpush1.msra.mxu0 0.0
    %2000 = vmatprep.subr.mxu0 0.0
    %2001 = vmatpush1.msra.mxu0 0.0
    %2002 = vmatprep.mubr.f32.mxu0 0.0
    %2003 = vmatmul.mubr.f32.gmra.mrb[0].mxu0 %v1719
    %v2004 = vpop.f32.mrb[0].mxu0
    %v2005 = vadd.f32 0.0, %v2004
    %v2006 = vpop.f32.mrb[0].mxu0
    %2007 = vmatprep.mubr.f32.mxu0 0.0
    %2008 = vmatmul.mubr.f32.gmra.mrb[0].mxu0 %v1722
    %v2009 = vpop.f32.mrb[0].mxu0
    %v2010 = vadd.f32 0.0, %v2009
    %v2011 = vpop.f32.mrb[0].mxu0
    %2012 = vdwg.mxu0
    %v2013 = vmul.f32 %v1825, %v484
    %v2014 = vmul.f32 %v1826, %v484
    %v2016 = vsel %vm156, %v2013, 0
    %v2019 = vsel %vm156, %v2014, 0
    %v2022 = vsel %vm156, %v1931, 0
    %v2025 = vsel %vm156, %v1932, 0
    %2027 = vmatprep.subr.mxu0 0.0
    %2028 = vmatpush1.xpose.msra.mxu0 %v2022
    %2029 = vmatprep.subr.mxu0 0.0
    %2030 = vmatpush1.xpose.msra.mxu0 %v2025
    %2031 = vmatprep.subr.mxu0 0.0
    %2032 = vmatpush1.xpose.msra.mxu0 0.0
    %2033 = vmatprep.subr.mxu0 0.0
    %2034 = vmatpush1.xpose.msra.mxu0 0.0
    %2035 = vmatprep.subr.mxu0 0.0
    %2036 = vmatpush1.xpose.msra.mxu0 0.0
    %2037 = vmatprep.subr.mxu0 0.0
    %2038 = vmatpush1.xpose.msra.mxu0 0.0
    %2039 = vmatprep.subr.mxu0 0.0
    %2040 = vmatpush1.xpose.msra.mxu0 0.0
    %2041 = vmatprep.subr.mxu0 0.0
    %2042 = vmatpush1.xpose.msra.mxu0 0.0
    %2043 = vmatprep.subr.mxu0 0.0
    %2044 = vmatpush1.xpose.msra.mxu0 0.0
    %2045 = vmatprep.subr.mxu0 0.0
    %2046 = vmatpush1.xpose.msra.mxu0 0.0
    %2047 = vmatprep.subr.mxu0 0.0
    %2048 = vmatpush1.xpose.msra.mxu0 0.0
    %2049 = vmatprep.subr.mxu0 0.0
    %2050 = vmatpush1.xpose.msra.mxu0 0.0
    %2051 = vmatprep.subr.mxu0 0.0
    %2052 = vmatpush1.xpose.msra.mxu0 0.0
    %2053 = vmatprep.subr.mxu0 0.0
    %2054 = vmatpush1.xpose.msra.mxu0 0.0
    %2055 = vmatprep.subr.mxu0 0.0
    %2056 = vmatpush1.xpose.msra.mxu0 0.0
    %2057 = vmatprep.subr.mxu0 0.0
    %2058 = vmatpush1.xpose.msra.mxu0 0.0
    %2059 = vmatprep.subr.mxu0 0.0
    %2060 = vmatpush1.xpose.msra.mxu0 0.0
    %2061 = vmatprep.subr.mxu0 0.0
    %2062 = vmatpush1.xpose.msra.mxu0 0.0
    %2063 = vmatprep.subr.mxu0 0.0
    %2064 = vmatpush1.xpose.msra.mxu0 0.0
    %2065 = vmatprep.subr.mxu0 0.0
    %2066 = vmatpush1.xpose.msra.mxu0 0.0
    %2067 = vmatprep.subr.mxu0 0.0
    %2068 = vmatpush1.xpose.msra.mxu0 0.0
    %2069 = vmatprep.subr.mxu0 0.0
    %2070 = vmatpush1.xpose.msra.mxu0 0.0
    %2071 = vmatprep.subr.mxu0 0.0
    %2072 = vmatpush1.xpose.msra.mxu0 0.0
    %2073 = vmatprep.subr.mxu0 0.0
    %2074 = vmatpush1.xpose.msra.mxu0 0.0
    %2075 = vmatprep.subr.mxu0 0.0
    %2076 = vmatpush1.xpose.msra.mxu0 0.0
    %2077 = vmatprep.subr.mxu0 0.0
    %2078 = vmatpush1.xpose.msra.mxu0 0.0
    %2079 = vmatprep.subr.mxu0 0.0
    %2080 = vmatpush1.xpose.msra.mxu0 0.0
    %2081 = vmatprep.subr.mxu0 0.0
    %2082 = vmatpush1.xpose.msra.mxu0 0.0
    %2083 = vmatprep.subr.mxu0 0.0
    %2084 = vmatpush1.xpose.msra.mxu0 0.0
    %2085 = vmatprep.subr.mxu0 0.0
    %2086 = vmatpush1.xpose.msra.mxu0 0.0
    %2087 = vmatprep.subr.mxu0 0.0
    %2088 = vmatpush1.xpose.msra.mxu0 0.0
    %2089 = vmatprep.subr.mxu0 0.0
    %2090 = vmatpush1.xpose.msra.mxu0 0.0
    %2091 = vmatprep.mubr.f32.mxu0 0.0
    %2092 = vmatmul.mubr.f32.gmra.mrb[0].mxu0 %v2016
    %v2093 = vpop.f32.mrb[0].mxu0
    %v2094 = vadd.f32 %v152, %v2093
    %v2095 = vpop.f32.mrb[0].mxu0
    %2096 = vmatprep.mubr.f32.mxu0 0.0
    %2097 = vmatmul.mubr.f32.gmra.mrb[0].mxu0 %v2019
    %v2098 = vpop.f32.mrb[0].mxu0
    %v2099 = vadd.f32 %v153, %v2098
    %v2100 = vpop.f32.mrb[0].mxu0
    %2101 = vdwg.mxu0
    %v2102 = vsel %vm284, %v2094, -inf
    %2103 = vmax.xlane.f32.xlu0 %v2102
    %v2104 = vpop.xlane.xlu0 %2103
    %v2105 = vsel %vm284, %v2099, -inf
    %2106 = vmax.xlane.f32.xlu0 %v2105
    %v2107 = vpop.xlane.xlu0 %2106
    %v2108 = vsub.f32 %v2094, %v2104
    %v2109 = vsub.f32 %v2099, %v2107
    %v2110 = vmul.f32 %v2108, 1.442695
    %v2111 = vpow.pop %v2110
    %v2112 = vmul.f32 %v2109, 1.442695
    %v2113 = vpow.pop %v2112
    %v2114 = vsel %vm284, %v2111, 0.0
    %2115 = vadd.xlane.f32.xlu0 %v2114
    %v2116 = vpop.xlane.xlu0 %2115
    %v2117 = vsel %vm284, %v2113, 0.0
    %2118 = vadd.xlane.f32.xlu0 %v2117
    %v2119 = vpop.xlane.xlu0 %2118
    %v2120 = vrcp.pop %v2116
    %v2121 = vmul.f32 %v2111, %v2120
    %v2122 = vrcp.pop %v2119
    %v2123 = vmul.f32 %v2113, %v2122
    %v2124 = vmul.f32 %v2005, %v602
    %v2125 = vmul.f32 %v2010, %v602
    %v2126 = vmul.f32 %v1825, %v612
    %v2127 = vmul.f32 %v1826, %v612
    %v2129 = vsel %vm156, %v2126, 0
    %v2132 = vsel %vm156, %v2127, 0
    %2134 = vmatprep.subr.mxu0 0.0
    %2135 = vmatpush1.xpose.msra.mxu0 %v2022
    %2136 = vmatprep.subr.mxu0 0.0
    %2137 = vmatpush1.xpose.msra.mxu0 %v2025
    %2138 = vmatprep.subr.mxu0 0.0
    %2139 = vmatpush1.xpose.msra.mxu0 0.0
    %2140 = vmatprep.subr.mxu0 0.0
    %2141 = vmatpush1.xpose.msra.mxu0 0.0
    %2142 = vmatprep.subr.mxu0 0.0
    %2143 = vmatpush1.xpose.msra.mxu0 0.0
    %2144 = vmatprep.subr.mxu0 0.0
    %2145 = vmatpush1.xpose.msra.mxu0 0.0
    %2146 = vmatprep.subr.mxu0 0.0
    %2147 = vmatpush1.xpose.msra.mxu0 0.0
    %2148 = vmatprep.subr.mxu0 0.0
    %2149 = vmatpush1.xpose.msra.mxu0 0.0
    %2150 = vmatprep.subr.mxu0 0.0
    %2151 = vmatpush1.xpose.msra.mxu0 0.0
    %2152 = vmatprep.subr.mxu0 0.0
    %2153 = vmatpush1.xpose.msra.mxu0 0.0
    %2154 = vmatprep.subr.mxu0 0.0
    %2155 = vmatpush1.xpose.msra.mxu0 0.0
    %2156 = vmatprep.subr.mxu0 0.0
    %2157 = vmatpush1.xpose.msra.mxu0 0.0
    %2158 = vmatprep.subr.mxu0 0.0
    %2159 = vmatpush1.xpose.msra.mxu0 0.0
    %2160 = vmatprep.subr.mxu0 0.0
    %2161 = vmatpush1.xpose.msra.mxu0 0.0
    %2162 = vmatprep.subr.mxu0 0.0
    %2163 = vmatpush1.xpose.msra.mxu0 0.0
    %2164 = vmatprep.subr.mxu0 0.0
    %2165 = vmatpush1.xpose.msra.mxu0 0.0
    %2166 = vmatprep.subr.mxu0 0.0
    %2167 = vmatpush1.xpose.msra.mxu0 0.0
    %2168 = vmatprep.subr.mxu0 0.0
    %2169 = vmatpush1.xpose.msra.mxu0 0.0
    %2170 = vmatprep.subr.mxu0 0.0
    %2171 = vmatpush1.xpose.msra.mxu0 0.0
    %2172 = vmatprep.subr.mxu0 0.0
    %2173 = vmatpush1.xpose.msra.mxu0 0.0
    %2174 = vmatprep.subr.mxu0 0.0
    %2175 = vmatpush1.xpose.msra.mxu0 0.0
    %2176 = vmatprep.subr.mxu0 0.0
    %2177 = vmatpush1.xpose.msra.mxu0 0.0
    %2178 = vmatprep.subr.mxu0 0.0
    %2179 = vmatpush1.xpose.msra.mxu0 0.0
    %2180 = vmatprep.subr.mxu0 0.0
    %2181 = vmatpush1.xpose.msra.mxu0 0.0
    %2182 = vmatprep.subr.mxu0 0.0
    %2183 = vmatpush1.xpose.msra.mxu0 0.0
    %2184 = vmatprep.subr.mxu0 0.0
    %2185 = vmatpush1.xpose.msra.mxu0 0.0
    %2186 = vmatprep.subr.mxu0 0.0
    %2187 = vmatpush1.xpose.msra.mxu0 0.0
    %2188 = vmatprep.subr.mxu0 0.0
    %2189 = vmatpush1.xpose.msra.mxu0 0.0
    %2190 = vmatprep.subr.mxu0 0.0
    %2191 = vmatpush1.xpose.msra.mxu0 0.0
    %2192 = vmatprep.subr.mxu0 0.0
    %2193 = vmatpush1.xpose.msra.mxu0 0.0
    %2194 = vmatprep.subr.mxu0 0.0
    %2195 = vmatpush1.xpose.msra.mxu0 0.0
    %2196 = vmatprep.subr.mxu0 0.0
    %2197 = vmatpush1.xpose.msra.mxu0 0.0
    %2198 = vmatprep.mubr.f32.mxu0 0.0
    %2199 = vmatmul.mubr.f32.gmra.mrb[0].mxu0 %v2129
    %v2200 = vpop.f32.mrb[0].mxu0
    %v2201 = vadd.f32 %v152, %v2200
    %v2202 = vpop.f32.mrb[0].mxu0
    %2203 = vmatprep.mubr.f32.mxu0 0.0
    %2204 = vmatmul.mubr.f32.gmra.mrb[0].mxu0 %v2132
    %v2205 = vpop.f32.mrb[0].mxu0
    %v2206 = vadd.f32 %v153, %v2205
    %v2207 = vpop.f32.mrb[0].mxu0
    %2208 = vdwg.mxu0
    %v2209 = vsel %vm284, %v2201, -inf
    %2210 = vmax.xlane.f32.xlu0 %v2209
    %v2211 = vpop.xlane.xlu0 %2210
    %v2212 = vsel %vm284, %v2206, -inf
    %2213 = vmax.xlane.f32.xlu0 %v2212
    %v2214 = vpop.xlane.xlu0 %2213
    %v2215 = vsub.f32 %v2201, %v2211
    %v2216 = vsub.f32 %v2206, %v2214
    %v2217 = vmul.f32 %v2215, 1.442695
    %v2218 = vpow.pop %v2217
    %v2219 = vmul.f32 %v2216, 1.442695
    %v2220 = vpow.pop %v2219
    %v2221 = vsel %vm284, %v2218, 0.0
    %2222 = vadd.xlane.f32.xlu0 %v2221
    %v2223 = vpop.xlane.xlu0 %2222
    %v2224 = vsel %vm284, %v2220, 0.0
    %2225 = vadd.xlane.f32.xlu0 %v2224
    %v2226 = vpop.xlane.xlu0 %2225
    %v2227 = vrcp.pop %v2223
    %v2228 = vmul.f32 %v2218, %v2227
    %v2229 = vrcp.pop %v2226
    %v2230 = vmul.f32 %v2220, %v2229
    %v2231 = vmul.f32 %v2005, %v725
    %v2232 = vmul.f32 %v2010, %v725
    %v2234 = vsel %vm284, %v2228, 0
    %v2237 = vsel %vm284, %v2230, 0
    %2239 = vmatprep.subr.mxu0 0.0
    %2240 = vmatpush1.msra.mxu0 %v2231
    %2241 = vmatprep.subr.mxu0 0.0
    %2242 = vmatpush1.msra.mxu0 %v2232
    %2243 = vmatprep.subr.mxu0 0.0
    %2244 = vmatpush1.msra.mxu0 0.0
    %2245 = vmatprep.subr.mxu0 0.0
    %2246 = vmatpush1.msra.mxu0 0.0
    %2247 = vmatprep.subr.mxu0 0.0
    %2248 = vmatpush1.msra.mxu0 0.0
    %2249 = vmatprep.subr.mxu0 0.0
    %2250 = vmatpush1.msra.mxu0 0.0
    %2251 = vmatprep.subr.mxu0 0.0
    %2252 = vmatpush1.msra.mxu0 0.0
    %2253 = vmatprep.subr.mxu0 0.0
    %2254 = vmatpush1.msra.mxu0 0.0
    %2255 = vmatprep.subr.mxu0 0.0
    %2256 = vmatpush1.msra.mxu0 0.0
    %2257 = vmatprep.subr.mxu0 0.0
    %2258 = vmatpush1.msra.mxu0 0.0
    %2259 = vmatprep.subr.mxu0 0.0
    %2260 = vmatpush1.msra.mxu0 0.0
    %2261 = vmatprep.subr.mxu0 0.0
    %2262 = vmatpush1.msra.mxu0 0.0
    %2263 = vmatprep.subr.mxu0 0.0
    %2264 = vmatpush1.msra.mxu0 0.0
    %2265 = vmatprep.subr.mxu0 0.0
    %2266 = vmatpush1.msra.mxu0 0.0
    %2267 = vmatprep.subr.mxu0 0.0
    %2268 = vmatpush1.msra.mxu0 0.0
    %2269 = vmatprep.subr.mxu0 0.0
    %2270 = vmatpush1.msra.mxu0 0.0
    %2271 = vmatprep.subr.mxu0 0.0
    %2272 = vmatpush1.msra.mxu0 0.0
    %2273 = vmatprep.subr.mxu0 0.0
    %2274 = vmatpush1.msra.mxu0 0.0
    %2275 = vmatprep.subr.mxu0 0.0
    %2276 = vmatpush1.msra.mxu0 0.0
    %2277 = vmatprep.subr.mxu0 0.0
    %2278 = vmatpush1.msra.mxu0 0.0
    %2279 = vmatprep.subr.mxu0 0.0
    %2280 = vmatpush1.msra.mxu0 0.0
    %2281 = vmatprep.subr.mxu0 0.0
    %2282 = vmatpush1.msra.mxu0 0.0
    %2283 = vmatprep.subr.mxu0 0.0
    %2284 = vmatpush1.msra.mxu0 0.0
    %2285 = vmatprep.subr.mxu0 0.0
    %2286 = vmatpush1.msra.mxu0 0.0
    %2287 = vmatprep.subr.mxu0 0.0
    %2288 = vmatpush1.msra.mxu0 0.0
    %2289 = vmatprep.subr.mxu0 0.0
    %2290 = vmatpush1.msra.mxu0 0.0
    %2291 = vmatprep.subr.mxu0 0.0
    %2292 = vmatpush1.msra.mxu0 0.0
    %2293 = vmatprep.subr.mxu0 0.0
    %2294 = vmatpush1.msra.mxu0 0.0
    %2295 = vmatprep.subr.mxu0 0.0
    %2296 = vmatpush1.msra.mxu0 0.0
    %2297 = vmatprep.subr.mxu0 0.0
    %2298 = vmatpush1.msra.mxu0 0.0
    %2299 = vmatprep.subr.mxu0 0.0
    %2300 = vmatpush1.msra.mxu0 0.0
    %2301 = vmatprep.subr.mxu0 0.0
    %2302 = vmatpush1.msra.mxu0 0.0
    %2303 = vmatprep.mubr.f32.mxu0 0.0
    %2304 = vmatmul.mubr.f32.gmra.mrb[0].mxu0 %v2234
    %v2305 = vpop.f32.mrb[0].mxu0
    %v2306 = vadd.f32 0.0, %v2305
    %v2307 = vpop.f32.mrb[0].mxu0
    %2308 = vmatprep.mubr.f32.mxu0 0.0
    %2309 = vmatmul.mubr.f32.gmra.mrb[0].mxu0 %v2237
    %v2310 = vpop.f32.mrb[0].mxu0
    %v2311 = vadd.f32 0.0, %v2310
    %v2312 = vpop.f32.mrb[0].mxu0
    %2313 = vdwg.mxu0
    %v2315 = vsel %vm284, %v2121, 0
    %v2318 = vsel %vm284, %v2123, 0
    %2320 = vmatprep.subr.mxu0 0.0
    %2321 = vmatpush1.msra.mxu0 %v2124
    %2322 = vmatprep.subr.mxu0 0.0
    %2323 = vmatpush1.msra.mxu0 %v2125
    %2324 = vmatprep.subr.mxu0 0.0
    %2325 = vmatpush1.msra.mxu0 0.0
    %2326 = vmatprep.subr.mxu0 0.0
    %2327 = vmatpush1.msra.mxu0 0.0
    %2328 = vmatprep.subr.mxu0 0.0
    %2329 = vmatpush1.msra.mxu0 0.0
    %2330 = vmatprep.subr.mxu0 0.0
    %2331 = vmatpush1.msra.mxu0 0.0
    %2332 = vmatprep.subr.mxu0 0.0
    %2333 = vmatpush1.msra.mxu0 0.0
    %2334 = vmatprep.subr.mxu0 0.0
    %2335 = vmatpush1.msra.mxu0 0.0
    %2336 = vmatprep.subr.mxu0 0.0
    %2337 = vmatpush1.msra.mxu0 0.0
    %2338 = vmatprep.subr.mxu0 0.0
    %2339 = vmatpush1.msra.mxu0 0.0
    %2340 = vmatprep.subr.mxu0 0.0
    %2341 = vmatpush1.msra.mxu0 0.0
    %2342 = vmatprep.subr.mxu0 0.0
    %2343 = vmatpush1.msra.mxu0 0.0
    %2344 = vmatprep.subr.mxu0 0.0
    %2345 = vmatpush1.msra.mxu0 0.0
    %2346 = vmatprep.subr.mxu0 0.0
    %2347 = vmatpush1.msra.mxu0 0.0
    %2348 = vmatprep.subr.mxu0 0.0
    %2349 = vmatpush1.msra.mxu0 0.0
    %2350 = vmatprep.subr.mxu0 0.0
    %2351 = vmatpush1.msra.mxu0 0.0
    %2352 = vmatprep.subr.mxu0 0.0
    %2353 = vmatpush1.msra.mxu0 0.0
    %2354 = vmatprep.subr.mxu0 0.0
    %2355 = vmatpush1.msra.mxu0 0.0
    %2356 = vmatprep.subr.mxu0 0.0
    %2357 = vmatpush1.msra.mxu0 0.0
    %2358 = vmatprep.subr.mxu0 0.0
    %2359 = vmatpush1.msra.mxu0 0.0
    %2360 = vmatprep.subr.mxu0 0.0
    %2361 = vmatpush1.msra.mxu0 0.0
    %2362 = vmatprep.subr.mxu0 0.0
    %2363 = vmatpush1.msra.mxu0 0.0
    %2364 = vmatprep.subr.mxu0 0.0
    %2365 = vmatpush1.msra.mxu0 0.0
    %2366 = vmatprep.subr.mxu0 0.0
    %2367 = vmatpush1.msra.mxu0 0.0
    %2368 = vmatprep.subr.mxu0 0.0
    %2369 = vmatpush1.msra.mxu0 0.0
    %2370 = vmatprep.subr.mxu0 0.0
    %2371 = vmatpush1.msra.mxu0 0.0
    %2372 = vmatprep.subr.mxu0 0.0
    %2373 = vmatpush1.msra.mxu0 0.0
    %2374 = vmatprep.subr.mxu0 0.0
    %2375 = vmatpush1.msra.mxu0 0.0
    %2376 = vmatprep.subr.mxu0 0.0
    %2377 = vmatpush1.msra.mxu0 0.0
    %2378 = vmatprep.subr.mxu0 0.0
    %2379 = vmatpush1.msra.mxu0 0.0
    %2380 = vmatprep.subr.mxu0 0.0
    %2381 = vmatpush1.msra.mxu0 0.0
    %2382 = vmatprep.subr.mxu0 0.0
    %2383 = vmatpush1.msra.mxu0 0.0
    %2384 = vmatprep.mubr.f32.mxu0 0.0
    %2385 = vmatmul.mubr.f32.gmra.mrb[0].mxu0 %v2315
    %v2386 = vpop.f32.mrb[0].mxu0
    %v2387 = vadd.f32 %v2306, %v2386
    %v2388 = vpop.f32.mrb[0].mxu0
    %2389 = vmatprep.mubr.f32.mxu0 0.0
    %2390 = vmatmul.mubr.f32.gmra.mrb[0].mxu0 %v2318
    %v2391 = vpop.f32.mrb[0].mxu0
    %v2392 = vadd.f32 %v2311, %v2391
    %v2393 = vpop.f32.mrb[0].mxu0
    %2394 = vdwg.mxu0
    %v2395 = vmul.f32 %v1825, %v897
    %v2396 = vmul.f32 %v1826, %v897
    %v2398 = vsel %vm156, %v2395, 0
    %v2401 = vsel %vm156, %v2396, 0
    %2403 = vmatprep.subr.mxu0 0.0
    %2404 = vmatpush1.xpose.msra.mxu0 %v2022
    %2405 = vmatprep.subr.mxu0 0.0
    %2406 = vmatpush1.xpose.msra.mxu0 %v2025
    %2407 = vmatprep.subr.mxu0 0.0
    %2408 = vmatpush1.xpose.msra.mxu0 0.0
    %2409 = vmatprep.subr.mxu0 0.0
    %2410 = vmatpush1.xpose.msra.mxu0 0.0
    %2411 = vmatprep.subr.mxu0 0.0
    %2412 = vmatpush1.xpose.msra.mxu0 0.0
    %2413 = vmatprep.subr.mxu0 0.0
    %2414 = vmatpush1.xpose.msra.mxu0 0.0
    %2415 = vmatprep.subr.mxu0 0.0
    %2416 = vmatpush1.xpose.msra.mxu0 0.0
    %2417 = vmatprep.subr.mxu0 0.0
    %2418 = vmatpush1.xpose.msra.mxu0 0.0
    %2419 = vmatprep.subr.mxu0 0.0
    %2420 = vmatpush1.xpose.msra.mxu0 0.0
    %2421 = vmatprep.subr.mxu0 0.0
    %2422 = vmatpush1.xpose.msra.mxu0 0.0
    %2423 = vmatprep.subr.mxu0 0.0
    %2424 = vmatpush1.xpose.msra.mxu0 0.0
    %2425 = vmatprep.subr.mxu0 0.0
    %2426 = vmatpush1.xpose.msra.mxu0 0.0
    %2427 = vmatprep.subr.mxu0 0.0
    %2428 = vmatpush1.xpose.msra.mxu0 0.0
    %2429 = vmatprep.subr.mxu0 0.0
    %2430 = vmatpush1.xpose.msra.mxu0 0.0
    %2431 = vmatprep.subr.mxu0 0.0
    %2432 = vmatpush1.xpose.msra.mxu0 0.0
    %2433 = vmatprep.subr.mxu0 0.0
    %2434 = vmatpush1.xpose.msra.mxu0 0.0
    %2435 = vmatprep.subr.mxu0 0.0
    %2436 = vmatpush1.xpose.msra.mxu0 0.0
    %2437 = vmatprep.subr.mxu0 0.0
    %2438 = vmatpush1.xpose.msra.mxu0 0.0
    %2439 = vmatprep.subr.mxu0 0.0
    %2440 = vmatpush1.xpose.msra.mxu0 0.0
    %2441 = vmatprep.subr.mxu0 0.0
    %2442 = vmatpush1.xpose.msra.mxu0 0.0
    %2443 = vmatprep.subr.mxu0 0.0
    %2444 = vmatpush1.xpose.msra.mxu0 0.0
    %2445 = vmatprep.subr.mxu0 0.0
    %2446 = vmatpush1.xpose.msra.mxu0 0.0
    %2447 = vmatprep.subr.mxu0 0.0
    %2448 = vmatpush1.xpose.msra.mxu0 0.0
    %2449 = vmatprep.subr.mxu0 0.0
    %2450 = vmatpush1.xpose.msra.mxu0 0.0
    %2451 = vmatprep.subr.mxu0 0.0
    %2452 = vmatpush1.xpose.msra.mxu0 0.0
    %2453 = vmatprep.subr.mxu0 0.0
    %2454 = vmatpush1.xpose.msra.mxu0 0.0
    %2455 = vmatprep.subr.mxu0 0.0
    %2456 = vmatpush1.xpose.msra.mxu0 0.0
    %2457 = vmatprep.subr.mxu0 0.0
    %2458 = vmatpush1.xpose.msra.mxu0 0.0
    %2459 = vmatprep.subr.mxu0 0.0
    %2460 = vmatpush1.xpose.msra.mxu0 0.0
    %2461 = vmatprep.subr.mxu0 0.0
    %2462 = vmatpush1.xpose.msra.mxu0 0.0
    %2463 = vmatprep.subr.mxu0 0.0
    %2464 = vmatpush1.xpose.msra.mxu0 0.0
    %2465 = vmatprep.subr.mxu0 0.0
    %2466 = vmatpush1.xpose.msra.mxu0 0.0
    %2467 = vmatprep.mubr.f32.mxu0 0.0
    %2468 = vmatmul.mubr.f32.gmra.mrb[0].mxu0 %v2398
    %v2469 = vpop.f32.mrb[0].mxu0
    %v2470 = vadd.f32 %v152, %v2469
    %v2471 = vpop.f32.mrb[0].mxu0
    %2472 = vmatprep.mubr.f32.mxu0 0.0
    %2473 = vmatmul.mubr.f32.gmra.mrb[0].mxu0 %v2401
    %v2474 = vpop.f32.mrb[0].mxu0
    %v2475 = vadd.f32 %v153, %v2474
    %v2476 = vpop.f32.mrb[0].mxu0
    %2477 = vdwg.mxu0
    %v2478 = vsel %vm284, %v2470, -inf
    %2479 = vmax.xlane.f32.xlu0 %v2478
    %v2480 = vpop.xlane.xlu0 %2479
    %v2481 = vsel %vm284, %v2475, -inf
    %2482 = vmax.xlane.f32.xlu0 %v2481
    %v2483 = vpop.xlane.xlu0 %2482
    %v2484 = vsub.f32 %v2470, %v2480
    %v2485 = vsub.f32 %v2475, %v2483
    %v2486 = vmul.f32 %v2484, 1.442695
    %v2487 = vpow.pop %v2486
    %v2488 = vmul.f32 %v2485, 1.442695
    %v2489 = vpow.pop %v2488
    %v2490 = vsel %vm284, %v2487, 0.0
    %2491 = vadd.xlane.f32.xlu0 %v2490
    %v2492 = vpop.xlane.xlu0 %2491
    %v2493 = vsel %vm284, %v2489, 0.0
    %2494 = vadd.xlane.f32.xlu0 %v2493
    %v2495 = vpop.xlane.xlu0 %2494
    %v2496 = vrcp.pop %v2492
    %v2497 = vmul.f32 %v2487, %v2496
    %v2498 = vrcp.pop %v2495
    %v2499 = vmul.f32 %v2489, %v2498
    %v2500 = vmul.f32 %v2005, %v1010
    %v2501 = vmul.f32 %v2010, %v1010
    %v2503 = vsel %vm284, %v2497, 0
    %v2506 = vsel %vm284, %v2499, 0
    %2508 = vmatprep.subr.mxu0 0.0
    %2509 = vmatpush1.msra.mxu0 %v2500
    %2510 = vmatprep.subr.mxu0 0.0
    %2511 = vmatpush1.msra.mxu0 %v2501
    %2512 = vmatprep.subr.mxu0 0.0
    %2513 = vmatpush1.msra.mxu0 0.0
    %2514 = vmatprep.subr.mxu0 0.0
    %2515 = vmatpush1.msra.mxu0 0.0
    %2516 = vmatprep.subr.mxu0 0.0
    %2517 = vmatpush1.msra.mxu0 0.0
    %2518 = vmatprep.subr.mxu0 0.0
    %2519 = vmatpush1.msra.mxu0 0.0
    %2520 = vmatprep.subr.mxu0 0.0
    %2521 = vmatpush1.msra.mxu0 0.0
    %2522 = vmatprep.subr.mxu0 0.0
    %2523 = vmatpush1.msra.mxu0 0.0
    %2524 = vmatprep.subr.mxu0 0.0
    %2525 = vmatpush1.msra.mxu0 0.0
    %2526 = vmatprep.subr.mxu0 0.0
    %2527 = vmatpush1.msra.mxu0 0.0
    %2528 = vmatprep.subr.mxu0 0.0
    %2529 = vmatpush1.msra.mxu0 0.0
    %2530 = vmatprep.subr.mxu0 0.0
    %2531 = vmatpush1.msra.mxu0 0.0
    %2532 = vmatprep.subr.mxu0 0.0
    %2533 = vmatpush1.msra.mxu0 0.0
    %2534 = vmatprep.subr.mxu0 0.0
    %2535 = vmatpush1.msra.mxu0 0.0
    %2536 = vmatprep.subr.mxu0 0.0
    %2537 = vmatpush1.msra.mxu0 0.0
    %2538 = vmatprep.subr.mxu0 0.0
    %2539 = vmatpush1.msra.mxu0 0.0
    %2540 = vmatprep.subr.mxu0 0.0
    %2541 = vmatpush1.msra.mxu0 0.0
    %2542 = vmatprep.subr.mxu0 0.0
    %2543 = vmatpush1.msra.mxu0 0.0
    %2544 = vmatprep.subr.mxu0 0.0
    %2545 = vmatpush1.msra.mxu0 0.0
    %2546 = vmatprep.subr.mxu0 0.0
    %2547 = vmatpush1.msra.mxu0 0.0
    %2548 = vmatprep.subr.mxu0 0.0
    %2549 = vmatpush1.msra.mxu0 0.0
    %2550 = vmatprep.subr.mxu0 0.0
    %2551 = vmatpush1.msra.mxu0 0.0
    %2552 = vmatprep.subr.mxu0 0.0
    %2553 = vmatpush1.msra.mxu0 0.0
    %2554 = vmatprep.subr.mxu0 0.0
    %2555 = vmatpush1.msra.mxu0 0.0
    %2556 = vmatprep.subr.mxu0 0.0
    %2557 = vmatpush1.msra.mxu0 0.0
    %2558 = vmatprep.subr.mxu0 0.0
    %2559 = vmatpush1.msra.mxu0 0.0
    %2560 = vmatprep.subr.mxu0 0.0
    %2561 = vmatpush1.msra.mxu0 0.0
    %2562 = vmatprep.subr.mxu0 0.0
    %2563 = vmatpush1.msra.mxu0 0.0
    %2564 = vmatprep.subr.mxu0 0.0
    %2565 = vmatpush1.msra.mxu0 0.0
    %2566 = vmatprep.subr.mxu0 0.0
    %2567 = vmatpush1.msra.mxu0 0.0
    %2568 = vmatprep.subr.mxu0 0.0
    %2569 = vmatpush1.msra.mxu0 0.0
    %2570 = vmatprep.subr.mxu0 0.0
    %2571 = vmatpush1.msra.mxu0 0.0
    %2572 = vmatprep.mubr.f32.mxu0 0.0
    %2573 = vmatmul.mubr.f32.gmra.mrb[0].mxu0 %v2503
    %v2574 = vpop.f32.mrb[0].mxu0
    %v2575 = vadd.f32 0.0, %v2574
    %v2576 = vpop.f32.mrb[0].mxu0
    %2577 = vmatprep.mubr.f32.mxu0 0.0
    %2578 = vmatmul.mubr.f32.gmra.mrb[0].mxu0 %v2506
    %v2579 = vpop.f32.mrb[0].mxu0
    %v2580 = vadd.f32 0.0, %v2579
    %v2581 = vpop.f32.mrb[0].mxu0
    %2582 = vdwg.mxu0
    %v2583 = vadd.f32 %v2387, %v2575
    %v2584 = vadd.f32 %v2392, %v2580
    %v2585 = vmul.f32 %v1825, %v1103
    %v2586 = vmul.f32 %v1826, %v1103
    %v2588 = vsel %vm156, %v2585, 0
    %v2591 = vsel %vm156, %v2586, 0
    %2593 = vmatprep.subr.mxu0 0.0
    %2594 = vmatpush1.xpose.msra.mxu0 %v2022
    %2595 = vmatprep.subr.mxu0 0.0
    %2596 = vmatpush1.xpose.msra.mxu0 %v2025
    %2597 = vmatprep.subr.mxu0 0.0
    %2598 = vmatpush1.xpose.msra.mxu0 0.0
    %2599 = vmatprep.subr.mxu0 0.0
    %2600 = vmatpush1.xpose.msra.mxu0 0.0
    %2601 = vmatprep.subr.mxu0 0.0
    %2602 = vmatpush1.xpose.msra.mxu0 0.0
    %2603 = vmatprep.subr.mxu0 0.0
    %2604 = vmatpush1.xpose.msra.mxu0 0.0
    %2605 = vmatprep.subr.mxu0 0.0
    %2606 = vmatpush1.xpose.msra.mxu0 0.0
    %2607 = vmatprep.subr.mxu0 0.0
    %2608 = vmatpush1.xpose.msra.mxu0 0.0
    %2609 = vmatprep.subr.mxu0 0.0
    %2610 = vmatpush1.xpose.msra.mxu0 0.0
    %2611 = vmatprep.subr.mxu0 0.0
    %2612 = vmatpush1.xpose.msra.mxu0 0.0
    %2613 = vmatprep.subr.mxu0 0.0
    %2614 = vmatpush1.xpose.msra.mxu0 0.0
    %2615 = vmatprep.subr.mxu0 0.0
    %2616 = vmatpush1.xpose.msra.mxu0 0.0
    %2617 = vmatprep.subr.mxu0 0.0
    %2618 = vmatpush1.xpose.msra.mxu0 0.0
    %2619 = vmatprep.subr.mxu0 0.0
    %2620 = vmatpush1.xpose.msra.mxu0 0.0
    %2621 = vmatprep.subr.mxu0 0.0
    %2622 = vmatpush1.xpose.msra.mxu0 0.0
    %2623 = vmatprep.subr.mxu0 0.0
    %2624 = vmatpush1.xpose.msra.mxu0 0.0
    %2625 = vmatprep.subr.mxu0 0.0
    %2626 = vmatpush1.xpose.msra.mxu0 0.0
    %2627 = vmatprep.subr.mxu0 0.0
    %2628 = vmatpush1.xpose.msra.mxu0 0.0
    %2629 = vmatprep.subr.mxu0 0.0
    %2630 = vmatpush1.xpose.msra.mxu0 0.0
    %2631 = vmatprep.subr.mxu0 0.0
    %2632 = vmatpush1.xpose.msra.mxu0 0.0
    %2633 = vmatprep.subr.mxu0 0.0
    %2634 = vmatpush1.xpose.msra.mxu0 0.0
    %2635 = vmatprep.subr.mxu0 0.0
    %2636 = vmatpush1.xpose.msra.mxu0 0.0
    %2637 = vmatprep.subr.mxu0 0.0
    %2638 = vmatpush1.xpose.msra.mxu0 0.0
    %2639 = vmatprep.subr.mxu0 0.0
    %2640 = vmatpush1.xpose.msra.mxu0 0.0
    %2641 = vmatprep.subr.mxu0 0.0
    %2642 = vmatpush1.xpose.msra.mxu0 0.0
    %2643 = vmatprep.subr.mxu0 0.0
    %2644 = vmatpush1.xpose.msra.mxu0 0.0
    %2645 = vmatprep.subr.mxu0 0.0
    %2646 = vmatpush1.xpose.msra.mxu0 0.0
    %2647 = vmatprep.subr.mxu0 0.0
    %2648 = vmatpush1.xpose.msra.mxu0 0.0
    %2649 = vmatprep.subr.mxu0 0.0
    %2650 = vmatpush1.xpose.msra.mxu0 0.0
    %2651 = vmatprep.subr.mxu0 0.0
    %2652 = vmatpush1.xpose.msra.mxu0 0.0
    %2653 = vmatprep.subr.mxu0 0.0
    %2654 = vmatpush1.xpose.msra.mxu0 0.0
    %2655 = vmatprep.subr.mxu0 0.0
    %2656 = vmatpush1.xpose.msra.mxu0 0.0
    %2657 = vmatprep.mubr.f32.mxu0 0.0
    %2658 = vmatmul.mubr.f32.gmra.mrb[0].mxu0 %v2588
    %v2659 = vpop.f32.mrb[0].mxu0
    %v2660 = vadd.f32 %v152, %v2659
    %v2661 = vpop.f32.mrb[0].mxu0
    %2662 = vmatprep.mubr.f32.mxu0 0.0
    %2663 = vmatmul.mubr.f32.gmra.mrb[0].mxu0 %v2591
    %v2664 = vpop.f32.mrb[0].mxu0
    %v2665 = vadd.f32 %v153, %v2664
    %v2666 = vpop.f32.mrb[0].mxu0
    %2667 = vdwg.mxu0
    %v2668 = vsel %vm284, %v2660, -inf
    %2669 = vmax.xlane.f32.xlu0 %v2668
    %v2670 = vpop.xlane.xlu0 %2669
    %v2671 = vsel %vm284, %v2665, -inf
    %2672 = vmax.xlane.f32.xlu0 %v2671
    %v2673 = vpop.xlane.xlu0 %2672
    %v2674 = vsub.f32 %v2660, %v2670
    %v2675 = vsub.f32 %v2665, %v2673
    %v2676 = vmul.f32 %v2674, 1.442695
    %v2677 = vpow.pop %v2676
    %v2678 = vmul.f32 %v2675, 1.442695
    %v2679 = vpow.pop %v2678
    %v2680 = vsel %vm284, %v2677, 0.0
    %2681 = vadd.xlane.f32.xlu0 %v2680
    %v2682 = vpop.xlane.xlu0 %2681
    %v2683 = vsel %vm284, %v2679, 0.0
    %2684 = vadd.xlane.f32.xlu0 %v2683
    %v2685 = vpop.xlane.xlu0 %2684
    %v2686 = vrcp.pop %v2682
    %v2687 = vmul.f32 %v2677, %v2686
    %v2688 = vrcp.pop %v2685
    %v2689 = vmul.f32 %v2679, %v2688
    %v2690 = vmul.f32 %v2005, %v1216
    %v2691 = vmul.f32 %v2010, %v1216
    %v2693 = vsel %vm284, %v2687, 0
    %v2696 = vsel %vm284, %v2689, 0
    %2698 = vmatprep.subr.mxu0 0.0
    %2699 = vmatpush1.msra.mxu0 %v2690
    %2700 = vmatprep.subr.mxu0 0.0
    %2701 = vmatpush1.msra.mxu0 %v2691
    %2702 = vmatprep.subr.mxu0 0.0
    %2703 = vmatpush1.msra.mxu0 0.0
    %2704 = vmatprep.subr.mxu0 0.0
    %2705 = vmatpush1.msra.mxu0 0.0
    %2706 = vmatprep.subr.mxu0 0.0
    %2707 = vmatpush1.msra.mxu0 0.0
    %2708 = vmatprep.subr.mxu0 0.0
    %2709 = vmatpush1.msra.mxu0 0.0
    %2710 = vmatprep.subr.mxu0 0.0
    %2711 = vmatpush1.msra.mxu0 0.0
    %2712 = vmatprep.subr.mxu0 0.0
    %2713 = vmatpush1.msra.mxu0 0.0
    %2714 = vmatprep.subr.mxu0 0.0
    %2715 = vmatpush1.msra.mxu0 0.0
    %2716 = vmatprep.subr.mxu0 0.0
    %2717 = vmatpush1.msra.mxu0 0.0
    %2718 = vmatprep.subr.mxu0 0.0
    %2719 = vmatpush1.msra.mxu0 0.0
    %2720 = vmatprep.subr.mxu0 0.0
    %2721 = vmatpush1.msra.mxu0 0.0
    %2722 = vmatprep.subr.mxu0 0.0
    %2723 = vmatpush1.msra.mxu0 0.0
    %2724 = vmatprep.subr.mxu0 0.0
    %2725 = vmatpush1.msra.mxu0 0.0
    %2726 = vmatprep.subr.mxu0 0.0
    %2727 = vmatpush1.msra.mxu0 0.0
    %2728 = vmatprep.subr.mxu0 0.0
    %2729 = vmatpush1.msra.mxu0 0.0
    %2730 = vmatprep.subr.mxu0 0.0
    %2731 = vmatpush1.msra.mxu0 0.0
    %2732 = vmatprep.subr.mxu0 0.0
    %2733 = vmatpush1.msra.mxu0 0.0
    %2734 = vmatprep.subr.mxu0 0.0
    %2735 = vmatpush1.msra.mxu0 0.0
    %2736 = vmatprep.subr.mxu0 0.0
    %2737 = vmatpush1.msra.mxu0 0.0
    %2738 = vmatprep.subr.mxu0 0.0
    %2739 = vmatpush1.msra.mxu0 0.0
    %2740 = vmatprep.subr.mxu0 0.0
    %2741 = vmatpush1.msra.mxu0 0.0
    %2742 = vmatprep.subr.mxu0 0.0
    %2743 = vmatpush1.msra.mxu0 0.0
    %2744 = vmatprep.subr.mxu0 0.0
    %2745 = vmatpush1.msra.mxu0 0.0
    %2746 = vmatprep.subr.mxu0 0.0
    %2747 = vmatpush1.msra.mxu0 0.0
    %2748 = vmatprep.subr.mxu0 0.0
    %2749 = vmatpush1.msra.mxu0 0.0
    %2750 = vmatprep.subr.mxu0 0.0
    %2751 = vmatpush1.msra.mxu0 0.0
    %2752 = vmatprep.subr.mxu0 0.0
    %2753 = vmatpush1.msra.mxu0 0.0
    %2754 = vmatprep.subr.mxu0 0.0
    %2755 = vmatpush1.msra.mxu0 0.0
    %2756 = vmatprep.subr.mxu0 0.0
    %2757 = vmatpush1.msra.mxu0 0.0
    %2758 = vmatprep.subr.mxu0 0.0
    %2759 = vmatpush1.msra.mxu0 0.0
    %2760 = vmatprep.subr.mxu0 0.0
    %2761 = vmatpush1.msra.mxu0 0.0
    %2762 = vmatprep.mubr.f32.mxu0 0.0
    %2763 = vmatmul.mubr.f32.gmra.mrb[0].mxu0 %v2693
    %v2764 = vpop.f32.mrb[0].mxu0
    %v2765 = vadd.f32 0.0, %v2764
    %v2766 = vpop.f32.mrb[0].mxu0
    %2767 = vmatprep.mubr.f32.mxu0 0.0
    %2768 = vmatmul.mubr.f32.gmra.mrb[0].mxu0 %v2696
    %v2769 = vpop.f32.mrb[0].mxu0
    %v2770 = vadd.f32 0.0, %v2769
    %v2771 = vpop.f32.mrb[0].mxu0
    %2772 = vdwg.mxu0
    %v2773 = vadd.f32 %v2583, %v2765
    %v2774 = vadd.f32 %v2584, %v2770
    %s2775 = scalar_lea.vmem [#allocation7], 32
    %v2776 = vld [vmem:[%s2775] sm:$0xff]
    %v2777 = vld [vmem:[%s2775 + $0x8] sm:$0xff]
    %v2778 = vld [vmem:[%s2775 + $0x10] sm:$0xff]
    %v2779 = vld [vmem:[%s2775 + $0x18] sm:$0xff]
    %v2781 = vsel %vm156, %v2773, 0
    %v2784 = vsel %vm156, %v2774, 0
    %2786 = vmatprep.subr.mxu0 0.0
    %2787 = vmatpush1.msra.mxu0 %v2776
    %2788 = vmatprep.subr.mxu0 0.0
    %2789 = vmatpush1.msra.mxu0 %v2777
    %2790 = vmatprep.subr.mxu0 0.0
    %2791 = vmatpush1.msra.mxu0 %v2778
    %2792 = vmatprep.subr.mxu0 0.0
    %2793 = vmatpush1.msra.mxu0 %v2779
    %2794 = vmatprep.subr.mxu0 0.0
    %2795 = vmatpush1.msra.mxu0 0.0
    %2796 = vmatprep.subr.mxu0 0.0
    %2797 = vmatpush1.msra.mxu0 0.0
    %2798 = vmatprep.subr.mxu0 0.0
    %2799 = vmatpush1.msra.mxu0 0.0
    %2800 = vmatprep.subr.mxu0 0.0
    %2801 = vmatpush1.msra.mxu0 0.0
    %2802 = vmatprep.subr.mxu0 0.0
    %2803 = vmatpush1.msra.mxu0 0.0
    %2804 = vmatprep.subr.mxu0 0.0
    %2805 = vmatpush1.msra.mxu0 0.0
    %2806 = vmatprep.subr.mxu0 0.0
    %2807 = vmatpush1.msra.mxu0 0.0
    %2808 = vmatprep.subr.mxu0 0.0
    %2809 = vmatpush1.msra.mxu0 0.0
    %2810 = vmatprep.subr.mxu0 0.0
    %2811 = vmatpush1.msra.mxu0 0.0
    %2812 = vmatprep.subr.mxu0 0.0
    %2813 = vmatpush1.msra.mxu0 0.0
    %2814 = vmatprep.subr.mxu0 0.0
    %2815 = vmatpush1.msra.mxu0 0.0
    %2816 = vmatprep.subr.mxu0 0.0
    %2817 = vmatpush1.msra.mxu0 0.0
    %2818 = vmatprep.subr.mxu0 0.0
    %2819 = vmatpush1.msra.mxu0 0.0
    %2820 = vmatprep.subr.mxu0 0.0
    %2821 = vmatpush1.msra.mxu0 0.0
    %2822 = vmatprep.subr.mxu0 0.0
    %2823 = vmatpush1.msra.mxu0 0.0
    %2824 = vmatprep.subr.mxu0 0.0
    %2825 = vmatpush1.msra.mxu0 0.0
    %2826 = vmatprep.subr.mxu0 0.0
    %2827 = vmatpush1.msra.mxu0 0.0
    %2828 = vmatprep.subr.mxu0 0.0
    %2829 = vmatpush1.msra.mxu0 0.0
    %2830 = vmatprep.subr.mxu0 0.0
    %2831 = vmatpush1.msra.mxu0 0.0
    %2832 = vmatprep.subr.mxu0 0.0
    %2833 = vmatpush1.msra.mxu0 0.0
    %2834 = vmatprep.subr.mxu0 0.0
    %2835 = vmatpush1.msra.mxu0 0.0
    %2836 = vmatprep.subr.mxu0 0.0
    %2837 = vmatpush1.msra.mxu0 0.0
    %2838 = vmatprep.subr.mxu0 0.0
    %2839 = vmatpush1.msra.mxu0 0.0
    %2840 = vmatprep.subr.mxu0 0.0
    %2841 = vmatpush1.msra.mxu0 0.0
    %2842 = vmatprep.subr.mxu0 0.0
    %2843 = vmatpush1.msra.mxu0 0.0
    %2844 = vmatprep.subr.mxu0 0.0
    %2845 = vmatpush1.msra.mxu0 0.0
    %2846 = vmatprep.subr.mxu0 0.0
    %2847 = vmatpush1.msra.mxu0 0.0
    %2848 = vmatprep.subr.mxu0 0.0
    %2849 = vmatpush1.msra.mxu0 0.0
    %2850 = vmatprep.mubr.f32.mxu0 0.0
    %2851 = vmatmul.mubr.f32.gmra.mrb[0].mxu0 %v2781
    %v2852 = vpop.f32.mrb[0].mxu0
    %v2853 = vadd.f32 0.0, %v2852
    %v2854 = vpop.f32.mrb[0].mxu0
    %2855 = vmatprep.mubr.f32.mxu0 0.0
    %2856 = vmatmul.mubr.f32.gmra.mrb[0].mxu0 %v2784
    %v2857 = vpop.f32.mrb[0].mxu0
    %v2858 = vadd.f32 0.0, %v2857
    %v2859 = vpop.f32.mrb[0].mxu0
    %2860 = vdwg.mxu0
    %v2861 = vadd.f32 %v1685, %v2853
    %v2862 = vadd.f32 %v1686, %v2858
    %v2863 = vmul.f32 %v2861, %v2861
    %v2864 = vmul.f32 %v2862, %v2862
    %v2865 = vsel %vm156, %v2863, 0.0
    %2866 = vadd.xlane.f32.xlu0 %v2865
    %v2867 = vpop.xlane.xlu0 %2866
    %v2868 = vsel %vm156, %v2864, 0.0
    %2869 = vadd.xlane.f32.xlu0 %v2868
    %v2870 = vpop.xlane.xlu0 %2869
    %v2871 = vmul.f32 %v2867, %v163
    %v2872 = vmul.f32 %v2870, %v163
    %v2873 = vadd.f32 %v2871, 1e-06
    %v2874 = vadd.f32 %v2872, 1e-06
    %v2875 = vrsqrt.pop %v2873
    %v2876 = vrsqrt.pop %v2874
    %v2877 = vmul.f32 %v2861, %v2875
    %v2878 = vmul.f32 %v2862, %v2876
    %s2879 = scalar_lea.vmem [#allocation8], 1
    %v2880 = vld [vmem:[%s2879] sm:$0x1]
    %v2882 = vlaneseq
    %v2883 = vshrl.u32 %v2882, 7
    %v2884 = vsub.s32 0, %v2883
    %v2885 = vrot.slane %v2880, %v2884
    %v2887 = vmul.f32 %v2877, %v2885
    %v2888 = vmul.f32 %v2878, %v2885
    %s2889 = scalar_lea.vmem [#allocation10], 32
    %v2890 = vld [vmem:[%s2889] sm:$0xff]
    %v2891 = vld [vmem:[%s2889 + $0x8] sm:$0xff]
    %v2892 = vld [vmem:[%s2889 + $0x10] sm:$0xff]
    %v2893 = vld [vmem:[%s2889 + $0x18] sm:$0xff]
    %v2895 = vsel %vm156, %v2887, 0
    %v2898 = vsel %vm156, %v2888, 0
    %2900 = vmatprep.subr.mxu0 0.0
    %2901 = vmatpush1.msra.mxu0 %v2890
    %2902 = vmatprep.subr.mxu0 0.0
    %2903 = vmatpush1.msra.mxu0 %v2891
    %2904 = vmatprep.subr.mxu0 0.0
    %2905 = vmatpush1.msra.mxu0 %v2892
    %2906 = vmatprep.subr.mxu0 0.0
    %2907 = vmatpush1.msra.mxu0 %v2893
    %2908 = vmatprep.subr.mxu0 0.0
    %2909 = vmatpush1.msra.mxu0 0.0
    %2910 = vmatprep.subr.mxu0 0.0
    %2911 = vmatpush1.msra.mxu0 0.0
    %2912 = vmatprep.subr.mxu0 0.0
    %2913 = vmatpush1.msra.mxu0 0.0
    %2914 = vmatprep.subr.mxu0 0.0
    %2915 = vmatpush1.msra.mxu0 0.0
    %2916 = vmatprep.subr.mxu0 0.0
    %2917 = vmatpush1.msra.mxu0 0.0
    %2918 = vmatprep.subr.mxu0 0.0
    %2919 = vmatpush1.msra.mxu0 0.0
    %2920 = vmatprep.subr.mxu0 0.0
    %2921 = vmatpush1.msra.mxu0 0.0
    %2922 = vmatprep.subr.mxu0 0.0
    %2923 = vmatpush1.msra.mxu0 0.0
    %2924 = vmatprep.subr.mxu0 0.0
    %2925 = vmatpush1.msra.mxu0 0.0
    %2926 = vmatprep.subr.mxu0 0.0
    %2927 = vmatpush1.msra.mxu0 0.0
    %2928 = vmatprep.subr.mxu0 0.0
    %2929 = vmatpush1.msra.mxu0 0.0
    %2930 = vmatprep.subr.mxu0 0.0
    %2931 = vmatpush1.msra.mxu0 0.0
    %2932 = vmatprep.subr.mxu0 0.0
    %2933 = vmatpush1.msra.mxu0 0.0
    %2934 = vmatprep.subr.mxu0 0.0
    %2935 = vmatpush1.msra.mxu0 0.0
    %2936 = vmatprep.subr.mxu0 0.0
    %2937 = vmatpush1.msra.mxu0 0.0
    %2938 = vmatprep.subr.mxu0 0.0
    %2939 = vmatpush1.msra.mxu0 0.0
    %2940 = vmatprep.subr.mxu0 0.0
    %2941 = vmatpush1.msra.mxu0 0.0
    %2942 = vmatprep.subr.mxu0 0.0
    %2943 = vmatpush1.msra.mxu0 0.0
    %2944 = vmatprep.subr.mxu0 0.0
    %2945 = vmatpush1.msra.mxu0 0.0
    %2946 = vmatprep.subr.mxu0 0.0
    %2947 = vmatpush1.msra.mxu0 0.0
    %2948 = vmatprep.subr.mxu0 0.0
    %2949 = vmatpush1.msra.mxu0 0.0
    %2950 = vmatprep.subr.mxu0 0.0
    %2951 = vmatpush1.msra.mxu0 0.0
    %2952 = vmatprep.subr.mxu0 0.0
    %2953 = vmatpush1.msra.mxu0 0.0
    %2954 = vmatprep.subr.mxu0 0.0
    %2955 = vmatpush1.msra.mxu0 0.0
    %2956 = vmatprep.subr.mxu0 0.0
    %2957 = vmatpush1.msra.mxu0 0.0
    %2958 = vmatprep.subr.mxu0 0.0
    %2959 = vmatpush1.msra.mxu0 0.0
    %2960 = vmatprep.subr.mxu0 0.0
    %2961 = vmatpush1.msra.mxu0 0.0
    %2962 = vmatprep.subr.mxu0 0.0
    %2963 = vmatpush1.msra.mxu0 0.0
    %2964 = vmatprep.mubr.f32.mxu0 0.0
    %2965 = vmatmul.mubr.f32.gmra.mrb[0].mxu0 %v2895
    %v2966 = vpop.f32.mrb[0].mxu0
    %v2967 = vadd.f32 0.0, %v2966
    %v2968 = vpop.f32.mrb[0].mxu0
    %2969 = vmatprep.mubr.f32.mxu0 0.0
    %2970 = vmatmul.mubr.f32.gmra.mrb[0].mxu0 %v2898
    %v2971 = vpop.f32.mrb[0].mxu0
    %v2972 = vadd.f32 0.0, %v2971
    %v2973 = vpop.f32.mrb[0].mxu0
    %2974 = vdwg.mxu0
    %s2975 = scalar_lea.vmem [#allocation11], 32
    %v2976 = vld [vmem:[%s2975] sm:$0xff]
    %v2977 = vld [vmem:[%s2975 + $0x8] sm:$0xff]
    %v2978 = vld [vmem:[%s2975 + $0x10] sm:$0xff]
    %v2979 = vld [vmem:[%s2975 + $0x18] sm:$0xff]
    %2980 = vmatprep.subr.mxu0 0.0
    %2981 = vmatpush1.msra.mxu0 %v2976
    %2982 = vmatprep.subr.mxu0 0.0
    %2983 = vmatpush1.msra.mxu0 %v2977
    %2984 = vmatprep.subr.mxu0 0.0
    %2985 = vmatpush1.msra.mxu0 %v2978
    %2986 = vmatprep.subr.mxu0 0.0
    %2987 = vmatpush1.msra.mxu0 %v2979
    %2988 = vmatprep.subr.mxu0 0.0
    %2989 = vmatpush1.msra.mxu0 0.0
    %2990 = vmatprep.subr.mxu0 0.0
    %2991 = vmatpush1.msra.mxu0 0.0
    %2992 = vmatprep.subr.mxu0 0.0
    %2993 = vmatpush1.msra.mxu0 0.0
    %2994 = vmatprep.subr.mxu0 0.0
    %2995 = vmatpush1.msra.mxu0 0.0
    %2996 = vmatprep.subr.mxu0 0.0
    %2997 = vmatpush1.msra.mxu0 0.0
    %2998 = vmatprep.subr.mxu0 0.0
    %2999 = vmatpush1.msra.mxu0 0.0
    %3000 = vmatprep.subr.mxu0 0.0
    %3001 = vmatpush1.msra.mxu0 0.0
    %3002 = vmatprep.subr.mxu0 0.0
    %3003 = vmatpush1.msra.mxu0 0.0
    %3004 = vmatprep.subr.mxu0 0.0
    %3005 = vmatpush1.msra.mxu0 0.0
    %3006 = vmatprep.subr.mxu0 0.0
    %3007 = vmatpush1.msra.mxu0 0.0
    %3008 = vmatprep.subr.mxu0 0.0
    %3009 = vmatpush1.msra.mxu0 0.0
    %3010 = vmatprep.subr.mxu0 0.0
    %3011 = vmatpush1.msra.mxu0 0.0
    %3012 = vmatprep.subr.mxu0 0.0
    %3013 = vmatpush1.msra.mxu0 0.0
    %3014 = vmatprep.subr.mxu0 0.0
    %3015 = vmatpush1.msra.mxu0 0.0
    %3016 = vmatprep.subr.mxu0 0.0
    %3017 = vmatpush1.msra.mxu0 0.0
    %3018 = vmatprep.subr.mxu0 0.0
    %3019 = vmatpush1.msra.mxu0 0.0
    %3020 = vmatprep.subr.mxu0 0.0
    %3021 = vmatpush1.msra.mxu0 0.0
    %3022 = vmatprep.subr.mxu0 0.0
    %3023 = vmatpush1.msra.mxu0 0.0
    %3024 = vmatprep.subr.mxu0 0.0
    %3025 = vmatpush1.msra.mxu0 0.0
    %3026 = vmatprep.subr.mxu0 0.0
    %3027 = vmatpush1.msra.mxu0 0.0
    %3028 = vmatprep.subr.mxu0 0.0
    %3029 = vmatpush1.msra.mxu0 0.0
    %3030 = vmatprep.subr.mxu0 0.0
    %3031 = vmatpush1.msra.mxu0 0.0
    %3032 = vmatprep.subr.mxu0 0.0
    %3033 = vmatpush1.msra.mxu0 0.0
    %3034 = vmatprep.subr.mxu0 0.0
    %3035 = vmatpush1.msra.mxu0 0.0
    %3036 = vmatprep.subr.mxu0 0.0
    %3037 = vmatpush1.msra.mxu0 0.0
    %3038 = vmatprep.subr.mxu0 0.0
    %3039 = vmatpush1.msra.mxu0 0.0
    %3040 = vmatprep.subr.mxu0 0.0
    %3041 = vmatpush1.msra.mxu0 0.0
    %3042 = vmatprep.subr.mxu0 0.0
    %3043 = vmatpush1.msra.mxu0 0.0
    %3044 = vmatprep.mubr.f32.mxu0 0.0
    %3045 = vmatmul.mubr.f32.gmra.mrb[0].mxu0 %v2895
    %v3046 = vpop.f32.mrb[0].mxu0
    %v3047 = vadd.f32 0.0, %v3046
    %v3048 = vpop.f32.mrb[0].mxu0
    %3049 = vmatprep.mubr.f32.mxu0 0.0
    %3050 = vmatmul.mubr.f32.gmra.mrb[0].mxu0 %v2898
    %v3051 = vpop.f32.mrb[0].mxu0
    %v3052 = vadd.f32 0.0, %v3051
    %v3053 = vpop.f32.mrb[0].mxu0
    %3054 = vdwg.mxu0
    %v3055 = vxor.u32 %v2967, 2147483648
    %v3056 = vxor.u32 %v2972, 2147483648
    %v3057 = vmul.f32 %v3055, 1.442695
    %v3058 = vpow.pop %v3057
    %v3059 = vmul.f32 %v3056, 1.442695
    %v3060 = vpow.pop %v3059
    %v3061 = vadd.f32 %v3058, 1.0
    %v3062 = vadd.f32 %v3060, 1.0
    %v3063 = vrcp.pop %v3061
    %v3064 = vmul.f32 1.0, %v3063
    %v3065 = vrcp.pop %v3062
    %v3066 = vmul.f32 1.0, %v3065
    %v3067 = vmul.f32 %v2967, %v3064
    %v3068 = vmul.f32 %v2972, %v3066
    %v3069 = vmul.f32 %v3067, %v3047
    %v3070 = vmul.f32 %v3068, %v3052
    %s3071 = scalar_lea.vmem %s9, 64
    %v3072 = vld [vmem:[%s3071] sm:$0xff]
    %v3073 = vld [vmem:[%s3071 + $0x8] sm:$0xff]
    %v3074 = vld [vmem:[%s3071 + $0x10] sm:$0xff]
    %v3075 = vld [vmem:[%s3071 + $0x18] sm:$0xff]
    %v3076 = vld [vmem:[%s3071 + $0x20] sm:$0xff]
    %v3077 = vld [vmem:[%s3071 + $0x28] sm:$0xff]
    %v3078 = vld [vmem:[%s3071 + $0x30] sm:$0xff]
    %v3079 = vld [vmem:[%s3071 + $0x38] sm:$0xff]
    %v3081 = vsel %vm1603, %v3069, 0
    %v3084 = vsel %vm1603, %v3070, 0
    %3086 = vmatprep.subr.mxu0 0.0
    %3087 = vmatpush1.msra.mxu0 %v3072
    %3088 = vmatprep.subr.mxu0 0.0
    %3089 = vmatpush1.msra.mxu0 %v3073
    %3090 = vmatprep.subr.mxu0 0.0
    %3091 = vmatpush1.msra.mxu0 %v3074
    %3092 = vmatprep.subr.mxu0 0.0
    %3093 = vmatpush1.msra.mxu0 %v3075
    %3094 = vmatprep.subr.mxu0 0.0
    %3095 = vmatpush1.msra.mxu0 %v3076
    %3096 = vmatprep.subr.mxu0 0.0
    %3097 = vmatpush1.msra.mxu0 %v3077
    %3098 = vmatprep.subr.mxu0 0.0
    %3099 = vmatpush1.msra.mxu0 %v3078
    %3100 = vmatprep.subr.mxu0 0.0
    %3101 = vmatpush1.msra.mxu0 %v3079
    %3102 = vmatprep.subr.mxu0 0.0
    %3103 = vmatpush1.msra.mxu0 0.0
    %3104 = vmatprep.subr.mxu0 0.0
    %3105 = vmatpush1.msra.mxu0 0.0
    %3106 = vmatprep.subr.mxu0 0.0
    %3107 = vmatpush1.msra.mxu0 0.0
    %3108 = vmatprep.subr.mxu0 0.0
    %3109 = vmatpush1.msra.mxu0 0.0
    %3110 = vmatprep.subr.mxu0 0.0
    %3111 = vmatpush1.msra.mxu0 0.0
    %3112 = vmatprep.subr.mxu0 0.0
    %3113 = vmatpush1.msra.mxu0 0.0
    %3114 = vmatprep.subr.mxu0 0.0
    %3115 = vmatpush1.msra.mxu0 0.0
    %3116 = vmatprep.subr.mxu0 0.0
    %3117 = vmatpush1.msra.mxu0 0.0
    %3118 = vmatprep.subr.mxu0 0.0
    %3119 = vmatpush1.msra.mxu0 0.0
    %3120 = vmatprep.subr.mxu0 0.0
    %3121 = vmatpush1.msra.mxu0 0.0
    %3122 = vmatprep.subr.mxu0 0.0
    %3123 = vmatpush1.msra.mxu0 0.0
    %3124 = vmatprep.subr.mxu0 0.0
    %3125 = vmatpush1.msra.mxu0 0.0
    %3126 = vmatprep.subr.mxu0 0.0
    %3127 = vmatpush1.msra.mxu0 0.0
    %3128 = vmatprep.subr.mxu0 0.0
    %3129 = vmatpush1.msra.mxu0 0.0
    %3130 = vmatprep.subr.mxu0 0.0
    %3131 = vmatpush1.msra.mxu0 0.0
    %3132 = vmatprep.subr.mxu0 0.0
    %3133 = vmatpush1.msra.mxu0 0.0
    %3134 = vmatprep.subr.mxu0 0.0
    %3135 = vmatpush1.msra.mxu0 0.0
    %3136 = vmatprep.subr.mxu0 0.0
    %3137 = vmatpush1.msra.mxu0 0.0
    %3138 = vmatprep.subr.mxu0 0.0
    %3139 = vmatpush1.msra.mxu0 0.0
    %3140 = vmatprep.subr.mxu0 0.0
    %3141 = vmatpush1.msra.mxu0 0.0
    %3142 = vmatprep.subr.mxu0 0.0
    %3143 = vmatpush1.msra.mxu0 0.0
    %3144 = vmatprep.subr.mxu0 0.0
    %3145 = vmatpush1.msra.mxu0 0.0
    %3146 = vmatprep.subr.mxu0 0.0
    %3147 = vmatpush1.msra.mxu0 0.0
    %3148 = vmatprep.subr.mxu0 0.0
    %3149 = vmatpush1.msra.mxu0 0.0
    %3150 = vmatprep.mubr.f32.mxu0 0.0
    %3151 = vmatmul.mubr.f32.gmra.mrb[0].mxu0 %v3081
    %v3152 = vpop.f32.mrb[0].mxu0
    %v3153 = vadd.f32 0.0, %v3152
    %v3154 = vpop.f32.mrb[0].mxu0
    %3155 = vmatprep.mubr.f32.mxu0 0.0
    %3156 = vmatmul.mubr.f32.gmra.mrb[0].mxu0 %v3084
    %v3157 = vpop.f32.mrb[0].mxu0
    %v3158 = vadd.f32 0.0, %v3157
    %v3159 = vpop.f32.mrb[0].mxu0
    %3160 = vdwg.mxu0
    %v3161 = vadd.f32 %v2861, %v3153
    %v3162 = vadd.f32 %v2862, %v3158
    %3163 = vst.msk [vmem:[#allocation14] sm:$0xff] %vm156, %v3161
    %3164 = vst.msk [vmem:[#allocation14 + $0x8] sm:$0xff] %vm156, %v3162
    // Predicated region
    $region90: #{llama_layers_forward.1} parent=1 // pred_check
      _
    $region91: #{llama_layers_forward.1} parent=1 // pred_check_branch
      %3166 = sbr.rel (0) target = $region93
    $region92: #{llama_layers_forward.1} parent=1 // pred_region
      %s3168 = ssub.s32 256, 256
      %3169 = vsyncadd [#allocation4], %s3168
      %s3170 = sshll.u32 [#allocation14], 4
      %s3171 = int_to_ptr.vmem [resolvable:$true] %s3170
      %3176 = dma.vmem_to_hbm [thread:$0]  %s3171, 256, %s15, [#allocation4], 128, 128, 8
    $region93: #{llama_layers_forward.1} parent=1 // pred_fallthru
      _
    // Predicated region
    $region94: #{llama_layers_forward.1} parent=1 // pred_check
      _
    $region95: #{llama_layers_forward.1} parent=1 // pred_check_branch
      %3178 = sbr.rel (0) target = $region97
    $region96: #{llama_layers_forward.1} parent=1 // pred_region
      %3179 = dma.done [#allocation4], 256
    $region97: #{llama_layers_forward.1} parent=1 // pred_fallthru
      _
    %3180 = vsyncpa [#allocation3], 1
    %3181 = vsyncpa [#allocation6], 1
    %3182 = vsyncpa [#allocation9], 1
    %3183 = vsyncpa [#allocation12], 1
    %3184 = vsyncpa [#allocation4], 1

</llo_original>
